<compile_context>
chip_gen: v7x
topology: tpu7x:2x2x1
jax: 0.10.0
libtpu: 0.0.40
codegen_flags: <defaults>
</compile_context>

<pallas_src>
import numpy as np
import jax
import jax.numpy as jnp
from jax import lax
from jax.experimental import pallas as pl
from jax.experimental.pallas import tpu as pltpu

# ----- small, TPU-friendly model sizes (original: 152218 / 850 / 850) -----
VOCAB = 512
EMB = 128
HID = 128
B = 8
T = 8


# --------------------------- GRU kernel (single call) -----------------------
def gru_kernel(x_ref, wih_ref, whh_ref, bih_ref, bhh_ref, h_out_ref,
               gi_ref, h_sc_ref):
    # x_ref:   (T, B, E)   bf16  time-major embeddings
    # wih_ref: (E, 3H)     bf16  transposed weight_ih (gate order r, z, n)
    # whh_ref: (H, 3H)     bf16  transposed weight_hh
    # bih/bhh: (1, 3H)     f32
    # h_out:   (B, T, H)   bf16  batch-major hidden states (head-ready layout)
    # gi_ref:  (T, B, 3H)  f32   VMEM scratch (ref-backed input projection)
    # h_sc:    (B, T, H)   f32   VMEM scratch (batch-major accumulation)
    Tn, Bn, En = x_ref.shape
    Hn = whh_ref.shape[0]

    # Hoisted input projection: ONE (T*B, E) @ (E, 3H) matmul (f32 accumulate),
    # written straight into VMEM scratch so it is NOT held live in vregs across
    # the unrolled recurrence.
    x_flat = x_ref[...].reshape(Tn * Bn, En)
    gi_ref[...] = (jnp.dot(x_flat, wih_ref[...],
                           preferred_element_type=jnp.float32)
                   + bih_ref[...]).reshape(Tn, Bn, 3 * Hn)

    # Static Python loop == fully unrolled recurrence (T is small).  All large
    # operands (gi, W_hh, b_hh) are read from their VMEM refs inside the body,
    # keeping live ranges short and leaving scheduling to the compiler.
    h = jnp.zeros((Bn, Hn), jnp.float32)
    for t in range(Tn):
        gi = gi_ref[t]                                                # (B, 3H)
        gh = jnp.dot(h.astype(jnp.bfloat16), whh_ref[...],
                     preferred_element_type=jnp.float32) + bhh_ref[...]
        r = jax.nn.sigmoid(gi[:, :Hn] + gh[:, :Hn])
        z = jax.nn.sigmoid(gi[:, Hn:2 * Hn] + gh[:, Hn:2 * Hn])
        n = jnp.tanh(gi[:, 2 * Hn:] + r * gh[:, 2 * Hn:])
        h = (1.0 - z) * n + z * h
        h_sc_ref[:, t, :] = h                       # batch-major, static index

    # Single bf16 cast + store of the whole (B, T, H) result: the head consumes
    # bf16 and the layout already matches, so no wrapper transpose/convert and
    # half the HBM traffic between the two pallas_calls.
    h_out_ref[...] = h_sc_ref[...].astype(h_out_ref.dtype)


def run_gru(x_tm, w_ih_t, w_hh_t, b_ih, b_hh):
    # x_tm: (T, B, E) bf16 time-major; w_*_t already transposed; biases (1,3H) f32.
    Tn, Bn, _ = x_tm.shape
    Hn = w_hh_t.shape[0]
    return pl.pallas_call(
        gru_kernel,
        out_shape=jax.ShapeDtypeStruct((Bn, Tn, Hn), jnp.bfloat16),
        scratch_shapes=[
            pltpu.VMEM((Tn, Bn, 3 * Hn), jnp.float32),   # gi (input projection)
            pltpu.VMEM((Bn, Tn, Hn), jnp.float32),       # batch-major h
        ],
    )(x_tm, w_ih_t, w_hh_t, b_ih, b_hh)


# ------------------ output projection + log-softmax kernel ------------------
def head_kernel(h_ref, w_ref, b_ref, logp_ref):
    # h_ref:  (rows, H)  bf16
    # w_ref:  (H, V)     bf16   transposed output weight
    # b_ref:  (1, V)     f32
    # logp:   (rows, V)  f32    log_softmax(logits)
    logits = jnp.dot(h_ref[...], w_ref[...],
                     preferred_element_type=jnp.float32) + b_ref[...]
    m = jnp.max(logits, axis=-1, keepdims=True)
    lse = m + jnp.log(jnp.sum(jnp.exp(logits - m), axis=-1, keepdims=True))
    logp_ref[...] = (logits - lse).astype(logp_ref.dtype)


def run_head(h_flat, w_out_t, b_out, block_rows=64):
    # TODO(synk): at real sizes (V=152218, H=850) the full-V weight tile
    # (~260 MB bf16) cannot fit VMEM; add a V grid axis (last, "arbitrary")
    # with an online logsumexp (m/l VMEM scratch, logits emitted per V-tile
    # and normalized in a cheap second pass).  Size V_tile per chip: ~4096 on
    # v7x (64 MiB VMEM), 8192-16384 on v5e/v6e (128 MiB, vmem_limit_bytes
    # raised); keep V_tile a multiple of 128 for lane-dense unmasked stores,
    # and give each TC >= 256 rows before splitting the row axis on v7x.
    N, Hn = h_flat.shape
    V = w_out_t.shape[1]
    n_tiles = pl.cdiv(N, block_rows)
    padded = n_tiles * block_rows
    if padded != N:
        h_flat = jnp.pad(h_flat, ((0, padded - N), (0, 0)))
    logp = pl.pallas_call(
        head_kernel,
        out_shape=jax.ShapeDtypeStruct((padded, V), jnp.float32),
        grid=(n_tiles,),
        in_specs=[
            pl.BlockSpec((block_rows, Hn), lambda i: (i, 0)),
            pl.BlockSpec((Hn, V), lambda i: (0, 0)),
            pl.BlockSpec((1, V), lambda i: (0, 0)),
        ],
        out_specs=pl.BlockSpec((block_rows, V), lambda i: (i, 0)),
        compiler_params=pltpu.CompilerParams(
            dimension_semantics=("parallel",)),
    )(h_flat, w_out_t, b_out)
    return logp[:N] if padded != N else logp


# --------------------------- one-time param prep -----------------------------
def prepare_params(params):
    """Transpose + cast weights ONCE, outside the jitted forward."""
    emb_table, w_ih, w_hh, b_ih, b_hh, w_out, b_out = params
    return (
        emb_table,                                   # (V, E) f32 (rows gathered+cast per call)
        jnp.asarray(w_ih).T.astype(jnp.bfloat16),    # (E, 3H)
        jnp.asarray(w_hh).T.astype(jnp.bfloat16),    # (H, 3H)
        jnp.asarray(b_ih)[None, :].astype(jnp.float32),   # (1, 3H)
        jnp.asarray(b_hh)[None, :].astype(jnp.float32),   # (1, 3H)
        jnp.asarray(w_out).T.astype(jnp.bfloat16),   # (H, V)
        jnp.asarray(b_out)[None, :].astype(jnp.float32),  # (1, V)
    )


# ------------------------------ full forward --------------------------------
@jax.jit
def language_model_forward(prepared, sent, sent_length):
    emb_table, w_ih_t, w_hh_t, b_ih, b_hh, w_out_t, b_out = prepared
    Bn, Tn = sent.shape
    Hn = w_hh_t.shape[0]
    V = w_out_t.shape[1]

    # Embedding lookup directly in time-major order; cast ONLY the gathered
    # (T, B, E) rows to bf16 (not the whole table).
    x_tm = jnp.take(emb_table, sent.T, axis=0).astype(jnp.bfloat16)   # (T, B, E)

    # GRU (time-major inside the kernel, batch-major bf16 output).
    h_bt = run_gru(x_tm, w_ih_t, w_hh_t, b_ih, b_hh)                  # (B, T, H) bf16
    h_flat = h_bt.reshape(Bn * Tn, Hn)

    # Output projection + log_softmax; logp produced directly in (B, T, V) order.
    logp_flat = run_head(h_flat, w_out_t, b_out)
    gen_log_prob = logp_flat.reshape(Bn, Tn, V)

    # Next-token targets: target[b, t] = sent[b, t+1] (dummy 0 in last column,
    # masked out below exactly like the PyTorch per-sentence slicing).
    targets = jnp.concatenate(
        [sent[:, 1:], jnp.zeros((Bn, 1), dtype=sent.dtype)], axis=1)
    nll = -jnp.take_along_axis(gen_log_prob,
                               targets[..., None].astype(jnp.int32),
                               axis=-1)[..., 0]                       # (B, T)

    # Per-sentence mean CE over positions [0, length-2], only if length > 1,
    # then mean over those sentences (0.0 if none).
    # TODO(synk): torch.stack(loss).mean() with a Python-level length filter is
    # realized as a masked vectorized mean (identical value for same inputs).
    t_idx = jnp.arange(Tn)[None, :]
    length = sent_length[:, None]
    valid = ((t_idx < (length - 1)) & (length > 1)).astype(jnp.float32)
    per_sent = jnp.sum(nll * valid, axis=1) / jnp.maximum(
        (sent_length - 1).astype(jnp.float32), 1.0)
    has_loss = (sent_length > 1).astype(jnp.float32)
    n_valid = jnp.sum(has_loss)
    loss = jnp.where(n_valid > 0,
                     jnp.sum(per_sent * has_loss) / jnp.maximum(n_valid, 1.0),
                     0.0)
    return loss, gen_log_prob


# ------------------------------ pure-JAX reference ---------------------------
def reference_forward(params, sent, sent_length):
    emb_table, w_ih, w_hh, b_ih, b_hh, w_out, b_out = params
    Bn, Tn = sent.shape
    Hn = w_hh.shape[0] // 3
    x = jnp.take(emb_table, sent, axis=0)                # (B, T, E)

    def step(hprev, xt):
        gi = xt @ w_ih.T + b_ih
        gh = hprev @ w_hh.T + b_hh
        r = jax.nn.sigmoid(gi[:, :Hn] + gh[:, :Hn])
        z = jax.nn.sigmoid(gi[:, Hn:2 * Hn] + gh[:, Hn:2 * Hn])
        n = jnp.tanh(gi[:, 2 * Hn:] + r * gh[:, 2 * Hn:])
        hnew = (1.0 - z) * n + z * hprev
        return hnew, hnew

    _, hs = lax.scan(step, jnp.zeros((Bn, Hn), jnp.float32),
                     jnp.transpose(x, (1, 0, 2)))
    h = jnp.transpose(hs, (1, 0, 2))
    logits = h @ w_out.T + b_out
    logp = jax.nn.log_softmax(logits, axis=-1)

    targets = jnp.concatenate(
        [sent[:, 1:], jnp.zeros((Bn, 1), dtype=sent.dtype)], axis=1)
    nll = -jnp.take_along_axis(logp, targets[..., None], axis=-1)[..., 0]
    t_idx = jnp.arange(Tn)[None, :]
    length = sent_length[:, None]
    valid = ((t_idx < (length - 1)) & (length > 1)).astype(jnp.float32)
    per_sent = jnp.sum(nll * valid, axis=1) / jnp.maximum(
        (sent_length - 1).astype(jnp.float32), 1.0)
    has = (sent_length > 1).astype(jnp.float32)
    loss = jnp.where(jnp.sum(has) > 0,
                     jnp.sum(per_sent * has) / jnp.maximum(jnp.sum(has), 1.0),
                     0.0)
    return loss, logp


if __name__ == "__main__":
    key = jax.random.PRNGKey(0)
    ks = jax.random.split(key, 8)
    scale = 0.1
    params = (
        (jax.random.normal(ks[0], (VOCAB, EMB)) * scale).astype(jnp.float32),    # embedding
        (jax.random.normal(ks[1], (3 * HID, EMB)) * scale).astype(jnp.float32),  # weight_ih_l0
        (jax.random.normal(ks[2], (3 * HID, HID)) * scale).astype(jnp.float32),  # weight_hh_l0
        (jax.random.normal(ks[3], (3 * HID,)) * scale).astype(jnp.float32),      # bias_ih_l0
        (jax.random.normal(ks[4], (3 * HID,)) * scale).astype(jnp.float32),      # bias_hh_l0
        (jax.random.normal(ks[5], (VOCAB, HID)) * scale).astype(jnp.float32),    # output weight
        (jax.random.normal(ks[6], (VOCAB,)) * scale).astype(jnp.float32),        # output bias
    )
    sent = jax.random.randint(ks[7], (B, T), 0, VOCAB, dtype=jnp.int32)
    sent_length = jnp.array([8, 5, 1, 6, 2, 8, 3, 7], dtype=jnp.int32)  # includes a length-1 sentence

    # One-time weight prep (transpose + bf16 cast) outside the jitted forward.
    prepared = jax.tree_util.tree_map(jax.block_until_ready,
                                      prepare_params(params))

    loss, gen_log_prob = language_model_forward(prepared, sent, sent_length)
    loss = jax.block_until_ready(loss)
    gen_log_prob = jax.block_until_ready(gen_log_prob)

    # Sanity check against a pure-f32 JAX reference (kernel uses bf16 matmul
    # operands with f32 accumulation, hence the slightly looser tolerance).
    loss_ref, logp_ref = reference_forward(params, sent, sent_length)
    np.testing.assert_allclose(np.asarray(loss), np.asarray(loss_ref),
                               rtol=1e-2, atol=1e-2)
    np.testing.assert_allclose(np.asarray(gen_log_prob), np.asarray(logp_ref),
                               rtol=1e-2, atol=1e-2)

    print("KERNEL_OK")
</pallas_src>

<mosaic_0001>
module attributes {stable_mosaic.version = 11 : i64} {
  func.func @head_kernel(%arg0: i32, %arg1: memref<64x128xbf16, #tpu.memory_space<vmem>>, %arg2: memref<128x512xbf16, #tpu.memory_space<vmem>>, %arg3: memref<1x512xf32, #tpu.memory_space<vmem>>, %arg4: memref<64x512xf32, #tpu.memory_space<vmem>>) attributes {dimension_semantics = [#tpu.dimension_semantics<parallel>], iteration_bounds = array<i64: 1>, scalar_prefetch = 0 : i64, scratch_operands = 0 : i64, tpu.core_type = #tpu.core_type<tc>, window_params = [{transform_indices = @transform_0, window_bounds = array<i64: 64, 128>}, {pipeline_mode = #tpu.pipeline_mode<synchronous>, transform_indices = @transform_1, window_bounds = array<i64: 128, 512>}, {pipeline_mode = #tpu.pipeline_mode<synchronous>, transform_indices = @transform_2, window_bounds = array<i64: 1, 512>}, {transform_indices = @transform_3, window_bounds = array<i64: 64, 512>}]} {
    %c0 = arith.constant 0 : index
    %c0_0 = arith.constant 0 : index
    %0 = vector.load %arg1[%c0, %c0_0] : memref<64x128xbf16, #tpu.memory_space<vmem>>, vector<64x128xbf16>
    %c0_1 = arith.constant 0 : index
    %c0_2 = arith.constant 0 : index
    %1 = vector.load %arg2[%c0_1, %c0_2] : memref<128x512xbf16, #tpu.memory_space<vmem>>, vector<128x512xbf16>
    %cst = arith.constant dense<0.000000e+00> : vector<64x512xf32>
    %2 = tpu.matmul %0, %1, %cst {dimension_numbers = #tpu.dot_dimension_numbers<[1], [0], [0], [1], [0, 0, 1, 1], [], []>} : vector<64x128xbf16>, vector<128x512xbf16>, vector<64x512xf32> -> vector<64x512xf32>
    %c0_3 = arith.constant 0 : index
    %c0_4 = arith.constant 0 : index
    %3 = vector.load %arg3[%c0_3, %c0_4] : memref<1x512xf32, #tpu.memory_space<vmem>>, vector<1x512xf32>
    %4 = vector.broadcast %3 : vector<1x512xf32> to vector<64x512xf32>
    %5 = arith.addf %2, %4 : vector<64x512xf32>
    %cst_5 = arith.constant dense<0xFF800000> : vector<64xf32>
    %6 = vector.multi_reduction <maximumf>, %5, %cst_5 [1] : vector<64x512xf32> to vector<64xf32>
    %7 = vector.shape_cast %6 : vector<64xf32> to vector<64x1xf32>
    %8 = vector.broadcast %7 : vector<64x1xf32> to vector<64x512xf32>
    %9 = arith.subf %5, %8 : vector<64x512xf32>
    %10 = math.exp %9 : vector<64x512xf32>
    %cst_6 = arith.constant dense<0.000000e+00> : vector<64xf32>
    %11 = vector.multi_reduction <add>, %10, %cst_6 [1] : vector<64x512xf32> to vector<64xf32>
    %12 = vector.shape_cast %11 : vector<64xf32> to vector<64x1xf32>
    %13 = math.log %12 : vector<64x1xf32>
    %14 = arith.addf %7, %13 : vector<64x1xf32>
    %15 = vector.broadcast %14 : vector<64x1xf32> to vector<64x512xf32>
    %16 = arith.subf %5, %15 : vector<64x512xf32>
    %c0_7 = arith.constant 0 : index
    %c0_8 = arith.constant 0 : index
    %17 = vector.load %arg4[%c0_7, %c0_8] : memref<64x512xf32, #tpu.memory_space<vmem>>, vector<64x512xf32>
    tpu.vector_store %arg4[%c0_7, %c0_8], %16 {strides = array<i32>} : memref<64x512xf32, #tpu.memory_space<vmem>>, vector<64x512xf32>,
    return
  }
  func.func @transform_0(%arg0: i32) -> (i32, i32) {
    %c0_i32 = arith.constant 0 : i32
    %c0_i32_0 = arith.constant 0 : i32
    return %arg0, %c0_i32 : i32, i32
  }
  func.func @transform_1(%arg0: i32) -> (i32, i32) {
    %c0_i32 = arith.constant 0 : i32
    %c0_i32_0 = arith.constant 0 : i32
    %c0_i32_1 = arith.constant 0 : i32
    return %c0_i32, %c0_i32_0 : i32, i32
  }
  func.func @transform_2(%arg0: i32) -> (i32, i32) {
    %c0_i32 = arith.constant 0 : i32
    %c0_i32_0 = arith.constant 0 : i32
    %c0_i32_1 = arith.constant 0 : i32
    return %c0_i32, %c0_i32_0 : i32, i32
  }
  func.func @transform_3(%arg0: i32) -> (i32, i32) {
    %c0_i32 = arith.constant 0 : i32
    %c0_i32_0 = arith.constant 0 : i32
    return %arg0, %c0_i32 : i32, i32
  }
}

module attributes {stable_mosaic.version = 11 : i64} {
  func.func @gru_kernel(%arg0: memref<8x8x128xbf16, #tpu.memory_space<vmem>>, %arg1: memref<128x384xbf16, #tpu.memory_space<vmem>>, %arg2: memref<128x384xbf16, #tpu.memory_space<vmem>>, %arg3: memref<1x384xf32, #tpu.memory_space<vmem>>, %arg4: memref<1x384xf32, #tpu.memory_space<vmem>>, %arg5: memref<8x8x128xbf16, #tpu.memory_space<vmem>>, %arg6: memref<8x8x384xf32, #tpu.memory_space<vmem>>, %arg7: memref<8x8x128xf32, #tpu.memory_space<vmem>>) attributes {dimension_semantics = [], scalar_prefetch = 0 : i64, scratch_operands = 2 : i64, tpu.core_type = #tpu.core_type<tc>} {
    %c0 = arith.constant 0 : index
    %c0_0 = arith.constant 0 : index
    %c0_1 = arith.constant 0 : index
    %0 = vector.load %arg0[%c0, %c0_0, %c0_1] : memref<8x8x128xbf16, #tpu.memory_space<vmem>>, vector<8x8x128xbf16>
    %1 = vector.shape_cast %0 : vector<8x8x128xbf16> to vector<64x128xbf16>
    %c0_2 = arith.constant 0 : index
    %c0_3 = arith.constant 0 : index
    %2 = vector.load %arg1[%c0_2, %c0_3] : memref<128x384xbf16, #tpu.memory_space<vmem>>, vector<128x384xbf16>
    %cst = arith.constant dense<0.000000e+00> : vector<64x384xf32>
    %3 = tpu.matmul %1, %2, %cst {dimension_numbers = #tpu.dot_dimension_numbers<[1], [0], [0], [1], [0, 0, 1, 1], [], []>} : vector<64x128xbf16>, vector<128x384xbf16>, vector<64x384xf32> -> vector<64x384xf32>
    %c0_4 = arith.constant 0 : index
    %c0_5 = arith.constant 0 : index
    %4 = vector.load %arg3[%c0_4, %c0_5] : memref<1x384xf32, #tpu.memory_space<vmem>>, vector<1x384xf32>
    %5 = vector.broadcast %4 : vector<1x384xf32> to vector<64x384xf32>
    %6 = arith.addf %3, %5 : vector<64x384xf32>
    %7 = vector.shape_cast %6 : vector<64x384xf32> to vector<8x8x384xf32>
    %c0_6 = arith.constant 0 : index
    %c0_7 = arith.constant 0 : index
    %c0_8 = arith.constant 0 : index
    %8 = vector.load %arg6[%c0_6, %c0_7, %c0_8] : memref<8x8x384xf32, #tpu.memory_space<vmem>>, vector<8x8x384xf32>
    tpu.vector_store %arg6[%c0_6, %c0_7, %c0_8], %7 {strides = array<i32>} : memref<8x8x384xf32, #tpu.memory_space<vmem>>, vector<8x8x384xf32>,
    %cst_9 = arith.constant 0.000000e+00 : f32
    %9 = vector.broadcast %cst_9 : f32 to vector<8x128xf32>
    %c0_10 = arith.constant 0 : index
    %c0_11 = arith.constant 0 : index
    %c0_12 = arith.constant 0 : index
    %10 = vector.load %arg6[%c0_10, %c0_11, %c0_12] : memref<8x8x384xf32, #tpu.memory_space<vmem>>, vector<1x8x384xf32>
    %11 = vector.shape_cast %10 : vector<1x8x384xf32> to vector<8x384xf32>
    %12 = arith.truncf %9 : vector<8x128xf32> to vector<8x128xbf16>
    %c0_13 = arith.constant 0 : index
    %c0_14 = arith.constant 0 : index
    %13 = vector.load %arg2[%c0_13, %c0_14] : memref<128x384xbf16, #tpu.memory_space<vmem>>, vector<128x384xbf16>
    %cst_15 = arith.constant dense<0.000000e+00> : vector<8x384xf32>
    %14 = tpu.matmul %12, %13, %cst_15 {dimension_numbers = #tpu.dot_dimension_numbers<[1], [0], [0], [1], [0, 0, 1, 1], [], []>} : vector<8x128xbf16>, vector<128x384xbf16>, vector<8x384xf32> -> vector<8x384xf32>
    %c0_16 = arith.constant 0 : index
    %c0_17 = arith.constant 0 : index
    %15 = vector.load %arg4[%c0_16, %c0_17] : memref<1x384xf32, #tpu.memory_space<vmem>>, vector<1x384xf32>
    %16 = vector.broadcast %15 : vector<1x384xf32> to vector<8x384xf32>
    %17 = arith.addf %14, %16 : vector<8x384xf32>
    %18 = vector.extract_strided_slice %11 {offsets = [0, 0], sizes = [8, 128], strides = [1, 1]} : vector<8x384xf32> to vector<8x128xf32>
    %19 = vector.extract_strided_slice %17 {offsets = [0, 0], sizes = [8, 128], strides = [1, 1]} : vector<8x384xf32> to vector<8x128xf32>
    %20 = arith.addf %18, %19 : vector<8x128xf32>
    %21 = arith.negf %20 : vector<8x128xf32>
    %22 = math.exp %21 : vector<8x128xf32>
    %cst_18 = arith.constant 1.000000e+00 : f32
    %23 = vector.broadcast %cst_18 : f32 to vector<8x128xf32>
    %24 = arith.addf %23, %22 : vector<8x128xf32>
    %25 = arith.divf %23, %24 : vector<8x128xf32>
    %26 = vector.extract_strided_slice %11 {offsets = [0, 128], sizes = [8, 128], strides = [1, 1]} : vector<8x384xf32> to vector<8x128xf32>
    %27 = vector.extract_strided_slice %17 {offsets = [0, 128], sizes = [8, 128], strides = [1, 1]} : vector<8x384xf32> to vector<8x128xf32>
    %28 = arith.addf %26, %27 : vector<8x128xf32>
    %29 = arith.negf %28 : vector<8x128xf32>
    %30 = math.exp %29 : vector<8x128xf32>
    %cst_19 = arith.constant 1.000000e+00 : f32
    %31 = vector.broadcast %cst_19 : f32 to vector<8x128xf32>
    %32 = arith.addf %31, %30 : vector<8x128xf32>
    %33 = arith.divf %31, %32 : vector<8x128xf32>
    %34 = vector.extract_strided_slice %11 {offsets = [0, 256], sizes = [8, 128], strides = [1, 1]} : vector<8x384xf32> to vector<8x128xf32>
    %35 = vector.extract_strided_slice %17 {offsets = [0, 256], sizes = [8, 128], strides = [1, 1]} : vector<8x384xf32> to vector<8x128xf32>
    %36 = arith.mulf %25, %35 : vector<8x128xf32>
    %37 = arith.addf %34, %36 : vector<8x128xf32>
    %38 = math.tanh %37 : vector<8x128xf32>
    %cst_20 = arith.constant 1.000000e+00 : f32
    %39 = vector.broadcast %cst_20 : f32 to vector<8x128xf32>
    %40 = arith.subf %39, %33 : vector<8x128xf32>
    %41 = arith.mulf %40, %38 : vector<8x128xf32>
    %42 = arith.mulf %33, %9 : vector<8x128xf32>
    %43 = arith.addf %41, %42 : vector<8x128xf32>
    %c0_21 = arith.constant 0 : index
    %c0_22 = arith.constant 0 : index
    %c0_23 = arith.constant 0 : index
    %44 = vector.load %arg7[%c0_21, %c0_22, %c0_23] : memref<8x8x128xf32, #tpu.memory_space<vmem>>, vector<8x1x128xf32>
    %45 = vector.shape_cast %44 : vector<8x1x128xf32> to vector<8x128xf32>
    %46 = vector.shape_cast %43 : vector<8x128xf32> to vector<8x1x128xf32>
    tpu.vector_store %arg7[%c0_21, %c0_22, %c0_23], %46 {strides = array<i32>} : memref<8x8x128xf32, #tpu.memory_space<vmem>>, vector<8x1x128xf32>,
    %c1 = arith.constant 1 : index
    %c0_24 = arith.constant 0 : index
    %c0_25 = arith.constant 0 : index
    %47 = vector.load %arg6[%c1, %c0_24, %c0_25] : memref<8x8x384xf32, #tpu.memory_space<vmem>>, vector<1x8x384xf32>
    %48 = vector.shape_cast %47 : vector<1x8x384xf32> to vector<8x384xf32>
    %49 = arith.truncf %43 : vector<8x128xf32> to vector<8x128xbf16>
    %c0_26 = arith.constant 0 : index
    %c0_27 = arith.constant 0 : index
    %50 = vector.load %arg2[%c0_26, %c0_27] : memref<128x384xbf16, #tpu.memory_space<vmem>>, vector<128x384xbf16>
    %cst_28 = arith.constant dense<0.000000e+00> : vector<8x384xf32>
    %51 = tpu.matmul %49, %50, %cst_28 {dimension_numbers = #tpu.dot_dimension_numbers<[1], [0], [0], [1], [0, 0, 1, 1], [], []>} : vector<8x128xbf16>, vector<128x384xbf16>, vector<8x384xf32> -> vector<8x384xf32>
    %c0_29 = arith.constant 0 : index
    %c0_30 = arith.constant 0 : index
    %52 = vector.load %arg4[%c0_29, %c0_30] : memref<1x384xf32, #tpu.memory_space<vmem>>, vector<1x384xf32>
    %53 = vector.broadcast %52 : vector<1x384xf32> to vector<8x384xf32>
    %54 = arith.addf %51, %53 : vector<8x384xf32>
    %55 = vector.extract_strided_slice %48 {offsets = [0, 0], sizes = [8, 128], strides = [1, 1]} : vector<8x384xf32> to vector<8x128xf32>
    %56 = vector.extract_strided_slice %54 {offsets = [0, 0], sizes = [8, 128], strides = [1, 1]} : vector<8x384xf32> to vector<8x128xf32>
    %57 = arith.addf %55, %56 : vector<8x128xf32>
    %58 = arith.negf %57 : vector<8x128xf32>
    %59 = math.exp %58 : vector<8x128xf32>
    %cst_31 = arith.constant 1.000000e+00 : f32
    %60 = vector.broadcast %cst_31 : f32 to vector<8x128xf32>
    %61 = arith.addf %60, %59 : vector<8x128xf32>
    %62 = arith.divf %60, %61 : vector<8x128xf32>
    %63 = vector.extract_strided_slice %48 {offsets = [0, 128], sizes = [8, 128], strides = [1, 1]} : vector<8x384xf32> to vector<8x128xf32>
    %64 = vector.extract_strided_slice %54 {offsets = [0, 128], sizes = [8, 128], strides = [1, 1]} : vector<8x384xf32> to vector<8x128xf32>
    %65 = arith.addf %63, %64 : vector<8x128xf32>
    %66 = arith.negf %65 : vector<8x128xf32>
    %67 = math.exp %66 : vector<8x128xf32>
    %cst_32 = arith.constant 1.000000e+00 : f32
    %68 = vector.broadcast %cst_32 : f32 to vector<8x128xf32>
    %69 = arith.addf %68, %67 : vector<8x128xf32>
    %70 = arith.divf %68, %69 : vector<8x128xf32>
    %71 = vector.extract_strided_slice %48 {offsets = [0, 256], sizes = [8, 128], strides = [1, 1]} : vector<8x384xf32> to vector<8x128xf32>
    %72 = vector.extract_strided_slice %54 {offsets = [0, 256], sizes = [8, 128], strides = [1, 1]} : vector<8x384xf32> to vector<8x128xf32>
    %73 = arith.mulf %62, %72 : vector<8x128xf32>
    %74 = arith.addf %71, %73 : vector<8x128xf32>
    %75 = math.tanh %74 : vector<8x128xf32>
    %cst_33 = arith.constant 1.000000e+00 : f32
    %76 = vector.broadcast %cst_33 : f32 to vector<8x128xf32>
    %77 = arith.subf %76, %70 : vector<8x128xf32>
    %78 = arith.mulf %77, %75 : vector<8x128xf32>
    %79 = arith.mulf %70, %43 : vector<8x128xf32>
    %80 = arith.addf %78, %79 : vector<8x128xf32>
    %c0_34 = arith.constant 0 : index
    %c1_35 = arith.constant 1 : index
    %c0_36 = arith.constant 0 : index
    %81 = vector.load %arg7[%c0_34, %c1_35, %c0_36] : memref<8x8x128xf32, #tpu.memory_space<vmem>>, vector<8x1x128xf32>
    %82 = vector.shape_cast %81 : vector<8x1x128xf32> to vector<8x128xf32>
    %83 = vector.shape_cast %80 : vector<8x128xf32> to vector<8x1x128xf32>
    tpu.vector_store %arg7[%c0_34, %c1_35, %c0_36], %83 {strides = array<i32>} : memref<8x8x128xf32, #tpu.memory_space<vmem>>, vector<8x1x128xf32>,
    %c2 = arith.constant 2 : index
    %c0_37 = arith.constant 0 : index
    %c0_38 = arith.constant 0 : index
    %84 = vector.load %arg6[%c2, %c0_37, %c0_38] : memref<8x8x384xf32, #tpu.memory_space<vmem>>, vector<1x8x384xf32>
    %85 = vector.shape_cast %84 : vector<1x8x384xf32> to vector<8x384xf32>
    %86 = arith.truncf %80 : vector<8x128xf32> to vector<8x128xbf16>
    %c0_39 = arith.constant 0 : index
    %c0_40 = arith.constant 0 : index
    %87 = vector.load %arg2[%c0_39, %c0_40] : memref<128x384xbf16, #tpu.memory_space<vmem>>, vector<128x384xbf16>
    %cst_41 = arith.constant dense<0.000000e+00> : vector<8x384xf32>
    %88 = tpu.matmul %86, %87, %cst_41 {dimension_numbers = #tpu.dot_dimension_numbers<[1], [0], [0], [1], [0, 0, 1, 1], [], []>} : vector<8x128xbf16>, vector<128x384xbf16>, vector<8x384xf32> -> vector<8x384xf32>
    %c0_42 = arith.constant 0 : index
    %c0_43 = arith.constant 0 : index
    %89 = vector.load %arg4[%c0_42, %c0_43] : memref<1x384xf32, #tpu.memory_space<vmem>>, vector<1x384xf32>
    %90 = vector.broadcast %89 : vector<1x384xf32> to vector<8x384xf32>
    %91 = arith.addf %88, %90 : vector<8x384xf32>
    %92 = vector.extract_strided_slice %85 {offsets = [0, 0], sizes = [8, 128], strides = [1, 1]} : vector<8x384xf32> to vector<8x128xf32>
    %93 = vector.extract_strided_slice %91 {offsets = [0, 0], sizes = [8, 128], strides = [1, 1]} : vector<8x384xf32> to vector<8x128xf32>
    %94 = arith.addf %92, %93 : vector<8x128xf32>
    %95 = arith.negf %94 : vector<8x128xf32>
    %96 = math.exp %95 : vector<8x128xf32>
    %cst_44 = arith.constant 1.000000e+00 : f32
    %97 = vector.broadcast %cst_44 : f32 to vector<8x128xf32>
    %98 = arith.addf %97, %96 : vector<8x128xf32>
    %99 = arith.divf %97, %98 : vector<8x128xf32>
    %100 = vector.extract_strided_slice %85 {offsets = [0, 128], sizes = [8, 128], strides = [1, 1]} : vector<8x384xf32> to vector<8x128xf32>
    %101 = vector.extract_strided_slice %91 {offsets = [0, 128], sizes = [8, 128], strides = [1, 1]} : vector<8x384xf32> to vector<8x128xf32>
    %102 = arith.addf %100, %101 : vector<8x128xf32>
    %103 = arith.negf %102 : vector<8x128xf32>
    %104 = math.exp %103 : vector<8x128xf32>
    %cst_45 = arith.constant 1.000000e+00 : f32
    %105 = vector.broadcast %cst_45 : f32 to vector<8x128xf32>
    %106 = arith.addf %105, %104 : vector<8x128xf32>
    %107 = arith.divf %105, %106 : vector<8x128xf32>
    %108 = vector.extract_strided_slice %85 {offsets = [0, 256], sizes = [8, 128], strides = [1, 1]} : vector<8x384xf32> to vector<8x128xf32>
    %109 = vector.extract_strided_slice %91 {offsets = [0, 256], sizes = [8, 128], strides = [1, 1]} : vector<8x384xf32> to vector<8x128xf32>
    %110 = arith.mulf %99, %109 : vector<8x128xf32>
    %111 = arith.addf %108, %110 : vector<8x128xf32>
    %112 = math.tanh %111 : vector<8x128xf32>
    %cst_46 = arith.constant 1.000000e+00 : f32
    %113 = vector.broadcast %cst_46 : f32 to vector<8x128xf32>
    %114 = arith.subf %113, %107 : vector<8x128xf32>
    %115 = arith.mulf %114, %112 : vector<8x128xf32>
    %116 = arith.mulf %107, %80 : vector<8x128xf32>
    %117 = arith.addf %115, %116 : vector<8x128xf32>
    %c0_47 = arith.constant 0 : index
    %c2_48 = arith.constant 2 : index
    %c0_49 = arith.constant 0 : index
    %118 = vector.load %arg7[%c0_47, %c2_48, %c0_49] : memref<8x8x128xf32, #tpu.memory_space<vmem>>, vector<8x1x128xf32>
    %119 = vector.shape_cast %118 : vector<8x1x128xf32> to vector<8x128xf32>
    %120 = vector.shape_cast %117 : vector<8x128xf32> to vector<8x1x128xf32>
    tpu.vector_store %arg7[%c0_47, %c2_48, %c0_49], %120 {strides = array<i32>} : memref<8x8x128xf32, #tpu.memory_space<vmem>>, vector<8x1x128xf32>,
    %c3 = arith.constant 3 : index
    %c0_50 = arith.constant 0 : index
    %c0_51 = arith.constant 0 : index
    %121 = vector.load %arg6[%c3, %c0_50, %c0_51] : memref<8x8x384xf32, #tpu.memory_space<vmem>>, vector<1x8x384xf32>
    %122 = vector.shape_cast %121 : vector<1x8x384xf32> to vector<8x384xf32>
    %123 = arith.truncf %117 : vector<8x128xf32> to vector<8x128xbf16>
    %c0_52 = arith.constant 0 : index
    %c0_53 = arith.constant 0 : index
    %124 = vector.load %arg2[%c0_52, %c0_53] : memref<128x384xbf16, #tpu.memory_space<vmem>>, vector<128x384xbf16>
    %cst_54 = arith.constant dense<0.000000e+00> : vector<8x384xf32>
    %125 = tpu.matmul %123, %124, %cst_54 {dimension_numbers = #tpu.dot_dimension_numbers<[1], [0], [0], [1], [0, 0, 1, 1], [], []>} : vector<8x128xbf16>, vector<128x384xbf16>, vector<8x384xf32> -> vector<8x384xf32>
    %c0_55 = arith.constant 0 : index
    %c0_56 = arith.constant 0 : index
    %126 = vector.load %arg4[%c0_55, %c0_56] : memref<1x384xf32, #tpu.memory_space<vmem>>, vector<1x384xf32>
    %127 = vector.broadcast %126 : vector<1x384xf32> to vector<8x384xf32>
    %128 = arith.addf %125, %127 : vector<8x384xf32>
    %129 = vector.extract_strided_slice %122 {offsets = [0, 0], sizes = [8, 128], strides = [1, 1]} : vector<8x384xf32> to vector<8x128xf32>
    %130 = vector.extract_strided_slice %128 {offsets = [0, 0], sizes = [8, 128], strides = [1, 1]} : vector<8x384xf32> to vector<8x128xf32>
    %131 = arith.addf %129, %130 : vector<8x128xf32>
    %132 = arith.negf %131 : vector<8x128xf32>
    %133 = math.exp %132 : vector<8x128xf32>
    %cst_57 = arith.constant 1.000000e+00 : f32
    %134 = vector.broadcast %cst_57 : f32 to vector<8x128xf32>
    %135 = arith.addf %134, %133 : vector<8x128xf32>
    %136 = arith.divf %134, %135 : vector<8x128xf32>
    %137 = vector.extract_strided_slice %122 {offsets = [0, 128], sizes = [8, 128], strides = [1, 1]} : vector<8x384xf32> to vector<8x128xf32>
    %138 = vector.extract_strided_slice %128 {offsets = [0, 128], sizes = [8, 128], strides = [1, 1]} : vector<8x384xf32> to vector<8x128xf32>
    %139 = arith.addf %137, %138 : vector<8x128xf32>
    %140 = arith.negf %139 : vector<8x128xf32>
    %141 = math.exp %140 : vector<8x128xf32>
    %cst_58 = arith.constant 1.000000e+00 : f32
    %142 = vector.broadcast %cst_58 : f32 to vector<8x128xf32>
    %143 = arith.addf %142, %141 : vector<8x128xf32>
    %144 = arith.divf %142, %143 : vector<8x128xf32>
    %145 = vector.extract_strided_slice %122 {offsets = [0, 256], sizes = [8, 128], strides = [1, 1]} : vector<8x384xf32> to vector<8x128xf32>
    %146 = vector.extract_strided_slice %128 {offsets = [0, 256], sizes = [8, 128], strides = [1, 1]} : vector<8x384xf32> to vector<8x128xf32>
    %147 = arith.mulf %136, %146 : vector<8x128xf32>
    %148 = arith.addf %145, %147 : vector<8x128xf32>
    %149 = math.tanh %148 : vector<8x128xf32>
    %cst_59 = arith.constant 1.000000e+00 : f32
    %150 = vector.broadcast %cst_59 : f32 to vector<8x128xf32>
    %151 = arith.subf %150, %144 : vector<8x128xf32>
    %152 = arith.mulf %151, %149 : vector<8x128xf32>
    %153 = arith.mulf %144, %117 : vector<8x128xf32>
    %154 = arith.addf %152, %153 : vector<8x128xf32>
    %c0_60 = arith.constant 0 : index
    %c3_61 = arith.constant 3 : index
    %c0_62 = arith.constant 0 : index
    %155 = vector.load %arg7[%c0_60, %c3_61, %c0_62] : memref<8x8x128xf32, #tpu.memory_space<vmem>>, vector<8x1x128xf32>
    %156 = vector.shape_cast %155 : vector<8x1x128xf32> to vector<8x128xf32>
    %157 = vector.shape_cast %154 : vector<8x128xf32> to vector<8x1x128xf32>
    tpu.vector_store %arg7[%c0_60, %c3_61, %c0_62], %157 {strides = array<i32>} : memref<8x8x128xf32, #tpu.memory_space<vmem>>, vector<8x1x128xf32>,
    %c4 = arith.constant 4 : index
    %c0_63 = arith.constant 0 : index
    %c0_64 = arith.constant 0 : index
    %158 = vector.load %arg6[%c4, %c0_63, %c0_64] : memref<8x8x384xf32, #tpu.memory_space<vmem>>, vector<1x8x384xf32>
    %159 = vector.shape_cast %158 : vector<1x8x384xf32> to vector<8x384xf32>
    %160 = arith.truncf %154 : vector<8x128xf32> to vector<8x128xbf16>
    %c0_65 = arith.constant 0 : index
    %c0_66 = arith.constant 0 : index
    %161 = vector.load %arg2[%c0_65, %c0_66] : memref<128x384xbf16, #tpu.memory_space<vmem>>, vector<128x384xbf16>
    %cst_67 = arith.constant dense<0.000000e+00> : vector<8x384xf32>
    %162 = tpu.matmul %160, %161, %cst_67 {dimension_numbers = #tpu.dot_dimension_numbers<[1], [0], [0], [1], [0, 0, 1, 1], [], []>} : vector<8x128xbf16>, vector<128x384xbf16>, vector<8x384xf32> -> vector<8x384xf32>
    %c0_68 = arith.constant 0 : index
    %c0_69 = arith.constant 0 : index
    %163 = vector.load %arg4[%c0_68, %c0_69] : memref<1x384xf32, #tpu.memory_space<vmem>>, vector<1x384xf32>
    %164 = vector.broadcast %163 : vector<1x384xf32> to vector<8x384xf32>
    %165 = arith.addf %162, %164 : vector<8x384xf32>
    %166 = vector.extract_strided_slice %159 {offsets = [0, 0], sizes = [8, 128], strides = [1, 1]} : vector<8x384xf32> to vector<8x128xf32>
    %167 = vector.extract_strided_slice %165 {offsets = [0, 0], sizes = [8, 128], strides = [1, 1]} : vector<8x384xf32> to vector<8x128xf32>
    %168 = arith.addf %166, %167 : vector<8x128xf32>
    %169 = arith.negf %168 : vector<8x128xf32>
    %170 = math.exp %169 : vector<8x128xf32>
    %cst_70 = arith.constant 1.000000e+00 : f32
    %171 = vector.broadcast %cst_70 : f32 to vector<8x128xf32>
    %172 = arith.addf %171, %170 : vector<8x128xf32>
    %173 = arith.divf %171, %172 : vector<8x128xf32>
    %174 = vector.extract_strided_slice %159 {offsets = [0, 128], sizes = [8, 128], strides = [1, 1]} : vector<8x384xf32> to vector<8x128xf32>
    %175 = vector.extract_strided_slice %165 {offsets = [0, 128], sizes = [8, 128], strides = [1, 1]} : vector<8x384xf32> to vector<8x128xf32>
    %176 = arith.addf %174, %175 : vector<8x128xf32>
    %177 = arith.negf %176 : vector<8x128xf32>
    %178 = math.exp %177 : vector<8x128xf32>
    %cst_71 = arith.constant 1.000000e+00 : f32
    %179 = vector.broadcast %cst_71 : f32 to vector<8x128xf32>
    %180 = arith.addf %179, %178 : vector<8x128xf32>
    %181 = arith.divf %179, %180 : vector<8x128xf32>
    %182 = vector.extract_strided_slice %159 {offsets = [0, 256], sizes = [8, 128], strides = [1, 1]} : vector<8x384xf32> to vector<8x128xf32>
    %183 = vector.extract_strided_slice %165 {offsets = [0, 256], sizes = [8, 128], strides = [1, 1]} : vector<8x384xf32> to vector<8x128xf32>
    %184 = arith.mulf %173, %183 : vector<8x128xf32>
    %185 = arith.addf %182, %184 : vector<8x128xf32>
    %186 = math.tanh %185 : vector<8x128xf32>
    %cst_72 = arith.constant 1.000000e+00 : f32
    %187 = vector.broadcast %cst_72 : f32 to vector<8x128xf32>
    %188 = arith.subf %187, %181 : vector<8x128xf32>
    %189 = arith.mulf %188, %186 : vector<8x128xf32>
    %190 = arith.mulf %181, %154 : vector<8x128xf32>
    %191 = arith.addf %189, %190 : vector<8x128xf32>
    %c0_73 = arith.constant 0 : index
    %c4_74 = arith.constant 4 : index
    %c0_75 = arith.constant 0 : index
    %192 = vector.load %arg7[%c0_73, %c4_74, %c0_75] : memref<8x8x128xf32, #tpu.memory_space<vmem>>, vector<8x1x128xf32>
    %193 = vector.shape_cast %192 : vector<8x1x128xf32> to vector<8x128xf32>
    %194 = vector.shape_cast %191 : vector<8x128xf32> to vector<8x1x128xf32>
    tpu.vector_store %arg7[%c0_73, %c4_74, %c0_75], %194 {strides = array<i32>} : memref<8x8x128xf32, #tpu.memory_space<vmem>>, vector<8x1x128xf32>,
    %c5 = arith.constant 5 : index
    %c0_76 = arith.constant 0 : index
    %c0_77 = arith.constant 0 : index
    %195 = vector.load %arg6[%c5, %c0_76, %c0_77] : memref<8x8x384xf32, #tpu.memory_space<vmem>>, vector<1x8x384xf32>
    %196 = vector.shape_cast %195 : vector<1x8x384xf32> to vector<8x384xf32>
    %197 = arith.truncf %191 : vector<8x128xf32> to vector<8x128xbf16>
    %c0_78 = arith.constant 0 : index
    %c0_79 = arith.constant 0 : index
    %198 = vector.load %arg2[%c0_78, %c0_79] : memref<128x384xbf16, #tpu.memory_space<vmem>>, vector<128x384xbf16>
    %cst_80 = arith.constant dense<0.000000e+00> : vector<8x384xf32>
    %199 = tpu.matmul %197, %198, %cst_80 {dimension_numbers = #tpu.dot_dimension_numbers<[1], [0], [0], [1], [0, 0, 1, 1], [], []>} : vector<8x128xbf16>, vector<128x384xbf16>, vector<8x384xf32> -> vector<8x384xf32>
    %c0_81 = arith.constant 0 : index
    %c0_82 = arith.constant 0 : index
    %200 = vector.load %arg4[%c0_81, %c0_82] : memref<1x384xf32, #tpu.memory_space<vmem>>, vector<1x384xf32>
    %201 = vector.broadcast %200 : vector<1x384xf32> to vector<8x384xf32>
    %202 = arith.addf %199, %201 : vector<8x384xf32>
    %203 = vector.extract_strided_slice %196 {offsets = [0, 0], sizes = [8, 128], strides = [1, 1]} : vector<8x384xf32> to vector<8x128xf32>
    %204 = vector.extract_strided_slice %202 {offsets = [0, 0], sizes = [8, 128], strides = [1, 1]} : vector<8x384xf32> to vector<8x128xf32>
    %205 = arith.addf %203, %204 : vector<8x128xf32>
    %206 = arith.negf %205 : vector<8x128xf32>
    %207 = math.exp %206 : vector<8x128xf32>
    %cst_83 = arith.constant 1.000000e+00 : f32
    %208 = vector.broadcast %cst_83 : f32 to vector<8x128xf32>
    %209 = arith.addf %208, %207 : vector<8x128xf32>
    %210 = arith.divf %208, %209 : vector<8x128xf32>
    %211 = vector.extract_strided_slice %196 {offsets = [0, 128], sizes = [8, 128], strides = [1, 1]} : vector<8x384xf32> to vector<8x128xf32>
    %212 = vector.extract_strided_slice %202 {offsets = [0, 128], sizes = [8, 128], strides = [1, 1]} : vector<8x384xf32> to vector<8x128xf32>
    %213 = arith.addf %211, %212 : vector<8x128xf32>
    %214 = arith.negf %213 : vector<8x128xf32>
    %215 = math.exp %214 : vector<8x128xf32>
    %cst_84 = arith.constant 1.000000e+00 : f32
    %216 = vector.broadcast %cst_84 : f32 to vector<8x128xf32>
    %217 = arith.addf %216, %215 : vector<8x128xf32>
    %218 = arith.divf %216, %217 : vector<8x128xf32>
    %219 = vector.extract_strided_slice %196 {offsets = [0, 256], sizes = [8, 128], strides = [1, 1]} : vector<8x384xf32> to vector<8x128xf32>
    %220 = vector.extract_strided_slice %202 {offsets = [0, 256], sizes = [8, 128], strides = [1, 1]} : vector<8x384xf32> to vector<8x128xf32>
    %221 = arith.mulf %210, %220 : vector<8x128xf32>
    %222 = arith.addf %219, %221 : vector<8x128xf32>
    %223 = math.tanh %222 : vector<8x128xf32>
    %cst_85 = arith.constant 1.000000e+00 : f32
    %224 = vector.broadcast %cst_85 : f32 to vector<8x128xf32>
    %225 = arith.subf %224, %218 : vector<8x128xf32>
    %226 = arith.mulf %225, %223 : vector<8x128xf32>
    %227 = arith.mulf %218, %191 : vector<8x128xf32>
    %228 = arith.addf %226, %227 : vector<8x128xf32>
    %c0_86 = arith.constant 0 : index
    %c5_87 = arith.constant 5 : index
    %c0_88 = arith.constant 0 : index
    %229 = vector.load %arg7[%c0_86, %c5_87, %c0_88] : memref<8x8x128xf32, #tpu.memory_space<vmem>>, vector<8x1x128xf32>
    %230 = vector.shape_cast %229 : vector<8x1x128xf32> to vector<8x128xf32>
    %231 = vector.shape_cast %228 : vector<8x128xf32> to vector<8x1x128xf32>
    tpu.vector_store %arg7[%c0_86, %c5_87, %c0_88], %231 {strides = array<i32>} : memref<8x8x128xf32, #tpu.memory_space<vmem>>, vector<8x1x128xf32>,
    %c6 = arith.constant 6 : index
    %c0_89 = arith.constant 0 : index
    %c0_90 = arith.constant 0 : index
    %232 = vector.load %arg6[%c6, %c0_89, %c0_90] : memref<8x8x384xf32, #tpu.memory_space<vmem>>, vector<1x8x384xf32>
    %233 = vector.shape_cast %232 : vector<1x8x384xf32> to vector<8x384xf32>
    %234 = arith.truncf %228 : vector<8x128xf32> to vector<8x128xbf16>
    %c0_91 = arith.constant 0 : index
    %c0_92 = arith.constant 0 : index
    %235 = vector.load %arg2[%c0_91, %c0_92] : memref<128x384xbf16, #tpu.memory_space<vmem>>, vector<128x384xbf16>
    %cst_93 = arith.constant dense<0.000000e+00> : vector<8x384xf32>
    %236 = tpu.matmul %234, %235, %cst_93 {dimension_numbers = #tpu.dot_dimension_numbers<[1], [0], [0], [1], [0, 0, 1, 1], [], []>} : vector<8x128xbf16>, vector<128x384xbf16>, vector<8x384xf32> -> vector<8x384xf32>
    %c0_94 = arith.constant 0 : index
    %c0_95 = arith.constant 0 : index
    %237 = vector.load %arg4[%c0_94, %c0_95] : memref<1x384xf32, #tpu.memory_space<vmem>>, vector<1x384xf32>
    %238 = vector.broadcast %237 : vector<1x384xf32> to vector<8x384xf32>
    %239 = arith.addf %236, %238 : vector<8x384xf32>
    %240 = vector.extract_strided_slice %233 {offsets = [0, 0], sizes = [8, 128], strides = [1, 1]} : vector<8x384xf32> to vector<8x128xf32>
    %241 = vector.extract_strided_slice %239 {offsets = [0, 0], sizes = [8, 128], strides = [1, 1]} : vector<8x384xf32> to vector<8x128xf32>
    %242 = arith.addf %240, %241 : vector<8x128xf32>
    %243 = arith.negf %242 : vector<8x128xf32>
    %244 = math.exp %243 : vector<8x128xf32>
    %cst_96 = arith.constant 1.000000e+00 : f32
    %245 = vector.broadcast %cst_96 : f32 to vector<8x128xf32>
    %246 = arith.addf %245, %244 : vector<8x128xf32>
    %247 = arith.divf %245, %246 : vector<8x128xf32>
    %248 = vector.extract_strided_slice %233 {offsets = [0, 128], sizes = [8, 128], strides = [1, 1]} : vector<8x384xf32> to vector<8x128xf32>
    %249 = vector.extract_strided_slice %239 {offsets = [0, 128], sizes = [8, 128], strides = [1, 1]} : vector<8x384xf32> to vector<8x128xf32>
    %250 = arith.addf %248, %249 : vector<8x128xf32>
    %251 = arith.negf %250 : vector<8x128xf32>
    %252 = math.exp %251 : vector<8x128xf32>
    %cst_97 = arith.constant 1.000000e+00 : f32
    %253 = vector.broadcast %cst_97 : f32 to vector<8x128xf32>
    %254 = arith.addf %253, %252 : vector<8x128xf32>
    %255 = arith.divf %253, %254 : vector<8x128xf32>
    %256 = vector.extract_strided_slice %233 {offsets = [0, 256], sizes = [8, 128], strides = [1, 1]} : vector<8x384xf32> to vector<8x128xf32>
    %257 = vector.extract_strided_slice %239 {offsets = [0, 256], sizes = [8, 128], strides = [1, 1]} : vector<8x384xf32> to vector<8x128xf32>
    %258 = arith.mulf %247, %257 : vector<8x128xf32>
    %259 = arith.addf %256, %258 : vector<8x128xf32>
    %260 = math.tanh %259 : vector<8x128xf32>
    %cst_98 = arith.constant 1.000000e+00 : f32
    %261 = vector.broadcast %cst_98 : f32 to vector<8x128xf32>
    %262 = arith.subf %261, %255 : vector<8x128xf32>
    %263 = arith.mulf %262, %260 : vector<8x128xf32>
    %264 = arith.mulf %255, %228 : vector<8x128xf32>
    %265 = arith.addf %263, %264 : vector<8x128xf32>
    %c0_99 = arith.constant 0 : index
    %c6_100 = arith.constant 6 : index
    %c0_101 = arith.constant 0 : index
    %266 = vector.load %arg7[%c0_99, %c6_100, %c0_101] : memref<8x8x128xf32, #tpu.memory_space<vmem>>, vector<8x1x128xf32>
    %267 = vector.shape_cast %266 : vector<8x1x128xf32> to vector<8x128xf32>
    %268 = vector.shape_cast %265 : vector<8x128xf32> to vector<8x1x128xf32>
    tpu.vector_store %arg7[%c0_99, %c6_100, %c0_101], %268 {strides = array<i32>} : memref<8x8x128xf32, #tpu.memory_space<vmem>>, vector<8x1x128xf32>,
    %c7 = arith.constant 7 : index
    %c0_102 = arith.constant 0 : index
    %c0_103 = arith.constant 0 : index
    %269 = vector.load %arg6[%c7, %c0_102, %c0_103] : memref<8x8x384xf32, #tpu.memory_space<vmem>>, vector<1x8x384xf32>
    %270 = vector.shape_cast %269 : vector<1x8x384xf32> to vector<8x384xf32>
    %271 = arith.truncf %265 : vector<8x128xf32> to vector<8x128xbf16>
    %c0_104 = arith.constant 0 : index
    %c0_105 = arith.constant 0 : index
    %272 = vector.load %arg2[%c0_104, %c0_105] : memref<128x384xbf16, #tpu.memory_space<vmem>>, vector<128x384xbf16>
    %cst_106 = arith.constant dense<0.000000e+00> : vector<8x384xf32>
    %273 = tpu.matmul %271, %272, %cst_106 {dimension_numbers = #tpu.dot_dimension_numbers<[1], [0], [0], [1], [0, 0, 1, 1], [], []>} : vector<8x128xbf16>, vector<128x384xbf16>, vector<8x384xf32> -> vector<8x384xf32>
    %c0_107 = arith.constant 0 : index
    %c0_108 = arith.constant 0 : index
    %274 = vector.load %arg4[%c0_107, %c0_108] : memref<1x384xf32, #tpu.memory_space<vmem>>, vector<1x384xf32>
    %275 = vector.broadcast %274 : vector<1x384xf32> to vector<8x384xf32>
    %276 = arith.addf %273, %275 : vector<8x384xf32>
    %277 = vector.extract_strided_slice %270 {offsets = [0, 0], sizes = [8, 128], strides = [1, 1]} : vector<8x384xf32> to vector<8x128xf32>
    %278 = vector.extract_strided_slice %276 {offsets = [0, 0], sizes = [8, 128], strides = [1, 1]} : vector<8x384xf32> to vector<8x128xf32>
    %279 = arith.addf %277, %278 : vector<8x128xf32>
    %280 = arith.negf %279 : vector<8x128xf32>
    %281 = math.exp %280 : vector<8x128xf32>
    %cst_109 = arith.constant 1.000000e+00 : f32
    %282 = vector.broadcast %cst_109 : f32 to vector<8x128xf32>
    %283 = arith.addf %282, %281 : vector<8x128xf32>
    %284 = arith.divf %282, %283 : vector<8x128xf32>
    %285 = vector.extract_strided_slice %270 {offsets = [0, 128], sizes = [8, 128], strides = [1, 1]} : vector<8x384xf32> to vector<8x128xf32>
    %286 = vector.extract_strided_slice %276 {offsets = [0, 128], sizes = [8, 128], strides = [1, 1]} : vector<8x384xf32> to vector<8x128xf32>
    %287 = arith.addf %285, %286 : vector<8x128xf32>
    %288 = arith.negf %287 : vector<8x128xf32>
    %289 = math.exp %288 : vector<8x128xf32>
    %cst_110 = arith.constant 1.000000e+00 : f32
    %290 = vector.broadcast %cst_110 : f32 to vector<8x128xf32>
    %291 = arith.addf %290, %289 : vector<8x128xf32>
    %292 = arith.divf %290, %291 : vector<8x128xf32>
    %293 = vector.extract_strided_slice %270 {offsets = [0, 256], sizes = [8, 128], strides = [1, 1]} : vector<8x384xf32> to vector<8x128xf32>
    %294 = vector.extract_strided_slice %276 {offsets = [0, 256], sizes = [8, 128], strides = [1, 1]} : vector<8x384xf32> to vector<8x128xf32>
    %295 = arith.mulf %284, %294 : vector<8x128xf32>
    %296 = arith.addf %293, %295 : vector<8x128xf32>
    %297 = math.tanh %296 : vector<8x128xf32>
    %cst_111 = arith.constant 1.000000e+00 : f32
    %298 = vector.broadcast %cst_111 : f32 to vector<8x128xf32>
    %299 = arith.subf %298, %292 : vector<8x128xf32>
    %300 = arith.mulf %299, %297 : vector<8x128xf32>
    %301 = arith.mulf %292, %265 : vector<8x128xf32>
    %302 = arith.addf %300, %301 : vector<8x128xf32>
    %c0_112 = arith.constant 0 : index
    %c7_113 = arith.constant 7 : index
    %c0_114 = arith.constant 0 : index
    %303 = vector.load %arg7[%c0_112, %c7_113, %c0_114] : memref<8x8x128xf32, #tpu.memory_space<vmem>>, vector<8x1x128xf32>
    %304 = vector.shape_cast %303 : vector<8x1x128xf32> to vector<8x128xf32>
    %305 = vector.shape_cast %302 : vector<8x128xf32> to vector<8x1x128xf32>
    tpu.vector_store %arg7[%c0_112, %c7_113, %c0_114], %305 {strides = array<i32>} : memref<8x8x128xf32, #tpu.memory_space<vmem>>, vector<8x1x128xf32>,
    %c0_115 = arith.constant 0 : index
    %c0_116 = arith.constant 0 : index
    %c0_117 = arith.constant 0 : index
    %306 = vector.load %arg7[%c0_115, %c0_116, %c0_117] : memref<8x8x128xf32, #tpu.memory_space<vmem>>, vector<8x8x128xf32>
    %307 = arith.truncf %306 : vector<8x8x128xf32> to vector<8x8x128xbf16>
    %c0_118 = arith.constant 0 : index
    %c0_119 = arith.constant 0 : index
    %c0_120 = arith.constant 0 : index
    %308 = vector.load %arg5[%c0_118, %c0_119, %c0_120] : memref<8x8x128xbf16, #tpu.memory_space<vmem>>, vector<8x8x128xbf16>
    tpu.vector_store %arg5[%c0_118, %c0_119, %c0_120], %307 {strides = array<i32>} : memref<8x8x128xbf16, #tpu.memory_space<vmem>>, vector<8x8x128xbf16>,
    return
  }
}

</mosaic_0001>

<llo_original>
// kernel: language_model_forward.3
$region0: #{language_model_forward.3}
  #allocation0 [shape = 'u32[]', space=smem, size = 0x4, offset = 0x4, fixed_abs, tag = 'smem constant byte address 0x4 - core index']
  #allocation1 [shape = 'u32[144,128]{1,0:T(1,128)}', space=vmem, size = 0x12000, scoped, tag = 'internal scratch']
  %s0 = inlined_call_operand.vmem [shape: bf16[64,128], index: 0, kind: input, shape index: {}]
  %s1 = inlined_call_operand.vmem [shape: bf16[128,512], index: 1, kind: input, shape index: {}]
  %s2 = inlined_call_operand.vmem [shape: f32[1,512], index: 2, kind: input, shape index: {}]
  %s3 = inlined_call_operand.vmem [shape: f32[64,512], index: 3, kind: output, shape index: {}]
  %s4 = sld [smem:[#allocation0]]
  $region22: #{language_model_forward.3} parent=0
    _
  %s6 = ssub.s32 1, %s4
  %s7 = scalar_select 0, %s6, %s4
  // Predicated region
  $region2: #{language_model_forward.3} parent=0 // pred_check
    _
  $region3: #{language_model_forward.3} parent=0 // pred_check_branch
    %9 = sbr.rel (0) target = $region5
  $region4: #{language_model_forward.3} parent=0 // pred_region
    _
  $region5: #{language_model_forward.3} parent=0 // pred_fallthru
    _
  // Predicated region
  $region6: #{language_model_forward.3} parent=0 // pred_check
    _
  $region7: #{language_model_forward.3} parent=0 // pred_check_branch
    %11 = sbr.rel (0) target = $region9
  $region8: #{language_model_forward.3} parent=0 // pred_region
    _
  $region9: #{language_model_forward.3} parent=0 // pred_fallthru
    _
  // Predicated region
  $region10: #{language_model_forward.3} parent=0 // pred_check
    _
  $region11: #{language_model_forward.3} parent=0 // pred_check_branch
    %13 = sbr.rel (0) target = $region13
  $region12: #{language_model_forward.3} parent=0 // pred_region
    _
  $region13: #{language_model_forward.3} parent=0 // pred_fallthru
    _
  %v15 = vld [vmem:[%s0] sm:$0xf]
  %v16 = vld [vmem:[%s0 + $0x4] sm:$0xf]
  %v17 = vld [vmem:[%s0 + $0x8] sm:$0xf]
  %v18 = vld [vmem:[%s0 + $0xc] sm:$0xf]
  %v19 = vld [vmem:[%s0 + $0x10] sm:$0xf]
  %v20 = vld [vmem:[%s0 + $0x14] sm:$0xf]
  %v21 = vld [vmem:[%s0 + $0x18] sm:$0xf]
  %v22 = vld [vmem:[%s0 + $0x1c] sm:$0xf]
  %v23 = vld [vmem:[%s1] sm:$0xff]
  %v24 = vld [vmem:[%s1 + $0x8] sm:$0xff]
  %v25 = vld [vmem:[%s1 + $0x10] sm:$0xff]
  %v26 = vld [vmem:[%s1 + $0x18] sm:$0xff]
  %v27 = vld [vmem:[%s1 + $0x20] sm:$0xff]
  %v28 = vld [vmem:[%s1 + $0x28] sm:$0xff]
  %v29 = vld [vmem:[%s1 + $0x30] sm:$0xff]
  %v30 = vld [vmem:[%s1 + $0x38] sm:$0xff]
  %v31 = vld [vmem:[%s1 + $0x40] sm:$0xff]
  %v32 = vld [vmem:[%s1 + $0x48] sm:$0xff]
  %v33 = vld [vmem:[%s1 + $0x50] sm:$0xff]
  %v34 = vld [vmem:[%s1 + $0x58] sm:$0xff]
  %v35 = vld [vmem:[%s1 + $0x60] sm:$0xff]
  %v36 = vld [vmem:[%s1 + $0x68] sm:$0xff]
  %v37 = vld [vmem:[%s1 + $0x70] sm:$0xff]
  %v38 = vld [vmem:[%s1 + $0x78] sm:$0xff]
  %v39 = vld [vmem:[%s1 + $0x80] sm:$0xff]
  %v40 = vld [vmem:[%s1 + $0x88] sm:$0xff]
  %v41 = vld [vmem:[%s1 + $0x90] sm:$0xff]
  %v42 = vld [vmem:[%s1 + $0x98] sm:$0xff]
  %v43 = vld [vmem:[%s1 + $0xa0] sm:$0xff]
  %v44 = vld [vmem:[%s1 + $0xa8] sm:$0xff]
  %v45 = vld [vmem:[%s1 + $0xb0] sm:$0xff]
  %v46 = vld [vmem:[%s1 + $0xb8] sm:$0xff]
  %v47 = vld [vmem:[%s1 + $0xc0] sm:$0xff]
  %v48 = vld [vmem:[%s1 + $0xc8] sm:$0xff]
  %v49 = vld [vmem:[%s1 + $0xd0] sm:$0xff]
  %v50 = vld [vmem:[%s1 + $0xd8] sm:$0xff]
  %v51 = vld [vmem:[%s1 + $0xe0] sm:$0xff]
  %v52 = vld [vmem:[%s1 + $0xe8] sm:$0xff]
  %v53 = vld [vmem:[%s1 + $0xf0] sm:$0xff]
  %v54 = vld [vmem:[%s1 + $0xf8] sm:$0xff]
  %v55 = vld [vmem:[%s2] sm:$0xf]
  %v57 = vlaneseq
  %v58 = vshrl.u32 %v57, 7
  %v59 = vsub.s32 0, %v58
  %v60 = vrot.slane %v55, %v59
  %v61 = vlaneseq
  %v62 = vshrl.u32 %v61, 7
  %v63 = vsub.s32 1, %v62
  %v64 = vrot.slane %v55, %v63
  %v65 = vlaneseq
  %v66 = vshrl.u32 %v65, 7
  %v67 = vsub.s32 2, %v66
  %v68 = vrot.slane %v55, %v67
  %v69 = vlaneseq
  %v70 = vshrl.u32 %v69, 7
  %v71 = vsub.s32 3, %v70
  %v72 = vrot.slane %v55, %v71
  %v85 = vunpack.c.l.b16 %v15
  %v86 = vunpack.c.l.b16 %v16
  %v87 = vunpack.c.l.b16 %v17
  %v88 = vunpack.c.l.b16 %v18
  %v89 = vunpack.c.l.b16 %v19
  %v90 = vunpack.c.l.b16 %v20
  %v91 = vunpack.c.l.b16 %v21
  %v92 = vunpack.c.l.b16 %v22
  %v93 = vpack.c.b16 %v86, %v85
  %v94 = vpack.c.b16 %v88, %v87
  %v95 = vpack.c.b16 %v90, %v89
  %v96 = vpack.c.b16 %v92, %v91
  %v133 = vunpack.c.l.b16 %v23
  %v134 = vunpack.c.h.b16 %v23
  %v135 = vunpack.c.l.b16 %v24
  %v136 = vunpack.c.h.b16 %v24
  %v137 = vunpack.c.l.b16 %v25
  %v138 = vunpack.c.h.b16 %v25
  %v139 = vunpack.c.l.b16 %v26
  %v140 = vunpack.c.h.b16 %v26
  %v141 = vunpack.c.l.b16 %v27
  %v142 = vunpack.c.h.b16 %v27
  %v143 = vunpack.c.l.b16 %v28
  %v144 = vunpack.c.h.b16 %v28
  %v145 = vunpack.c.l.b16 %v29
  %v146 = vunpack.c.h.b16 %v29
  %v147 = vunpack.c.l.b16 %v30
  %v148 = vunpack.c.h.b16 %v30
  %v149 = vunpack.c.l.b16 %v31
  %v150 = vunpack.c.h.b16 %v31
  %v151 = vunpack.c.l.b16 %v32
  %v152 = vunpack.c.h.b16 %v32
  %v153 = vunpack.c.l.b16 %v33
  %v154 = vunpack.c.h.b16 %v33
  %v155 = vunpack.c.l.b16 %v34
  %v156 = vunpack.c.h.b16 %v34
  %v157 = vunpack.c.l.b16 %v35
  %v158 = vunpack.c.h.b16 %v35
  %v159 = vunpack.c.l.b16 %v36
  %v160 = vunpack.c.h.b16 %v36
  %v161 = vunpack.c.l.b16 %v37
  %v162 = vunpack.c.h.b16 %v37
  %v163 = vunpack.c.l.b16 %v38
  %v164 = vunpack.c.h.b16 %v38
  %v165 = vunpack.c.l.b16 %v39
  %v166 = vunpack.c.h.b16 %v39
  %v167 = vunpack.c.l.b16 %v40
  %v168 = vunpack.c.h.b16 %v40
  %v169 = vunpack.c.l.b16 %v41
  %v170 = vunpack.c.h.b16 %v41
  %v171 = vunpack.c.l.b16 %v42
  %v172 = vunpack.c.h.b16 %v42
  %v173 = vunpack.c.l.b16 %v43
  %v174 = vunpack.c.h.b16 %v43
  %v175 = vunpack.c.l.b16 %v44
  %v176 = vunpack.c.h.b16 %v44
  %v177 = vunpack.c.l.b16 %v45
  %v178 = vunpack.c.h.b16 %v45
  %v179 = vunpack.c.l.b16 %v46
  %v180 = vunpack.c.h.b16 %v46
  %v181 = vunpack.c.l.b16 %v47
  %v182 = vunpack.c.h.b16 %v47
  %v183 = vunpack.c.l.b16 %v48
  %v184 = vunpack.c.h.b16 %v48
  %v185 = vunpack.c.l.b16 %v49
  %v186 = vunpack.c.h.b16 %v49
  %v187 = vunpack.c.l.b16 %v50
  %v188 = vunpack.c.h.b16 %v50
  %v189 = vunpack.c.l.b16 %v51
  %v190 = vunpack.c.h.b16 %v51
  %v191 = vunpack.c.l.b16 %v52
  %v192 = vunpack.c.h.b16 %v52
  %v193 = vunpack.c.l.b16 %v53
  %v194 = vunpack.c.h.b16 %v53
  %v195 = vunpack.c.l.b16 %v54
  %v196 = vunpack.c.h.b16 %v54
  %v197 = vpack.c.b16 %v137, %v133
  %v198 = vpack.c.b16 %v138, %v134
  %v199 = vpack.c.b16 %v139, %v135
  %v200 = vpack.c.b16 %v140, %v136
  %v201 = vpack.c.b16 %v145, %v141
  %v202 = vpack.c.b16 %v146, %v142
  %v203 = vpack.c.b16 %v147, %v143
  %v204 = vpack.c.b16 %v148, %v144
  %v205 = vpack.c.b16 %v153, %v149
  %v206 = vpack.c.b16 %v154, %v150
  %v207 = vpack.c.b16 %v155, %v151
  %v208 = vpack.c.b16 %v156, %v152
  %v209 = vpack.c.b16 %v161, %v157
  %v210 = vpack.c.b16 %v162, %v158
  %v211 = vpack.c.b16 %v163, %v159
  %v212 = vpack.c.b16 %v164, %v160
  %v213 = vpack.c.b16 %v169, %v165
  %v214 = vpack.c.b16 %v170, %v166
  %v215 = vpack.c.b16 %v171, %v167
  %v216 = vpack.c.b16 %v172, %v168
  %v217 = vpack.c.b16 %v177, %v173
  %v218 = vpack.c.b16 %v178, %v174
  %v219 = vpack.c.b16 %v179, %v175
  %v220 = vpack.c.b16 %v180, %v176
  %v221 = vpack.c.b16 %v185, %v181
  %v222 = vpack.c.b16 %v186, %v182
  %v223 = vpack.c.b16 %v187, %v183
  %v224 = vpack.c.b16 %v188, %v184
  %v225 = vpack.c.b16 %v193, %v189
  %v226 = vpack.c.b16 %v194, %v190
  %v227 = vpack.c.b16 %v195, %v191
  %v228 = vpack.c.b16 %v196, %v192
  %261 = vmatprep.subr.bf16.mxu0 %v198
  %262 = vmatpush1.bf16.msra.mxu0 %v197
  %263 = vmatprep.subr.bf16.mxu0 %v202
  %264 = vmatpush1.bf16.msra.mxu0 %v201
  %265 = vmatprep.subr.bf16.mxu0 %v206
  %266 = vmatpush1.bf16.msra.mxu0 %v205
  %267 = vmatprep.subr.bf16.mxu0 %v210
  %268 = vmatpush1.bf16.msra.mxu0 %v209
  %269 = vmatprep.subr.bf16.mxu0 %v214
  %270 = vmatpush1.bf16.msra.mxu0 %v213
  %271 = vmatprep.subr.bf16.mxu0 %v218
  %272 = vmatpush1.bf16.msra.mxu0 %v217
  %273 = vmatprep.subr.bf16.mxu0 %v222
  %274 = vmatpush1.bf16.msra.mxu0 %v221
  %275 = vmatprep.subr.bf16.mxu0 %v226
  %276 = vmatpush1.bf16.msra.mxu0 %v225
  %277 = vmatprep.subr.bf16.mxu0 0
  %278 = vmatpush1.bf16.msra.mxu0 0
  %279 = vmatprep.subr.bf16.mxu0 0
  %280 = vmatpush1.bf16.msra.mxu0 0
  %281 = vmatprep.subr.bf16.mxu0 0
  %282 = vmatpush1.bf16.msra.mxu0 0
  %283 = vmatprep.subr.bf16.mxu0 0
  %284 = vmatpush1.bf16.msra.mxu0 0
  %285 = vmatprep.subr.bf16.mxu0 0
  %286 = vmatpush1.bf16.msra.mxu0 0
  %287 = vmatprep.subr.bf16.mxu0 0
  %288 = vmatpush1.bf16.msra.mxu0 0
  %289 = vmatprep.subr.bf16.mxu0 0
  %290 = vmatpush1.bf16.msra.mxu0 0
  %291 = vmatprep.subr.bf16.mxu0 0
  %292 = vmatpush1.bf16.msra.mxu0 0
  %293 = vmatprep.mubr.bf16.mxu0 0
  %294 = vmatmul.mubr.bf16.gmra.mrb[0].mxu0 %v93
  %v295 = vpop.f32.mrb[0].mxu0
  %v296 = vadd.f32 %v60, %v295
  %v297 = vpop.f32.mrb[0].mxu0
  %v298 = vadd.f32 %v64, %v297
  %v299 = vpop.f32.mrb[0].mxu0
  %v300 = vadd.f32 %v60, %v299
  %v301 = vpop.f32.mrb[0].mxu0
  %v302 = vadd.f32 %v64, %v301
  %303 = vmatprep.mubr.bf16.mxu0 0
  %304 = vmatmul.mubr.bf16.gmra.mrb[0].mxu0 %v94
  %v305 = vpop.f32.mrb[0].mxu0
  %v306 = vadd.f32 %v60, %v305
  %v307 = vpop.f32.mrb[0].mxu0
  %v308 = vadd.f32 %v64, %v307
  %v309 = vpop.f32.mrb[0].mxu0
  %v310 = vadd.f32 %v60, %v309
  %v311 = vpop.f32.mrb[0].mxu0
  %v312 = vadd.f32 %v64, %v311
  %313 = vmatprep.mubr.bf16.mxu0 0
  %314 = vmatmul.mubr.bf16.gmra.mrb[0].mxu0 %v95
  %v315 = vpop.f32.mrb[0].mxu0
  %v316 = vadd.f32 %v60, %v315
  %v317 = vpop.f32.mrb[0].mxu0
  %v318 = vadd.f32 %v64, %v317
  %v319 = vpop.f32.mrb[0].mxu0
  %v320 = vadd.f32 %v60, %v319
  %v321 = vpop.f32.mrb[0].mxu0
  %v322 = vadd.f32 %v64, %v321
  %323 = vmatprep.mubr.bf16.mxu0 0
  %324 = vmatmul.mubr.bf16.gmra.mrb[0].mxu0 %v96
  %v325 = vpop.f32.mrb[0].mxu0
  %v326 = vadd.f32 %v60, %v325
  %v327 = vpop.f32.mrb[0].mxu0
  %v328 = vadd.f32 %v64, %v327
  %v329 = vpop.f32.mrb[0].mxu0
  %v330 = vadd.f32 %v60, %v329
  %v331 = vpop.f32.mrb[0].mxu0
  %v332 = vadd.f32 %v64, %v331
  %333 = vdwg.mxu0
  %334 = vmatprep.subr.bf16.mxu0 %v200
  %335 = vmatpush1.bf16.msra.mxu0 %v199
  %336 = vmatprep.subr.bf16.mxu0 %v204
  %337 = vmatpush1.bf16.msra.mxu0 %v203
  %338 = vmatprep.subr.bf16.mxu0 %v208
  %339 = vmatpush1.bf16.msra.mxu0 %v207
  %340 = vmatprep.subr.bf16.mxu0 %v212
  %341 = vmatpush1.bf16.msra.mxu0 %v211
  %342 = vmatprep.subr.bf16.mxu0 %v216
  %343 = vmatpush1.bf16.msra.mxu0 %v215
  %344 = vmatprep.subr.bf16.mxu0 %v220
  %345 = vmatpush1.bf16.msra.mxu0 %v219
  %346 = vmatprep.subr.bf16.mxu0 %v224
  %347 = vmatpush1.bf16.msra.mxu0 %v223
  %348 = vmatprep.subr.bf16.mxu0 %v228
  %349 = vmatpush1.bf16.msra.mxu0 %v227
  %350 = vmatprep.subr.bf16.mxu0 0
  %351 = vmatpush1.bf16.msra.mxu0 0
  %352 = vmatprep.subr.bf16.mxu0 0
  %353 = vmatpush1.bf16.msra.mxu0 0
  %354 = vmatprep.subr.bf16.mxu0 0
  %355 = vmatpush1.bf16.msra.mxu0 0
  %356 = vmatprep.subr.bf16.mxu0 0
  %357 = vmatpush1.bf16.msra.mxu0 0
  %358 = vmatprep.subr.bf16.mxu0 0
  %359 = vmatpush1.bf16.msra.mxu0 0
  %360 = vmatprep.subr.bf16.mxu0 0
  %361 = vmatpush1.bf16.msra.mxu0 0
  %362 = vmatprep.subr.bf16.mxu0 0
  %363 = vmatpush1.bf16.msra.mxu0 0
  %364 = vmatprep.subr.bf16.mxu0 0
  %365 = vmatpush1.bf16.msra.mxu0 0
  %366 = vmatprep.mubr.bf16.mxu0 0
  %367 = vmatmul.mubr.bf16.gmra.mrb[0].mxu0 %v93
  %v368 = vpop.f32.mrb[0].mxu0
  %v369 = vadd.f32 %v68, %v368
  %v370 = vpop.f32.mrb[0].mxu0
  %v371 = vadd.f32 %v72, %v370
  %v372 = vpop.f32.mrb[0].mxu0
  %v373 = vadd.f32 %v68, %v372
  %v374 = vpop.f32.mrb[0].mxu0
  %v375 = vadd.f32 %v72, %v374
  %376 = vmatprep.mubr.bf16.mxu0 0
  %377 = vmatmul.mubr.bf16.gmra.mrb[0].mxu0 %v94
  %v378 = vpop.f32.mrb[0].mxu0
  %v379 = vadd.f32 %v68, %v378
  %v380 = vpop.f32.mrb[0].mxu0
  %v381 = vadd.f32 %v72, %v380
  %v382 = vpop.f32.mrb[0].mxu0
  %v383 = vadd.f32 %v68, %v382
  %v384 = vpop.f32.mrb[0].mxu0
  %v385 = vadd.f32 %v72, %v384
  %386 = vmatprep.mubr.bf16.mxu0 0
  %387 = vmatmul.mubr.bf16.gmra.mrb[0].mxu0 %v95
  %v388 = vpop.f32.mrb[0].mxu0
  %v389 = vadd.f32 %v68, %v388
  %v390 = vpop.f32.mrb[0].mxu0
  %v391 = vadd.f32 %v72, %v390
  %v392 = vpop.f32.mrb[0].mxu0
  %v393 = vadd.f32 %v68, %v392
  %v394 = vpop.f32.mrb[0].mxu0
  %v395 = vadd.f32 %v72, %v394
  %396 = vmatprep.mubr.bf16.mxu0 0
  %397 = vmatmul.mubr.bf16.gmra.mrb[0].mxu0 %v96
  %v398 = vpop.f32.mrb[0].mxu0
  %v399 = vadd.f32 %v68, %v398
  %v400 = vpop.f32.mrb[0].mxu0
  %v401 = vadd.f32 %v72, %v400
  %v402 = vpop.f32.mrb[0].mxu0
  %v403 = vadd.f32 %v68, %v402
  %v404 = vpop.f32.mrb[0].mxu0
  %v405 = vadd.f32 %v72, %v404
  %406 = vdwg.mxu0
  %v407 = vmax.f32 %v296, %v298
  %v408 = vmax.f32 %v407, %v369
  %v409 = vmax.f32 %v408, %v371
  %410 = vmax.xlane.f32.xlu0 %v409
  %v411 = vpop.xlane.xlu0 %410
  %v412 = vmax.f32 %v300, %v302
  %v413 = vmax.f32 %v412, %v373
  %v414 = vmax.f32 %v413, %v375
  %415 = vmax.xlane.f32.xlu0 %v414
  %v416 = vpop.xlane.xlu0 %415
  %v417 = vmax.f32 %v306, %v308
  %v418 = vmax.f32 %v417, %v379
  %v419 = vmax.f32 %v418, %v381
  %420 = vmax.xlane.f32.xlu0 %v419
  %v421 = vpop.xlane.xlu0 %420
  %v422 = vmax.f32 %v310, %v312
  %v423 = vmax.f32 %v422, %v383
  %v424 = vmax.f32 %v423, %v385
  %425 = vmax.xlane.f32.xlu0 %v424
  %v426 = vpop.xlane.xlu0 %425
  %v427 = vmax.f32 %v316, %v318
  %v428 = vmax.f32 %v427, %v389
  %v429 = vmax.f32 %v428, %v391
  %430 = vmax.xlane.f32.xlu0 %v429
  %v431 = vpop.xlane.xlu0 %430
  %v432 = vmax.f32 %v320, %v322
  %v433 = vmax.f32 %v432, %v393
  %v434 = vmax.f32 %v433, %v395
  %435 = vmax.xlane.f32.xlu0 %v434
  %v436 = vpop.xlane.xlu0 %435
  %v437 = vmax.f32 %v326, %v328
  %v438 = vmax.f32 %v437, %v399
  %v439 = vmax.f32 %v438, %v401
  %440 = vmax.xlane.f32.xlu0 %v439
  %v441 = vpop.xlane.xlu0 %440
  %v442 = vmax.f32 %v330, %v332
  %v443 = vmax.f32 %v442, %v403
  %v444 = vmax.f32 %v443, %v405
  %445 = vmax.xlane.f32.xlu0 %v444
  %v446 = vpop.xlane.xlu0 %445
  %v447 = vsub.f32 %v296, %v411
  %v448 = vsub.f32 %v298, %v411
  %v449 = vsub.f32 %v369, %v411
  %v450 = vsub.f32 %v371, %v411
  %v451 = vsub.f32 %v300, %v416
  %v452 = vsub.f32 %v302, %v416
  %v453 = vsub.f32 %v373, %v416
  %v454 = vsub.f32 %v375, %v416
  %v455 = vsub.f32 %v306, %v421
  %v456 = vsub.f32 %v308, %v421
  %v457 = vsub.f32 %v379, %v421
  %v458 = vsub.f32 %v381, %v421
  %v459 = vsub.f32 %v310, %v426
  %v460 = vsub.f32 %v312, %v426
  %v461 = vsub.f32 %v383, %v426
  %v462 = vsub.f32 %v385, %v426
  %v463 = vsub.f32 %v316, %v431
  %v464 = vsub.f32 %v318, %v431
  %v465 = vsub.f32 %v389, %v431
  %v466 = vsub.f32 %v391, %v431
  %v467 = vsub.f32 %v320, %v436
  %v468 = vsub.f32 %v322, %v436
  %v469 = vsub.f32 %v393, %v436
  %v470 = vsub.f32 %v395, %v436
  %v471 = vsub.f32 %v326, %v441
  %v472 = vsub.f32 %v328, %v441
  %v473 = vsub.f32 %v399, %v441
  %v474 = vsub.f32 %v401, %v441
  %v475 = vsub.f32 %v330, %v446
  %v476 = vsub.f32 %v332, %v446
  %v477 = vsub.f32 %v403, %v446
  %v478 = vsub.f32 %v405, %v446
  %v479 = vmul.f32 %v447, 1.442695
  %v480 = vpow.pop %v479
  %v481 = vmul.f32 %v448, 1.442695
  %v482 = vpow.pop %v481
  %v483 = vmul.f32 %v449, 1.442695
  %v484 = vpow.pop %v483
  %v485 = vmul.f32 %v450, 1.442695
  %v486 = vpow.pop %v485
  %v487 = vmul.f32 %v451, 1.442695
  %v488 = vpow.pop %v487
  %v489 = vmul.f32 %v452, 1.442695
  %v490 = vpow.pop %v489
  %v491 = vmul.f32 %v453, 1.442695
  %v492 = vpow.pop %v491
  %v493 = vmul.f32 %v454, 1.442695
  %v494 = vpow.pop %v493
  %v495 = vmul.f32 %v455, 1.442695
  %v496 = vpow.pop %v495
  %v497 = vmul.f32 %v456, 1.442695
  %v498 = vpow.pop %v497
  %v499 = vmul.f32 %v457, 1.442695
  %v500 = vpow.pop %v499
  %v501 = vmul.f32 %v458, 1.442695
  %v502 = vpow.pop %v501
  %v503 = vmul.f32 %v459, 1.442695
  %v504 = vpow.pop %v503
  %v505 = vmul.f32 %v460, 1.442695
  %v506 = vpow.pop %v505
  %v507 = vmul.f32 %v461, 1.442695
  %v508 = vpow.pop %v507
  %v509 = vmul.f32 %v462, 1.442695
  %v510 = vpow.pop %v509
  %v511 = vmul.f32 %v463, 1.442695
  %v512 = vpow.pop %v511
  %v513 = vmul.f32 %v464, 1.442695
  %v514 = vpow.pop %v513
  %v515 = vmul.f32 %v465, 1.442695
  %v516 = vpow.pop %v515
  %v517 = vmul.f32 %v466, 1.442695
  %v518 = vpow.pop %v517
  %v519 = vmul.f32 %v467, 1.442695
  %v520 = vpow.pop %v519
  %v521 = vmul.f32 %v468, 1.442695
  %v522 = vpow.pop %v521
  %v523 = vmul.f32 %v469, 1.442695
  %v524 = vpow.pop %v523
  %v525 = vmul.f32 %v470, 1.442695
  %v526 = vpow.pop %v525
  %v527 = vmul.f32 %v471, 1.442695
  %v528 = vpow.pop %v527
  %v529 = vmul.f32 %v472, 1.442695
  %v530 = vpow.pop %v529
  %v531 = vmul.f32 %v473, 1.442695
  %v532 = vpow.pop %v531
  %v533 = vmul.f32 %v474, 1.442695
  %v534 = vpow.pop %v533
  %v535 = vmul.f32 %v475, 1.442695
  %v536 = vpow.pop %v535
  %v537 = vmul.f32 %v476, 1.442695
  %v538 = vpow.pop %v537
  %v539 = vmul.f32 %v477, 1.442695
  %v540 = vpow.pop %v539
  %v541 = vmul.f32 %v478, 1.442695
  %v542 = vpow.pop %v541
  %v543 = vadd.f32 %v480, %v482
  %v544 = vadd.f32 %v543, %v484
  %v545 = vadd.f32 %v544, %v486
  %546 = vadd.xlane.f32.xlu0 %v545
  %v547 = vpop.xlane.xlu0 %546
  %v548 = vadd.f32 %v488, %v490
  %v549 = vadd.f32 %v548, %v492
  %v550 = vadd.f32 %v549, %v494
  %551 = vadd.xlane.f32.xlu0 %v550
  %v552 = vpop.xlane.xlu0 %551
  %v553 = vadd.f32 %v496, %v498
  %v554 = vadd.f32 %v553, %v500
  %v555 = vadd.f32 %v554, %v502
  %556 = vadd.xlane.f32.xlu0 %v555
  %v557 = vpop.xlane.xlu0 %556
  %v558 = vadd.f32 %v504, %v506
  %v559 = vadd.f32 %v558, %v508
  %v560 = vadd.f32 %v559, %v510
  %561 = vadd.xlane.f32.xlu0 %v560
  %v562 = vpop.xlane.xlu0 %561
  %v563 = vadd.f32 %v512, %v514
  %v564 = vadd.f32 %v563, %v516
  %v565 = vadd.f32 %v564, %v518
  %566 = vadd.xlane.f32.xlu0 %v565
  %v567 = vpop.xlane.xlu0 %566
  %v568 = vadd.f32 %v520, %v522
  %v569 = vadd.f32 %v568, %v524
  %v570 = vadd.f32 %v569, %v526
  %571 = vadd.xlane.f32.xlu0 %v570
  %v572 = vpop.xlane.xlu0 %571
  %v573 = vadd.f32 %v528, %v530
  %v574 = vadd.f32 %v573, %v532
  %v575 = vadd.f32 %v574, %v534
  %576 = vadd.xlane.f32.xlu0 %v575
  %v577 = vpop.xlane.xlu0 %576
  %v578 = vadd.f32 %v536, %v538
  %v579 = vadd.f32 %v578, %v540
  %v580 = vadd.f32 %v579, %v542
  %581 = vadd.xlane.f32.xlu0 %v580
  %v582 = vpop.xlane.xlu0 %581
  %v583 = vlog2.pop %v547
  %v584 = vmul.f32 %v583, 0.6931472
  %v585 = vlog2.pop %v552
  %v586 = vmul.f32 %v585, 0.6931472
  %v587 = vlog2.pop %v557
  %v588 = vmul.f32 %v587, 0.6931472
  %v589 = vlog2.pop %v562
  %v590 = vmul.f32 %v589, 0.6931472
  %v591 = vlog2.pop %v567
  %v592 = vmul.f32 %v591, 0.6931472
  %v593 = vlog2.pop %v572
  %v594 = vmul.f32 %v593, 0.6931472
  %v595 = vlog2.pop %v577
  %v596 = vmul.f32 %v595, 0.6931472
  %v597 = vlog2.pop %v582
  %v598 = vmul.f32 %v597, 0.6931472
  %v599 = vadd.f32 %v411, %v584
  %v600 = vadd.f32 %v416, %v586
  %v601 = vadd.f32 %v421, %v588
  %v602 = vadd.f32 %v426, %v590
  %v603 = vadd.f32 %v431, %v592
  %v604 = vadd.f32 %v436, %v594
  %v605 = vadd.f32 %v441, %v596
  %v606 = vadd.f32 %v446, %v598
  %v607 = vsub.f32 %v296, %v599
  %v608 = vsub.f32 %v298, %v599
  %v609 = vsub.f32 %v369, %v599
  %v610 = vsub.f32 %v371, %v599
  %v611 = vsub.f32 %v300, %v600
  %v612 = vsub.f32 %v302, %v600
  %v613 = vsub.f32 %v373, %v600
  %v614 = vsub.f32 %v375, %v600
  %v615 = vsub.f32 %v306, %v601
  %v616 = vsub.f32 %v308, %v601
  %v617 = vsub.f32 %v379, %v601
  %v618 = vsub.f32 %v381, %v601
  %v619 = vsub.f32 %v310, %v602
  %v620 = vsub.f32 %v312, %v602
  %v621 = vsub.f32 %v383, %v602
  %v622 = vsub.f32 %v385, %v602
  %v623 = vsub.f32 %v316, %v603
  %v624 = vsub.f32 %v318, %v603
  %v625 = vsub.f32 %v389, %v603
  %v626 = vsub.f32 %v391, %v603
  %v627 = vsub.f32 %v320, %v604
  %v628 = vsub.f32 %v322, %v604
  %v629 = vsub.f32 %v393, %v604
  %v630 = vsub.f32 %v395, %v604
  %v631 = vsub.f32 %v326, %v605
  %v632 = vsub.f32 %v328, %v605
  %v633 = vsub.f32 %v399, %v605
  %v634 = vsub.f32 %v401, %v605
  %v635 = vsub.f32 %v330, %v606
  %v636 = vsub.f32 %v332, %v606
  %v637 = vsub.f32 %v403, %v606
  %v638 = vsub.f32 %v405, %v606
  %639 = vst [vmem:[%s3] sm:$0xff] %v607
  %640 = vst [vmem:[%s3 + $0x8] sm:$0xff] %v608
  %641 = vst [vmem:[%s3 + $0x10] sm:$0xff] %v609
  %642 = vst [vmem:[%s3 + $0x18] sm:$0xff] %v610
  %643 = vst [vmem:[%s3 + $0x20] sm:$0xff] %v611
  %644 = vst [vmem:[%s3 + $0x28] sm:$0xff] %v612
  %645 = vst [vmem:[%s3 + $0x30] sm:$0xff] %v613
  %646 = vst [vmem:[%s3 + $0x38] sm:$0xff] %v614
  %647 = vst [vmem:[%s3 + $0x40] sm:$0xff] %v615
  %648 = vst [vmem:[%s3 + $0x48] sm:$0xff] %v616
  %649 = vst [vmem:[%s3 + $0x50] sm:$0xff] %v617
  %650 = vst [vmem:[%s3 + $0x58] sm:$0xff] %v618
  %651 = vst [vmem:[%s3 + $0x60] sm:$0xff] %v619
  %652 = vst [vmem:[%s3 + $0x68] sm:$0xff] %v620
  %653 = vst [vmem:[%s3 + $0x70] sm:$0xff] %v621
  %654 = vst [vmem:[%s3 + $0x78] sm:$0xff] %v622
  %655 = vst [vmem:[%s3 + $0x80] sm:$0xff] %v623
  %656 = vst [vmem:[%s3 + $0x88] sm:$0xff] %v624
  %657 = vst [vmem:[%s3 + $0x90] sm:$0xff] %v625
  %658 = vst [vmem:[%s3 + $0x98] sm:$0xff] %v626
  %659 = vst [vmem:[%s3 + $0xa0] sm:$0xff] %v627
  %660 = vst [vmem:[%s3 + $0xa8] sm:$0xff] %v628
  %661 = vst [vmem:[%s3 + $0xb0] sm:$0xff] %v629
  %662 = vst [vmem:[%s3 + $0xb8] sm:$0xff] %v630
  %663 = vst [vmem:[%s3 + $0xc0] sm:$0xff] %v631
  %664 = vst [vmem:[%s3 + $0xc8] sm:$0xff] %v632
  %665 = vst [vmem:[%s3 + $0xd0] sm:$0xff] %v633
  %666 = vst [vmem:[%s3 + $0xd8] sm:$0xff] %v634
  %667 = vst [vmem:[%s3 + $0xe0] sm:$0xff] %v635
  %668 = vst [vmem:[%s3 + $0xe8] sm:$0xff] %v636
  %669 = vst [vmem:[%s3 + $0xf0] sm:$0xff] %v637
  %670 = vst [vmem:[%s3 + $0xf8] sm:$0xff] %v638
  // Predicated region
  $region14: #{language_model_forward.3} parent=0 // pred_check
    _
  $region15: #{language_model_forward.3} parent=0 // pred_check_branch
    %672 = sbr.rel (0) target = $region17
  $region16: #{language_model_forward.3} parent=0 // pred_region
    _
  $region17: #{language_model_forward.3} parent=0 // pred_fallthru
    _
  // Predicated region
  $region18: #{language_model_forward.3} parent=0 // pred_check
    _
  $region19: #{language_model_forward.3} parent=0 // pred_check_branch
    %674 = sbr.rel (0) target = $region21
  $region20: #{language_model_forward.3} parent=0 // pred_region
    _
  $region21: #{language_model_forward.3} parent=0 // pred_fallthru
    _

// kernel: language_model_forward.2
$region0: #{language_model_forward.2}
  #allocation0 [shape = 'u32[]', space=smem, size = 0x4, offset = 0x4, fixed_abs, tag = 'smem constant byte address 0x4 - core index']
  #allocation1 [shape = 'u32[144,128]{1,0:T(1,128)}', space=vmem, size = 0x12000, scoped, tag = 'internal scratch']
  #allocation2 [shape = 'f32[8,8,384]{2,1,0:T(8,128)}', space=vmem, size = 0x18000, scoped, tag = 'scratch operand']
  #allocation3 [shape = 'f32[8,8,128]{2,1,0:T(8,128)}', space=vmem, size = 0x8000, scoped, tag = 'scratch operand']
  %s0 = inlined_call_operand.vmem [shape: bf16[8,8,128], index: 0, kind: input, shape index: {}]
  %s1 = inlined_call_operand.vmem [shape: bf16[128,384], index: 1, kind: input, shape index: {}]
  %s2 = inlined_call_operand.vmem [shape: bf16[128,384], index: 2, kind: input, shape index: {}]
  %s3 = inlined_call_operand.vmem [shape: f32[1,384], index: 3, kind: input, shape index: {}]
  %s4 = inlined_call_operand.vmem [shape: f32[1,384], index: 4, kind: input, shape index: {}]
  %s5 = inlined_call_operand.vmem [shape: bf16[8,8,128], index: 5, kind: output, shape index: {}]
  %s6 = sld [smem:[#allocation0]]
  $region30: #{language_model_forward.2} parent=0
    _
  %s8 = ssub.s32 1, %s6
  %s9 = scalar_select 0, %s8, %s6
  // Predicated region
  $region2: #{language_model_forward.2} parent=0 // pred_check
    _
  $region3: #{language_model_forward.2} parent=0 // pred_check_branch
    %11 = sbr.rel (0) target = $region5
  $region4: #{language_model_forward.2} parent=0 // pred_region
    _
  $region5: #{language_model_forward.2} parent=0 // pred_fallthru
    _
  // Predicated region
  $region6: #{language_model_forward.2} parent=0 // pred_check
    _
  $region7: #{language_model_forward.2} parent=0 // pred_check_branch
    %13 = sbr.rel (0) target = $region9
  $region8: #{language_model_forward.2} parent=0 // pred_region
    _
  $region9: #{language_model_forward.2} parent=0 // pred_fallthru
    _
  // Predicated region
  $region10: #{language_model_forward.2} parent=0 // pred_check
    _
  $region11: #{language_model_forward.2} parent=0 // pred_check_branch
    %15 = sbr.rel (0) target = $region13
  $region12: #{language_model_forward.2} parent=0 // pred_region
    _
  $region13: #{language_model_forward.2} parent=0 // pred_fallthru
    _
  // Predicated region
  $region14: #{language_model_forward.2} parent=0 // pred_check
    _
  $region15: #{language_model_forward.2} parent=0 // pred_check_branch
    %17 = sbr.rel (0) target = $region17
  $region16: #{language_model_forward.2} parent=0 // pred_region
    _
  $region17: #{language_model_forward.2} parent=0 // pred_fallthru
    _
  // Predicated region
  $region18: #{language_model_forward.2} parent=0 // pred_check
    _
  $region19: #{language_model_forward.2} parent=0 // pred_check_branch
    %19 = sbr.rel (0) target = $region21
  $region20: #{language_model_forward.2} parent=0 // pred_region
    _
  $region21: #{language_model_forward.2} parent=0 // pred_fallthru
    _
  %v21 = vld [vmem:[%s0] sm:$0xf]
  %v22 = vld [vmem:[%s0 + $0x4] sm:$0xf]
  %v23 = vld [vmem:[%s0 + $0x8] sm:$0xf]
  %v24 = vld [vmem:[%s0 + $0xc] sm:$0xf]
  %v25 = vld [vmem:[%s0 + $0x10] sm:$0xf]
  %v26 = vld [vmem:[%s0 + $0x14] sm:$0xf]
  %v27 = vld [vmem:[%s0 + $0x18] sm:$0xf]
  %v28 = vld [vmem:[%s0 + $0x1c] sm:$0xf]
  %v29 = vld [vmem:[%s1] sm:$0xff]
  %v30 = vld [vmem:[%s1 + $0x8] sm:$0xf]
  %v31 = vld [vmem:[%s1 + $0xc] sm:$0xff]
  %v32 = vld [vmem:[%s1 + $0x14] sm:$0xf]
  %v33 = vld [vmem:[%s1 + $0x18] sm:$0xff]
  %v34 = vld [vmem:[%s1 + $0x20] sm:$0xf]
  %v35 = vld [vmem:[%s1 + $0x24] sm:$0xff]
  %v36 = vld [vmem:[%s1 + $0x2c] sm:$0xf]
  %v37 = vld [vmem:[%s1 + $0x30] sm:$0xff]
  %v38 = vld [vmem:[%s1 + $0x38] sm:$0xf]
  %v39 = vld [vmem:[%s1 + $0x3c] sm:$0xff]
  %v40 = vld [vmem:[%s1 + $0x44] sm:$0xf]
  %v41 = vld [vmem:[%s1 + $0x48] sm:$0xff]
  %v42 = vld [vmem:[%s1 + $0x50] sm:$0xf]
  %v43 = vld [vmem:[%s1 + $0x54] sm:$0xff]
  %v44 = vld [vmem:[%s1 + $0x5c] sm:$0xf]
  %v45 = vld [vmem:[%s1 + $0x60] sm:$0xff]
  %v46 = vld [vmem:[%s1 + $0x68] sm:$0xf]
  %v47 = vld [vmem:[%s1 + $0x6c] sm:$0xff]
  %v48 = vld [vmem:[%s1 + $0x74] sm:$0xf]
  %v49 = vld [vmem:[%s1 + $0x78] sm:$0xff]
  %v50 = vld [vmem:[%s1 + $0x80] sm:$0xf]
  %v51 = vld [vmem:[%s1 + $0x84] sm:$0xff]
  %v52 = vld [vmem:[%s1 + $0x8c] sm:$0xf]
  %v53 = vld [vmem:[%s1 + $0x90] sm:$0xff]
  %v54 = vld [vmem:[%s1 + $0x98] sm:$0xf]
  %v55 = vld [vmem:[%s1 + $0x9c] sm:$0xff]
  %v56 = vld [vmem:[%s1 + $0xa4] sm:$0xf]
  %v57 = vld [vmem:[%s1 + $0xa8] sm:$0xff]
  %v58 = vld [vmem:[%s1 + $0xb0] sm:$0xf]
  %v59 = vld [vmem:[%s1 + $0xb4] sm:$0xff]
  %v60 = vld [vmem:[%s1 + $0xbc] sm:$0xf]
  %v61 = vld [vmem:[%s3] sm:$0x7]
  %v63 = vlaneseq
  %v64 = vshrl.u32 %v63, 7
  %v65 = vsub.s32 0, %v64
  %v66 = vrot.slane %v61, %v65
  %v67 = vlaneseq
  %v68 = vshrl.u32 %v67, 7
  %v69 = vsub.s32 1, %v68
  %v70 = vrot.slane %v61, %v69
  %v71 = vlaneseq
  %v72 = vshrl.u32 %v71, 7
  %v73 = vsub.s32 2, %v72
  %v74 = vrot.slane %v61, %v73
  %v86 = vunpack.c.l.b16 %v21
  %v87 = vunpack.c.l.b16 %v22
  %v88 = vunpack.c.l.b16 %v23
  %v89 = vunpack.c.l.b16 %v24
  %v90 = vunpack.c.l.b16 %v25
  %v91 = vunpack.c.l.b16 %v26
  %v92 = vunpack.c.l.b16 %v27
  %v93 = vunpack.c.l.b16 %v28
  %v94 = vpack.c.b16 %v87, %v86
  %v95 = vpack.c.b16 %v89, %v88
  %v96 = vpack.c.b16 %v91, %v90
  %v97 = vpack.c.b16 %v93, %v92
  %v134 = vunpack.c.l.b16 %v29
  %v135 = vunpack.c.h.b16 %v29
  %v136 = vunpack.c.l.b16 %v30
  %v137 = vunpack.c.l.b16 %v31
  %v138 = vunpack.c.h.b16 %v31
  %v139 = vunpack.c.l.b16 %v32
  %v140 = vunpack.c.l.b16 %v33
  %v141 = vunpack.c.h.b16 %v33
  %v142 = vunpack.c.l.b16 %v34
  %v143 = vunpack.c.l.b16 %v35
  %v144 = vunpack.c.h.b16 %v35
  %v145 = vunpack.c.l.b16 %v36
  %v146 = vunpack.c.l.b16 %v37
  %v147 = vunpack.c.h.b16 %v37
  %v148 = vunpack.c.l.b16 %v38
  %v149 = vunpack.c.l.b16 %v39
  %v150 = vunpack.c.h.b16 %v39
  %v151 = vunpack.c.l.b16 %v40
  %v152 = vunpack.c.l.b16 %v41
  %v153 = vunpack.c.h.b16 %v41
  %v154 = vunpack.c.l.b16 %v42
  %v155 = vunpack.c.l.b16 %v43
  %v156 = vunpack.c.h.b16 %v43
  %v157 = vunpack.c.l.b16 %v44
  %v158 = vunpack.c.l.b16 %v45
  %v159 = vunpack.c.h.b16 %v45
  %v160 = vunpack.c.l.b16 %v46
  %v161 = vunpack.c.l.b16 %v47
  %v162 = vunpack.c.h.b16 %v47
  %v163 = vunpack.c.l.b16 %v48
  %v164 = vunpack.c.l.b16 %v49
  %v165 = vunpack.c.h.b16 %v49
  %v166 = vunpack.c.l.b16 %v50
  %v167 = vunpack.c.l.b16 %v51
  %v168 = vunpack.c.h.b16 %v51
  %v169 = vunpack.c.l.b16 %v52
  %v170 = vunpack.c.l.b16 %v53
  %v171 = vunpack.c.h.b16 %v53
  %v172 = vunpack.c.l.b16 %v54
  %v173 = vunpack.c.l.b16 %v55
  %v174 = vunpack.c.h.b16 %v55
  %v175 = vunpack.c.l.b16 %v56
  %v176 = vunpack.c.l.b16 %v57
  %v177 = vunpack.c.h.b16 %v57
  %v178 = vunpack.c.l.b16 %v58
  %v179 = vunpack.c.l.b16 %v59
  %v180 = vunpack.c.h.b16 %v59
  %v181 = vunpack.c.l.b16 %v60
  %v182 = vpack.c.b16 %v137, %v134
  %v183 = vpack.c.b16 %v138, %v135
  %v184 = vpack.c.b16 %v139, %v136
  %v185 = vpack.c.b16 %v143, %v140
  %v186 = vpack.c.b16 %v144, %v141
  %v187 = vpack.c.b16 %v145, %v142
  %v188 = vpack.c.b16 %v149, %v146
  %v189 = vpack.c.b16 %v150, %v147
  %v190 = vpack.c.b16 %v151, %v148
  %v191 = vpack.c.b16 %v155, %v152
  %v192 = vpack.c.b16 %v156, %v153
  %v193 = vpack.c.b16 %v157, %v154
  %v194 = vpack.c.b16 %v161, %v158
  %v195 = vpack.c.b16 %v162, %v159
  %v196 = vpack.c.b16 %v163, %v160
  %v197 = vpack.c.b16 %v167, %v164
  %v198 = vpack.c.b16 %v168, %v165
  %v199 = vpack.c.b16 %v169, %v166
  %v200 = vpack.c.b16 %v173, %v170
  %v201 = vpack.c.b16 %v174, %v171
  %v202 = vpack.c.b16 %v175, %v172
  %v203 = vpack.c.b16 %v179, %v176
  %v204 = vpack.c.b16 %v180, %v177
  %v205 = vpack.c.b16 %v181, %v178
  %230 = vmatprep.subr.bf16.mxu0 %v183
  %231 = vmatpush1.bf16.msra.mxu0 %v182
  %232 = vmatprep.subr.bf16.mxu0 %v186
  %233 = vmatpush1.bf16.msra.mxu0 %v185
  %234 = vmatprep.subr.bf16.mxu0 %v189
  %235 = vmatpush1.bf16.msra.mxu0 %v188
  %236 = vmatprep.subr.bf16.mxu0 %v192
  %237 = vmatpush1.bf16.msra.mxu0 %v191
  %238 = vmatprep.subr.bf16.mxu0 %v195
  %239 = vmatpush1.bf16.msra.mxu0 %v194
  %240 = vmatprep.subr.bf16.mxu0 %v198
  %241 = vmatpush1.bf16.msra.mxu0 %v197
  %242 = vmatprep.subr.bf16.mxu0 %v201
  %243 = vmatpush1.bf16.msra.mxu0 %v200
  %244 = vmatprep.subr.bf16.mxu0 %v204
  %245 = vmatpush1.bf16.msra.mxu0 %v203
  %246 = vmatprep.subr.bf16.mxu0 0
  %247 = vmatpush1.bf16.msra.mxu0 0
  %248 = vmatprep.subr.bf16.mxu0 0
  %249 = vmatpush1.bf16.msra.mxu0 0
  %250 = vmatprep.subr.bf16.mxu0 0
  %251 = vmatpush1.bf16.msra.mxu0 0
  %252 = vmatprep.subr.bf16.mxu0 0
  %253 = vmatpush1.bf16.msra.mxu0 0
  %254 = vmatprep.subr.bf16.mxu0 0
  %255 = vmatpush1.bf16.msra.mxu0 0
  %256 = vmatprep.subr.bf16.mxu0 0
  %257 = vmatpush1.bf16.msra.mxu0 0
  %258 = vmatprep.subr.bf16.mxu0 0
  %259 = vmatpush1.bf16.msra.mxu0 0
  %260 = vmatprep.subr.bf16.mxu0 0
  %261 = vmatpush1.bf16.msra.mxu0 0
  %262 = vmatprep.mubr.bf16.mxu0 0
  %263 = vmatmul.mubr.bf16.gmra.mrb[0].mxu0 %v94
  %v264 = vpop.f32.mrb[0].mxu0
  %v265 = vadd.f32 %v66, %v264
  %v266 = vpop.f32.mrb[0].mxu0
  %v267 = vadd.f32 %v70, %v266
  %v268 = vpop.f32.mrb[0].mxu0
  %v269 = vadd.f32 %v66, %v268
  %v270 = vpop.f32.mrb[0].mxu0
  %v271 = vadd.f32 %v70, %v270
  %272 = vmatprep.mubr.bf16.mxu0 0
  %273 = vmatmul.mubr.bf16.gmra.mrb[0].mxu0 %v95
  %v274 = vpop.f32.mrb[0].mxu0
  %v275 = vadd.f32 %v66, %v274
  %v276 = vpop.f32.mrb[0].mxu0
  %v277 = vadd.f32 %v70, %v276
  %v278 = vpop.f32.mrb[0].mxu0
  %v279 = vadd.f32 %v66, %v278
  %v280 = vpop.f32.mrb[0].mxu0
  %v281 = vadd.f32 %v70, %v280
  %282 = vmatprep.mubr.bf16.mxu0 0
  %283 = vmatmul.mubr.bf16.gmra.mrb[0].mxu0 %v96
  %v284 = vpop.f32.mrb[0].mxu0
  %v285 = vadd.f32 %v66, %v284
  %v286 = vpop.f32.mrb[0].mxu0
  %v287 = vadd.f32 %v70, %v286
  %v288 = vpop.f32.mrb[0].mxu0
  %v289 = vadd.f32 %v66, %v288
  %v290 = vpop.f32.mrb[0].mxu0
  %v291 = vadd.f32 %v70, %v290
  %292 = vmatprep.mubr.bf16.mxu0 0
  %293 = vmatmul.mubr.bf16.gmra.mrb[0].mxu0 %v97
  %v294 = vpop.f32.mrb[0].mxu0
  %v295 = vadd.f32 %v66, %v294
  %v296 = vpop.f32.mrb[0].mxu0
  %v297 = vadd.f32 %v70, %v296
  %v298 = vpop.f32.mrb[0].mxu0
  %v299 = vadd.f32 %v66, %v298
  %v300 = vpop.f32.mrb[0].mxu0
  %v301 = vadd.f32 %v70, %v300
  %302 = vdwg.mxu0
  %303 = vmatprep.subr.bf16.mxu0 0
  %304 = vmatpush1.bf16.msra.mxu0 %v184
  %305 = vmatprep.subr.bf16.mxu0 0
  %306 = vmatpush1.bf16.msra.mxu0 %v187
  %307 = vmatprep.subr.bf16.mxu0 0
  %308 = vmatpush1.bf16.msra.mxu0 %v190
  %309 = vmatprep.subr.bf16.mxu0 0
  %310 = vmatpush1.bf16.msra.mxu0 %v193
  %311 = vmatprep.subr.bf16.mxu0 0
  %312 = vmatpush1.bf16.msra.mxu0 %v196
  %313 = vmatprep.subr.bf16.mxu0 0
  %314 = vmatpush1.bf16.msra.mxu0 %v199
  %315 = vmatprep.subr.bf16.mxu0 0
  %316 = vmatpush1.bf16.msra.mxu0 %v202
  %317 = vmatprep.subr.bf16.mxu0 0
  %318 = vmatpush1.bf16.msra.mxu0 %v205
  %319 = vmatprep.subr.bf16.mxu0 0
  %320 = vmatpush1.bf16.msra.mxu0 0
  %321 = vmatprep.subr.bf16.mxu0 0
  %322 = vmatpush1.bf16.msra.mxu0 0
  %323 = vmatprep.subr.bf16.mxu0 0
  %324 = vmatpush1.bf16.msra.mxu0 0
  %325 = vmatprep.subr.bf16.mxu0 0
  %326 = vmatpush1.bf16.msra.mxu0 0
  %327 = vmatprep.subr.bf16.mxu0 0
  %328 = vmatpush1.bf16.msra.mxu0 0
  %329 = vmatprep.subr.bf16.mxu0 0
  %330 = vmatpush1.bf16.msra.mxu0 0
  %331 = vmatprep.subr.bf16.mxu0 0
  %332 = vmatpush1.bf16.msra.mxu0 0
  %333 = vmatprep.subr.bf16.mxu0 0
  %334 = vmatpush1.bf16.msra.mxu0 0
  %335 = vmatprep.mubr.bf16.mxu0 0
  %336 = vmatmul.mubr.bf16.gmra.mrb[0].mxu0 %v94
  %v337 = vpop.f32.mrb[0].mxu0
  %v338 = vadd.f32 %v74, %v337
  %v339 = vpop.f32.mrb[0].mxu0
  %v340 = vpop.f32.mrb[0].mxu0
  %v341 = vadd.f32 %v74, %v340
  %v342 = vpop.f32.mrb[0].mxu0
  %343 = vmatprep.mubr.bf16.mxu0 0
  %344 = vmatmul.mubr.bf16.gmra.mrb[0].mxu0 %v95
  %v345 = vpop.f32.mrb[0].mxu0
  %v346 = vadd.f32 %v74, %v345
  %v347 = vpop.f32.mrb[0].mxu0
  %v348 = vpop.f32.mrb[0].mxu0
  %v349 = vadd.f32 %v74, %v348
  %v350 = vpop.f32.mrb[0].mxu0
  %351 = vmatprep.mubr.bf16.mxu0 0
  %352 = vmatmul.mubr.bf16.gmra.mrb[0].mxu0 %v96
  %v353 = vpop.f32.mrb[0].mxu0
  %v354 = vadd.f32 %v74, %v353
  %v355 = vpop.f32.mrb[0].mxu0
  %v356 = vpop.f32.mrb[0].mxu0
  %v357 = vadd.f32 %v74, %v356
  %v358 = vpop.f32.mrb[0].mxu0
  %359 = vmatprep.mubr.bf16.mxu0 0
  %360 = vmatmul.mubr.bf16.gmra.mrb[0].mxu0 %v97
  %v361 = vpop.f32.mrb[0].mxu0
  %v362 = vadd.f32 %v74, %v361
  %v363 = vpop.f32.mrb[0].mxu0
  %v364 = vpop.f32.mrb[0].mxu0
  %v365 = vadd.f32 %v74, %v364
  %v366 = vpop.f32.mrb[0].mxu0
  %367 = vdwg.mxu0
  %368 = vst [vmem:[#allocation2] sm:$0xff] %v265
  %369 = vst [vmem:[#allocation2 + $0x8] sm:$0xff] %v267
  %370 = vst [vmem:[#allocation2 + $0x10] sm:$0xff] %v338
  %371 = vst [vmem:[#allocation2 + $0x18] sm:$0xff] %v269
  %372 = vst [vmem:[#allocation2 + $0x20] sm:$0xff] %v271
  %373 = vst [vmem:[#allocation2 + $0x28] sm:$0xff] %v341
  %374 = vst [vmem:[#allocation2 + $0x30] sm:$0xff] %v275
  %375 = vst [vmem:[#allocation2 + $0x38] sm:$0xff] %v277
  %376 = vst [vmem:[#allocation2 + $0x40] sm:$0xff] %v346
  %377 = vst [vmem:[#allocation2 + $0x48] sm:$0xff] %v279
  %378 = vst [vmem:[#allocation2 + $0x50] sm:$0xff] %v281
  %379 = vst [vmem:[#allocation2 + $0x58] sm:$0xff] %v349
  %380 = vst [vmem:[#allocation2 + $0x60] sm:$0xff] %v285
  %381 = vst [vmem:[#allocation2 + $0x68] sm:$0xff] %v287
  %382 = vst [vmem:[#allocation2 + $0x70] sm:$0xff] %v354
  %383 = vst [vmem:[#allocation2 + $0x78] sm:$0xff] %v289
  %384 = vst [vmem:[#allocation2 + $0x80] sm:$0xff] %v291
  %385 = vst [vmem:[#allocation2 + $0x88] sm:$0xff] %v357
  %386 = vst [vmem:[#allocation2 + $0x90] sm:$0xff] %v295
  %387 = vst [vmem:[#allocation2 + $0x98] sm:$0xff] %v297
  %388 = vst [vmem:[#allocation2 + $0xa0] sm:$0xff] %v362
  %389 = vst [vmem:[#allocation2 + $0xa8] sm:$0xff] %v299
  %390 = vst [vmem:[#allocation2 + $0xb0] sm:$0xff] %v301
  %391 = vst [vmem:[#allocation2 + $0xb8] sm:$0xff] %v365
  %v392 = vld [vmem:[#allocation2] sm:$0xff]
  %v393 = vld [vmem:[#allocation2 + $0x8] sm:$0xff]
  %v394 = vld [vmem:[#allocation2 + $0x10] sm:$0xff]
  %v395 = vld [vmem:[%s2] sm:$0xff]
  %v396 = vld [vmem:[%s2 + $0x8] sm:$0xf]
  %v397 = vld [vmem:[%s2 + $0xc] sm:$0xff]
  %v398 = vld [vmem:[%s2 + $0x14] sm:$0xf]
  %v399 = vld [vmem:[%s2 + $0x18] sm:$0xff]
  %v400 = vld [vmem:[%s2 + $0x20] sm:$0xf]
  %v401 = vld [vmem:[%s2 + $0x24] sm:$0xff]
  %v402 = vld [vmem:[%s2 + $0x2c] sm:$0xf]
  %v403 = vld [vmem:[%s2 + $0x30] sm:$0xff]
  %v404 = vld [vmem:[%s2 + $0x38] sm:$0xf]
  %v405 = vld [vmem:[%s2 + $0x3c] sm:$0xff]
  %v406 = vld [vmem:[%s2 + $0x44] sm:$0xf]
  %v407 = vld [vmem:[%s2 + $0x48] sm:$0xff]
  %v408 = vld [vmem:[%s2 + $0x50] sm:$0xf]
  %v409 = vld [vmem:[%s2 + $0x54] sm:$0xff]
  %v410 = vld [vmem:[%s2 + $0x5c] sm:$0xf]
  %v411 = vld [vmem:[%s2 + $0x60] sm:$0xff]
  %v412 = vld [vmem:[%s2 + $0x68] sm:$0xf]
  %v413 = vld [vmem:[%s2 + $0x6c] sm:$0xff]
  %v414 = vld [vmem:[%s2 + $0x74] sm:$0xf]
  %v415 = vld [vmem:[%s2 + $0x78] sm:$0xff]
  %v416 = vld [vmem:[%s2 + $0x80] sm:$0xf]
  %v417 = vld [vmem:[%s2 + $0x84] sm:$0xff]
  %v418 = vld [vmem:[%s2 + $0x8c] sm:$0xf]
  %v419 = vld [vmem:[%s2 + $0x90] sm:$0xff]
  %v420 = vld [vmem:[%s2 + $0x98] sm:$0xf]
  %v421 = vld [vmem:[%s2 + $0x9c] sm:$0xff]
  %v422 = vld [vmem:[%s2 + $0xa4] sm:$0xf]
  %v423 = vld [vmem:[%s2 + $0xa8] sm:$0xff]
  %v424 = vld [vmem:[%s2 + $0xb0] sm:$0xf]
  %v425 = vld [vmem:[%s2 + $0xb4] sm:$0xff]
  %v426 = vld [vmem:[%s2 + $0xbc] sm:$0xf]
  %v427 = vld [vmem:[%s4] sm:$0x7]
  %v429 = vlaneseq
  %v430 = vshrl.u32 %v429, 7
  %v431 = vsub.s32 0, %v430
  %v432 = vrot.slane %v427, %v431
  %v433 = vlaneseq
  %v434 = vshrl.u32 %v433, 7
  %v435 = vsub.s32 1, %v434
  %v436 = vrot.slane %v427, %v435
  %v437 = vlaneseq
  %v438 = vshrl.u32 %v437, 7
  %v439 = vsub.s32 2, %v438
  %v440 = vrot.slane %v427, %v439
  %v476 = vunpack.c.l.b16 %v395
  %v477 = vunpack.c.h.b16 %v395
  %v478 = vunpack.c.l.b16 %v396
  %v479 = vunpack.c.l.b16 %v397
  %v480 = vunpack.c.h.b16 %v397
  %v481 = vunpack.c.l.b16 %v398
  %v482 = vunpack.c.l.b16 %v399
  %v483 = vunpack.c.h.b16 %v399
  %v484 = vunpack.c.l.b16 %v400
  %v485 = vunpack.c.l.b16 %v401
  %v486 = vunpack.c.h.b16 %v401
  %v487 = vunpack.c.l.b16 %v402
  %v488 = vunpack.c.l.b16 %v403
  %v489 = vunpack.c.h.b16 %v403
  %v490 = vunpack.c.l.b16 %v404
  %v491 = vunpack.c.l.b16 %v405
  %v492 = vunpack.c.h.b16 %v405
  %v493 = vunpack.c.l.b16 %v406
  %v494 = vunpack.c.l.b16 %v407
  %v495 = vunpack.c.h.b16 %v407
  %v496 = vunpack.c.l.b16 %v408
  %v497 = vunpack.c.l.b16 %v409
  %v498 = vunpack.c.h.b16 %v409
  %v499 = vunpack.c.l.b16 %v410
  %v500 = vunpack.c.l.b16 %v411
  %v501 = vunpack.c.h.b16 %v411
  %v502 = vunpack.c.l.b16 %v412
  %v503 = vunpack.c.l.b16 %v413
  %v504 = vunpack.c.h.b16 %v413
  %v505 = vunpack.c.l.b16 %v414
  %v506 = vunpack.c.l.b16 %v415
  %v507 = vunpack.c.h.b16 %v415
  %v508 = vunpack.c.l.b16 %v416
  %v509 = vunpack.c.l.b16 %v417
  %v510 = vunpack.c.h.b16 %v417
  %v511 = vunpack.c.l.b16 %v418
  %v512 = vunpack.c.l.b16 %v419
  %v513 = vunpack.c.h.b16 %v419
  %v514 = vunpack.c.l.b16 %v420
  %v515 = vunpack.c.l.b16 %v421
  %v516 = vunpack.c.h.b16 %v421
  %v517 = vunpack.c.l.b16 %v422
  %v518 = vunpack.c.l.b16 %v423
  %v519 = vunpack.c.h.b16 %v423
  %v520 = vunpack.c.l.b16 %v424
  %v521 = vunpack.c.l.b16 %v425
  %v522 = vunpack.c.h.b16 %v425
  %v523 = vunpack.c.l.b16 %v426
  %v524 = vpack.c.b16 %v479, %v476
  %v525 = vpack.c.b16 %v480, %v477
  %v526 = vpack.c.b16 %v481, %v478
  %v527 = vpack.c.b16 %v485, %v482
  %v528 = vpack.c.b16 %v486, %v483
  %v529 = vpack.c.b16 %v487, %v484
  %v530 = vpack.c.b16 %v491, %v488
  %v531 = vpack.c.b16 %v492, %v489
  %v532 = vpack.c.b16 %v493, %v490
  %v533 = vpack.c.b16 %v497, %v494
  %v534 = vpack.c.b16 %v498, %v495
  %v535 = vpack.c.b16 %v499, %v496
  %v536 = vpack.c.b16 %v503, %v500
  %v537 = vpack.c.b16 %v504, %v501
  %v538 = vpack.c.b16 %v505, %v502
  %v539 = vpack.c.b16 %v509, %v506
  %v540 = vpack.c.b16 %v510, %v507
  %v541 = vpack.c.b16 %v511, %v508
  %v542 = vpack.c.b16 %v515, %v512
  %v543 = vpack.c.b16 %v516, %v513
  %v544 = vpack.c.b16 %v517, %v514
  %v545 = vpack.c.b16 %v521, %v518
  %v546 = vpack.c.b16 %v522, %v519
  %v547 = vpack.c.b16 %v523, %v520
  %572 = vmatprep.subr.bf16.mxu0 %v525
  %573 = vmatpush1.bf16.msra.mxu0 %v524
  %574 = vmatprep.subr.bf16.mxu0 %v528
  %575 = vmatpush1.bf16.msra.mxu0 %v527
  %576 = vmatprep.subr.bf16.mxu0 %v531
  %577 = vmatpush1.bf16.msra.mxu0 %v530
  %578 = vmatprep.subr.bf16.mxu0 %v534
  %579 = vmatpush1.bf16.msra.mxu0 %v533
  %580 = vmatprep.subr.bf16.mxu0 %v537
  %581 = vmatpush1.bf16.msra.mxu0 %v536
  %582 = vmatprep.subr.bf16.mxu0 %v540
  %583 = vmatpush1.bf16.msra.mxu0 %v539
  %584 = vmatprep.subr.bf16.mxu0 %v543
  %585 = vmatpush1.bf16.msra.mxu0 %v542
  %586 = vmatprep.subr.bf16.mxu0 %v546
  %587 = vmatpush1.bf16.msra.mxu0 %v545
  %588 = vmatprep.subr.bf16.mxu0 0
  %589 = vmatpush1.bf16.msra.mxu0 0
  %590 = vmatprep.subr.bf16.mxu0 0
  %591 = vmatpush1.bf16.msra.mxu0 0
  %592 = vmatprep.subr.bf16.mxu0 0
  %593 = vmatpush1.bf16.msra.mxu0 0
  %594 = vmatprep.subr.bf16.mxu0 0
  %595 = vmatpush1.bf16.msra.mxu0 0
  %596 = vmatprep.subr.bf16.mxu0 0
  %597 = vmatpush1.bf16.msra.mxu0 0
  %598 = vmatprep.subr.bf16.mxu0 0
  %599 = vmatpush1.bf16.msra.mxu0 0
  %600 = vmatprep.subr.bf16.mxu0 0
  %601 = vmatpush1.bf16.msra.mxu0 0
  %602 = vmatprep.subr.bf16.mxu0 0
  %603 = vmatpush1.bf16.msra.mxu0 0
  %604 = vmatprep.mubr.bf16.mxu0 0
  %605 = vmatmul.mubr.bf16.gmra.mrb[0].mxu0 0
  %v606 = vpop.f32.mrb[0].mxu0
  %v607 = vadd.f32 %v432, %v606
  %v608 = vpop.f32.mrb[0].mxu0
  %v609 = vadd.f32 %v436, %v608
  %v610 = vpop.f32.mrb[0].mxu0
  %v611 = vpop.f32.mrb[0].mxu0
  %612 = vdwg.mxu0
  %613 = vmatprep.subr.bf16.mxu0 0
  %614 = vmatpush1.bf16.msra.mxu0 %v526
  %615 = vmatprep.subr.bf16.mxu0 0
  %616 = vmatpush1.bf16.msra.mxu0 %v529
  %617 = vmatprep.subr.bf16.mxu0 0
  %618 = vmatpush1.bf16.msra.mxu0 %v532
  %619 = vmatprep.subr.bf16.mxu0 0
  %620 = vmatpush1.bf16.msra.mxu0 %v535
  %621 = vmatprep.subr.bf16.mxu0 0
  %622 = vmatpush1.bf16.msra.mxu0 %v538
  %623 = vmatprep.subr.bf16.mxu0 0
  %624 = vmatpush1.bf16.msra.mxu0 %v541
  %625 = vmatprep.subr.bf16.mxu0 0
  %626 = vmatpush1.bf16.msra.mxu0 %v544
  %627 = vmatprep.subr.bf16.mxu0 0
  %628 = vmatpush1.bf16.msra.mxu0 %v547
  %629 = vmatprep.subr.bf16.mxu0 0
  %630 = vmatpush1.bf16.msra.mxu0 0
  %631 = vmatprep.subr.bf16.mxu0 0
  %632 = vmatpush1.bf16.msra.mxu0 0
  %633 = vmatprep.subr.bf16.mxu0 0
  %634 = vmatpush1.bf16.msra.mxu0 0
  %635 = vmatprep.subr.bf16.mxu0 0
  %636 = vmatpush1.bf16.msra.mxu0 0
  %637 = vmatprep.subr.bf16.mxu0 0
  %638 = vmatpush1.bf16.msra.mxu0 0
  %639 = vmatprep.subr.bf16.mxu0 0
  %640 = vmatpush1.bf16.msra.mxu0 0
  %641 = vmatprep.subr.bf16.mxu0 0
  %642 = vmatpush1.bf16.msra.mxu0 0
  %643 = vmatprep.subr.bf16.mxu0 0
  %644 = vmatpush1.bf16.msra.mxu0 0
  %645 = vmatprep.mubr.bf16.mxu0 0
  %646 = vmatmul.mubr.bf16.gmra.mrb[0].mxu0 0
  %v647 = vpop.f32.mrb[0].mxu0
  %v648 = vadd.f32 %v440, %v647
  %v649 = vpop.f32.mrb[0].mxu0
  %v650 = vpop.f32.mrb[0].mxu0
  %v651 = vpop.f32.mrb[0].mxu0
  %652 = vdwg.mxu0
  %v653 = vadd.f32 %v392, %v607
  %v654 = vxor.u32 %v653, 2147483648
  %v655 = vmul.f32 %v654, 1.442695
  %v656 = vpow.pop %v655
  %v657 = vadd.f32 %v656, 1.0
  %v658 = vrcp.pop %v657
  %v659 = vmul.f32 1.0, %v658
  %v660 = vadd.f32 %v393, %v609
  %v661 = vxor.u32 %v660, 2147483648
  %v662 = vmul.f32 %v661, 1.442695
  %v663 = vpow.pop %v662
  %v664 = vadd.f32 %v663, 1.0
  %v665 = vrcp.pop %v664
  %v666 = vmul.f32 1.0, %v665
  %v667 = vmul.f32 %v659, %v648
  %v668 = vadd.f32 %v394, %v667
  %v669 = vtanh.pop %v668
  %v670 = vsub.f32 1.0, %v666
  %v671 = vmul.f32 %v670, %v669
  %v672 = vmul.f32 %v666, 0.0
  %v673 = vadd.f32 %v671, %v672
  %v675 = vcombine.high %v673, %v673
  %v677 = vunpack.c.l.s4 1966171168
  %v678 = vunpack.c.0.s8 %v677
  %v679 = vlaneseq
  %v680 = vshrl.u32 %v679, 7
  %v681 = vsub.s32 %v678, %v680
  %v682 = vrot.slane %v673, %v681
  %v684 = vunpack.c.l.s4 1966171168
  %v685 = vunpack.c.0.s8 %v684
  %v686 = vlaneseq
  %v687 = vshrl.u32 %v686, 7
  %v688 = vsub.s32 %v685, %v687
  %v689 = vrot.slane %v675, %v688
  %v690 = vcombine.high %v682, %v682
  %v691 = vcombine.high %v689, %v689
  %v693 = vunpack.c.l.s4 1966171168
  %v694 = vunpack.c.0.s8 %v693
  %v695 = vlaneseq
  %v696 = vshrl.u32 %v695, 7
  %v697 = vsub.s32 %v694, %v696
  %v698 = vrot.slane %v682, %v697
  %v700 = vunpack.c.l.s4 1966171168
  %v701 = vunpack.c.0.s8 %v700
  %v702 = vlaneseq
  %v703 = vshrl.u32 %v702, 7
  %v704 = vsub.s32 %v701, %v703
  %v705 = vrot.slane %v689, %v704
  %v707 = vunpack.c.l.s4 1966171168
  %v708 = vunpack.c.0.s8 %v707
  %v709 = vlaneseq
  %v710 = vshrl.u32 %v709, 7
  %v711 = vsub.s32 %v708, %v710
  %v712 = vrot.slane %v690, %v711
  %v714 = vunpack.c.l.s4 1966171168
  %v715 = vunpack.c.0.s8 %v714
  %v716 = vlaneseq
  %v717 = vshrl.u32 %v716, 7
  %v718 = vsub.s32 %v715, %v717
  %v719 = vrot.slane %v691, %v718
  %v720 = vcombine.high %v698, %v698
  %v721 = vcombine.high %v705, %v705
  %v722 = vcombine.high %v712, %v712
  %v723 = vcombine.high %v719, %v719
  %732 = vst [vmem:[#allocation3] sm:$0x1] %v698
  %733 = vst [vmem:[#allocation3 + $0x8] sm:$0x1] %v712
  %734 = vst [vmem:[#allocation3 + $0x10] sm:$0x1] %v720
  %735 = vst [vmem:[#allocation3 + $0x18] sm:$0x1] %v722
  %736 = vst [vmem:[#allocation3 + $0x20] sm:$0x1] %v705
  %737 = vst [vmem:[#allocation3 + $0x28] sm:$0x1] %v719
  %738 = vst [vmem:[#allocation3 + $0x30] sm:$0x1] %v721
  %739 = vst [vmem:[#allocation3 + $0x38] sm:$0x1] %v723
  %s740 = scalar_lea.vmem [#allocation2], 24
  %v741 = vld [vmem:[%s740] sm:$0xff]
  %v742 = vld [vmem:[%s740 + $0x8] sm:$0xff]
  %v743 = vld [vmem:[%s740 + $0x10] sm:$0xff]
  %v744 = vpack.c.bf16 %v673, %v673
  %v745 = vld [vmem:[%s2] sm:$0xff]
  %v746 = vld [vmem:[%s2 + $0x8] sm:$0xf]
  %v747 = vld [vmem:[%s2 + $0xc] sm:$0xff]
  %v748 = vld [vmem:[%s2 + $0x14] sm:$0xf]
  %v749 = vld [vmem:[%s2 + $0x18] sm:$0xff]
  %v750 = vld [vmem:[%s2 + $0x20] sm:$0xf]
  %v751 = vld [vmem:[%s2 + $0x24] sm:$0xff]
  %v752 = vld [vmem:[%s2 + $0x2c] sm:$0xf]
  %v753 = vld [vmem:[%s2 + $0x30] sm:$0xff]
  %v754 = vld [vmem:[%s2 + $0x38] sm:$0xf]
  %v755 = vld [vmem:[%s2 + $0x3c] sm:$0xff]
  %v756 = vld [vmem:[%s2 + $0x44] sm:$0xf]
  %v757 = vld [vmem:[%s2 + $0x48] sm:$0xff]
  %v758 = vld [vmem:[%s2 + $0x50] sm:$0xf]
  %v759 = vld [vmem:[%s2 + $0x54] sm:$0xff]
  %v760 = vld [vmem:[%s2 + $0x5c] sm:$0xf]
  %v761 = vld [vmem:[%s2 + $0x60] sm:$0xff]
  %v762 = vld [vmem:[%s2 + $0x68] sm:$0xf]
  %v763 = vld [vmem:[%s2 + $0x6c] sm:$0xff]
  %v764 = vld [vmem:[%s2 + $0x74] sm:$0xf]
  %v765 = vld [vmem:[%s2 + $0x78] sm:$0xff]
  %v766 = vld [vmem:[%s2 + $0x80] sm:$0xf]
  %v767 = vld [vmem:[%s2 + $0x84] sm:$0xff]
  %v768 = vld [vmem:[%s2 + $0x8c] sm:$0xf]
  %v769 = vld [vmem:[%s2 + $0x90] sm:$0xff]
  %v770 = vld [vmem:[%s2 + $0x98] sm:$0xf]
  %v771 = vld [vmem:[%s2 + $0x9c] sm:$0xff]
  %v772 = vld [vmem:[%s2 + $0xa4] sm:$0xf]
  %v773 = vld [vmem:[%s2 + $0xa8] sm:$0xff]
  %v774 = vld [vmem:[%s2 + $0xb0] sm:$0xf]
  %v775 = vld [vmem:[%s2 + $0xb4] sm:$0xff]
  %v776 = vld [vmem:[%s2 + $0xbc] sm:$0xf]
  %v777 = vld [vmem:[%s4] sm:$0x7]
  %v779 = vlaneseq
  %v780 = vshrl.u32 %v779, 7
  %v781 = vsub.s32 0, %v780
  %v782 = vrot.slane %v777, %v781
  %v783 = vlaneseq
  %v784 = vshrl.u32 %v783, 7
  %v785 = vsub.s32 1, %v784
  %v786 = vrot.slane %v777, %v785
  %v787 = vlaneseq
  %v788 = vshrl.u32 %v787, 7
  %v789 = vsub.s32 2, %v788
  %v790 = vrot.slane %v777, %v789
  %v826 = vunpack.c.l.b16 %v745
  %v827 = vunpack.c.h.b16 %v745
  %v828 = vunpack.c.l.b16 %v746
  %v829 = vunpack.c.l.b16 %v747
  %v830 = vunpack.c.h.b16 %v747
  %v831 = vunpack.c.l.b16 %v748
  %v832 = vunpack.c.l.b16 %v749
  %v833 = vunpack.c.h.b16 %v749
  %v834 = vunpack.c.l.b16 %v750
  %v835 = vunpack.c.l.b16 %v751
  %v836 = vunpack.c.h.b16 %v751
  %v837 = vunpack.c.l.b16 %v752
  %v838 = vunpack.c.l.b16 %v753
  %v839 = vunpack.c.h.b16 %v753
  %v840 = vunpack.c.l.b16 %v754
  %v841 = vunpack.c.l.b16 %v755
  %v842 = vunpack.c.h.b16 %v755
  %v843 = vunpack.c.l.b16 %v756
  %v844 = vunpack.c.l.b16 %v757
  %v845 = vunpack.c.h.b16 %v757
  %v846 = vunpack.c.l.b16 %v758
  %v847 = vunpack.c.l.b16 %v759
  %v848 = vunpack.c.h.b16 %v759
  %v849 = vunpack.c.l.b16 %v760
  %v850 = vunpack.c.l.b16 %v761
  %v851 = vunpack.c.h.b16 %v761
  %v852 = vunpack.c.l.b16 %v762
  %v853 = vunpack.c.l.b16 %v763
  %v854 = vunpack.c.h.b16 %v763
  %v855 = vunpack.c.l.b16 %v764
  %v856 = vunpack.c.l.b16 %v765
  %v857 = vunpack.c.h.b16 %v765
  %v858 = vunpack.c.l.b16 %v766
  %v859 = vunpack.c.l.b16 %v767
  %v860 = vunpack.c.h.b16 %v767
  %v861 = vunpack.c.l.b16 %v768
  %v862 = vunpack.c.l.b16 %v769
  %v863 = vunpack.c.h.b16 %v769
  %v864 = vunpack.c.l.b16 %v770
  %v865 = vunpack.c.l.b16 %v771
  %v866 = vunpack.c.h.b16 %v771
  %v867 = vunpack.c.l.b16 %v772
  %v868 = vunpack.c.l.b16 %v773
  %v869 = vunpack.c.h.b16 %v773
  %v870 = vunpack.c.l.b16 %v774
  %v871 = vunpack.c.l.b16 %v775
  %v872 = vunpack.c.h.b16 %v775
  %v873 = vunpack.c.l.b16 %v776
  %v874 = vpack.c.b16 %v829, %v826
  %v875 = vpack.c.b16 %v830, %v827
  %v876 = vpack.c.b16 %v831, %v828
  %v877 = vpack.c.b16 %v835, %v832
  %v878 = vpack.c.b16 %v836, %v833
  %v879 = vpack.c.b16 %v837, %v834
  %v880 = vpack.c.b16 %v841, %v838
  %v881 = vpack.c.b16 %v842, %v839
  %v882 = vpack.c.b16 %v843, %v840
  %v883 = vpack.c.b16 %v847, %v844
  %v884 = vpack.c.b16 %v848, %v845
  %v885 = vpack.c.b16 %v849, %v846
  %v886 = vpack.c.b16 %v853, %v850
  %v887 = vpack.c.b16 %v854, %v851
  %v888 = vpack.c.b16 %v855, %v852
  %v889 = vpack.c.b16 %v859, %v856
  %v890 = vpack.c.b16 %v860, %v857
  %v891 = vpack.c.b16 %v861, %v858
  %v892 = vpack.c.b16 %v865, %v862
  %v893 = vpack.c.b16 %v866, %v863
  %v894 = vpack.c.b16 %v867, %v864
  %v895 = vpack.c.b16 %v871, %v868
  %v896 = vpack.c.b16 %v872, %v869
  %v897 = vpack.c.b16 %v873, %v870
  %922 = vmatprep.subr.bf16.mxu0 %v875
  %923 = vmatpush1.bf16.msra.mxu0 %v874
  %924 = vmatprep.subr.bf16.mxu0 %v878
  %925 = vmatpush1.bf16.msra.mxu0 %v877
  %926 = vmatprep.subr.bf16.mxu0 %v881
  %927 = vmatpush1.bf16.msra.mxu0 %v880
  %928 = vmatprep.subr.bf16.mxu0 %v884
  %929 = vmatpush1.bf16.msra.mxu0 %v883
  %930 = vmatprep.subr.bf16.mxu0 %v887
  %931 = vmatpush1.bf16.msra.mxu0 %v886
  %932 = vmatprep.subr.bf16.mxu0 %v890
  %933 = vmatpush1.bf16.msra.mxu0 %v889
  %934 = vmatprep.subr.bf16.mxu0 %v893
  %935 = vmatpush1.bf16.msra.mxu0 %v892
  %936 = vmatprep.subr.bf16.mxu0 %v896
  %937 = vmatpush1.bf16.msra.mxu0 %v895
  %938 = vmatprep.subr.bf16.mxu0 0
  %939 = vmatpush1.bf16.msra.mxu0 0
  %940 = vmatprep.subr.bf16.mxu0 0
  %941 = vmatpush1.bf16.msra.mxu0 0
  %942 = vmatprep.subr.bf16.mxu0 0
  %943 = vmatpush1.bf16.msra.mxu0 0
  %944 = vmatprep.subr.bf16.mxu0 0
  %945 = vmatpush1.bf16.msra.mxu0 0
  %946 = vmatprep.subr.bf16.mxu0 0
  %947 = vmatpush1.bf16.msra.mxu0 0
  %948 = vmatprep.subr.bf16.mxu0 0
  %949 = vmatpush1.bf16.msra.mxu0 0
  %950 = vmatprep.subr.bf16.mxu0 0
  %951 = vmatpush1.bf16.msra.mxu0 0
  %952 = vmatprep.subr.bf16.mxu0 0
  %953 = vmatpush1.bf16.msra.mxu0 0
  %954 = vmatprep.mubr.bf16.mxu0 0
  %955 = vmatmul.mubr.bf16.gmra.mrb[0].mxu0 %v744
  %v956 = vpop.f32.mrb[0].mxu0
  %v957 = vadd.f32 %v782, %v956
  %v958 = vpop.f32.mrb[0].mxu0
  %v959 = vadd.f32 %v786, %v958
  %v960 = vpop.f32.mrb[0].mxu0
  %v961 = vpop.f32.mrb[0].mxu0
  %962 = vdwg.mxu0
  %963 = vmatprep.subr.bf16.mxu0 0
  %964 = vmatpush1.bf16.msra.mxu0 %v876
  %965 = vmatprep.subr.bf16.mxu0 0
  %966 = vmatpush1.bf16.msra.mxu0 %v879
  %967 = vmatprep.subr.bf16.mxu0 0
  %968 = vmatpush1.bf16.msra.mxu0 %v882
  %969 = vmatprep.subr.bf16.mxu0 0
  %970 = vmatpush1.bf16.msra.mxu0 %v885
  %971 = vmatprep.subr.bf16.mxu0 0
  %972 = vmatpush1.bf16.msra.mxu0 %v888
  %973 = vmatprep.subr.bf16.mxu0 0
  %974 = vmatpush1.bf16.msra.mxu0 %v891
  %975 = vmatprep.subr.bf16.mxu0 0
  %976 = vmatpush1.bf16.msra.mxu0 %v894
  %977 = vmatprep.subr.bf16.mxu0 0
  %978 = vmatpush1.bf16.msra.mxu0 %v897
  %979 = vmatprep.subr.bf16.mxu0 0
  %980 = vmatpush1.bf16.msra.mxu0 0
  %981 = vmatprep.subr.bf16.mxu0 0
  %982 = vmatpush1.bf16.msra.mxu0 0
  %983 = vmatprep.subr.bf16.mxu0 0
  %984 = vmatpush1.bf16.msra.mxu0 0
  %985 = vmatprep.subr.bf16.mxu0 0
  %986 = vmatpush1.bf16.msra.mxu0 0
  %987 = vmatprep.subr.bf16.mxu0 0
  %988 = vmatpush1.bf16.msra.mxu0 0
  %989 = vmatprep.subr.bf16.mxu0 0
  %990 = vmatpush1.bf16.msra.mxu0 0
  %991 = vmatprep.subr.bf16.mxu0 0
  %992 = vmatpush1.bf16.msra.mxu0 0
  %993 = vmatprep.subr.bf16.mxu0 0
  %994 = vmatpush1.bf16.msra.mxu0 0
  %995 = vmatprep.mubr.bf16.mxu0 0
  %996 = vmatmul.mubr.bf16.gmra.mrb[0].mxu0 %v744
  %v997 = vpop.f32.mrb[0].mxu0
  %v998 = vadd.f32 %v790, %v997
  %v999 = vpop.f32.mrb[0].mxu0
  %v1000 = vpop.f32.mrb[0].mxu0
  %v1001 = vpop.f32.mrb[0].mxu0
  %1002 = vdwg.mxu0
  %v1003 = vadd.f32 %v741, %v957
  %v1004 = vxor.u32 %v1003, 2147483648
  %v1005 = vmul.f32 %v1004, 1.442695
  %v1006 = vpow.pop %v1005
  %v1007 = vadd.f32 %v1006, 1.0
  %v1008 = vrcp.pop %v1007
  %v1009 = vmul.f32 1.0, %v1008
  %v1010 = vadd.f32 %v742, %v959
  %v1011 = vxor.u32 %v1010, 2147483648
  %v1012 = vmul.f32 %v1011, 1.442695
  %v1013 = vpow.pop %v1012
  %v1014 = vadd.f32 %v1013, 1.0
  %v1015 = vrcp.pop %v1014
  %v1016 = vmul.f32 1.0, %v1015
  %v1017 = vmul.f32 %v1009, %v998
  %v1018 = vadd.f32 %v743, %v1017
  %v1019 = vtanh.pop %v1018
  %v1020 = vsub.f32 1.0, %v1016
  %v1021 = vmul.f32 %v1020, %v1019
  %v1022 = vmul.f32 %v1016, %v673
  %v1023 = vadd.f32 %v1021, %v1022
  %v1025 = vcombine.high %v1023, %v1023
  %v1027 = vunpack.c.l.s4 1966171168
  %v1028 = vunpack.c.0.s8 %v1027
  %v1029 = vlaneseq
  %v1030 = vshrl.u32 %v1029, 7
  %v1031 = vsub.s32 %v1028, %v1030
  %v1032 = vrot.slane %v1023, %v1031
  %v1034 = vunpack.c.l.s4 1966171168
  %v1035 = vunpack.c.0.s8 %v1034
  %v1036 = vlaneseq
  %v1037 = vshrl.u32 %v1036, 7
  %v1038 = vsub.s32 %v1035, %v1037
  %v1039 = vrot.slane %v1025, %v1038
  %v1040 = vcombine.high %v1032, %v1032
  %v1041 = vcombine.high %v1039, %v1039
  %v1043 = vunpack.c.l.s4 1966171168
  %v1044 = vunpack.c.0.s8 %v1043
  %v1045 = vlaneseq
  %v1046 = vshrl.u32 %v1045, 7
  %v1047 = vsub.s32 %v1044, %v1046
  %v1048 = vrot.slane %v1032, %v1047
  %v1050 = vunpack.c.l.s4 1966171168
  %v1051 = vunpack.c.0.s8 %v1050
  %v1052 = vlaneseq
  %v1053 = vshrl.u32 %v1052, 7
  %v1054 = vsub.s32 %v1051, %v1053
  %v1055 = vrot.slane %v1039, %v1054
  %v1057 = vunpack.c.l.s4 1966171168
  %v1058 = vunpack.c.0.s8 %v1057
  %v1059 = vlaneseq
  %v1060 = vshrl.u32 %v1059, 7
  %v1061 = vsub.s32 %v1058, %v1060
  %v1062 = vrot.slane %v1040, %v1061
  %v1064 = vunpack.c.l.s4 1966171168
  %v1065 = vunpack.c.0.s8 %v1064
  %v1066 = vlaneseq
  %v1067 = vshrl.u32 %v1066, 7
  %v1068 = vsub.s32 %v1065, %v1067
  %v1069 = vrot.slane %v1041, %v1068
  %v1070 = vcombine.high %v1048, %v1048
  %v1071 = vcombine.high %v1055, %v1055
  %v1072 = vcombine.high %v1062, %v1062
  %v1073 = vcombine.high %v1069, %v1069
  %1082 = vst [vmem:[#allocation3 + $0x1] sm:$0x1] %v1048
  %1083 = vst [vmem:[#allocation3 + $0x9] sm:$0x1] %v1062
  %1084 = vst [vmem:[#allocation3 + $0x11] sm:$0x1] %v1070
  %1085 = vst [vmem:[#allocation3 + $0x19] sm:$0x1] %v1072
  %1086 = vst [vmem:[#allocation3 + $0x21] sm:$0x1] %v1055
  %1087 = vst [vmem:[#allocation3 + $0x29] sm:$0x1] %v1069
  %1088 = vst [vmem:[#allocation3 + $0x31] sm:$0x1] %v1071
  %1089 = vst [vmem:[#allocation3 + $0x39] sm:$0x1] %v1073
  %s1090 = scalar_lea.vmem [#allocation2], 48
  %v1091 = vld [vmem:[%s1090] sm:$0xff]
  %v1092 = vld [vmem:[%s1090 + $0x8] sm:$0xff]
  %v1093 = vld [vmem:[%s1090 + $0x10] sm:$0xff]
  %v1094 = vpack.c.bf16 %v1023, %v1023
  %v1095 = vld [vmem:[%s2] sm:$0xff]
  %v1096 = vld [vmem:[%s2 + $0x8] sm:$0xf]
  %v1097 = vld [vmem:[%s2 + $0xc] sm:$0xff]
  %v1098 = vld [vmem:[%s2 + $0x14] sm:$0xf]
  %v1099 = vld [vmem:[%s2 + $0x18] sm:$0xff]
  %v1100 = vld [vmem:[%s2 + $0x20] sm:$0xf]
  %v1101 = vld [vmem:[%s2 + $0x24] sm:$0xff]
  %v1102 = vld [vmem:[%s2 + $0x2c] sm:$0xf]
  %v1103 = vld [vmem:[%s2 + $0x30] sm:$0xff]
  %v1104 = vld [vmem:[%s2 + $0x38] sm:$0xf]
  %v1105 = vld [vmem:[%s2 + $0x3c] sm:$0xff]
  %v1106 = vld [vmem:[%s2 + $0x44] sm:$0xf]
  %v1107 = vld [vmem:[%s2 + $0x48] sm:$0xff]
  %v1108 = vld [vmem:[%s2 + $0x50] sm:$0xf]
  %v1109 = vld [vmem:[%s2 + $0x54] sm:$0xff]
  %v1110 = vld [vmem:[%s2 + $0x5c] sm:$0xf]
  %v1111 = vld [vmem:[%s2 + $0x60] sm:$0xff]
  %v1112 = vld [vmem:[%s2 + $0x68] sm:$0xf]
  %v1113 = vld [vmem:[%s2 + $0x6c] sm:$0xff]
  %v1114 = vld [vmem:[%s2 + $0x74] sm:$0xf]
  %v1115 = vld [vmem:[%s2 + $0x78] sm:$0xff]
  %v1116 = vld [vmem:[%s2 + $0x80] sm:$0xf]
  %v1117 = vld [vmem:[%s2 + $0x84] sm:$0xff]
  %v1118 = vld [vmem:[%s2 + $0x8c] sm:$0xf]
  %v1119 = vld [vmem:[%s2 + $0x90] sm:$0xff]
  %v1120 = vld [vmem:[%s2 + $0x98] sm:$0xf]
  %v1121 = vld [vmem:[%s2 + $0x9c] sm:$0xff]
  %v1122 = vld [vmem:[%s2 + $0xa4] sm:$0xf]
  %v1123 = vld [vmem:[%s2 + $0xa8] sm:$0xff]
  %v1124 = vld [vmem:[%s2 + $0xb0] sm:$0xf]
  %v1125 = vld [vmem:[%s2 + $0xb4] sm:$0xff]
  %v1126 = vld [vmem:[%s2 + $0xbc] sm:$0xf]
  %v1127 = vld [vmem:[%s4] sm:$0x7]
  %v1129 = vlaneseq
  %v1130 = vshrl.u32 %v1129, 7
  %v1131 = vsub.s32 0, %v1130
  %v1132 = vrot.slane %v1127, %v1131
  %v1133 = vlaneseq
  %v1134 = vshrl.u32 %v1133, 7
  %v1135 = vsub.s32 1, %v1134
  %v1136 = vrot.slane %v1127, %v1135
  %v1137 = vlaneseq
  %v1138 = vshrl.u32 %v1137, 7
  %v1139 = vsub.s32 2, %v1138
  %v1140 = vrot.slane %v1127, %v1139
  %v1176 = vunpack.c.l.b16 %v1095
  %v1177 = vunpack.c.h.b16 %v1095
  %v1178 = vunpack.c.l.b16 %v1096
  %v1179 = vunpack.c.l.b16 %v1097
  %v1180 = vunpack.c.h.b16 %v1097
  %v1181 = vunpack.c.l.b16 %v1098
  %v1182 = vunpack.c.l.b16 %v1099
  %v1183 = vunpack.c.h.b16 %v1099
  %v1184 = vunpack.c.l.b16 %v1100
  %v1185 = vunpack.c.l.b16 %v1101
  %v1186 = vunpack.c.h.b16 %v1101
  %v1187 = vunpack.c.l.b16 %v1102
  %v1188 = vunpack.c.l.b16 %v1103
  %v1189 = vunpack.c.h.b16 %v1103
  %v1190 = vunpack.c.l.b16 %v1104
  %v1191 = vunpack.c.l.b16 %v1105
  %v1192 = vunpack.c.h.b16 %v1105
  %v1193 = vunpack.c.l.b16 %v1106
  %v1194 = vunpack.c.l.b16 %v1107
  %v1195 = vunpack.c.h.b16 %v1107
  %v1196 = vunpack.c.l.b16 %v1108
  %v1197 = vunpack.c.l.b16 %v1109
  %v1198 = vunpack.c.h.b16 %v1109
  %v1199 = vunpack.c.l.b16 %v1110
  %v1200 = vunpack.c.l.b16 %v1111
  %v1201 = vunpack.c.h.b16 %v1111
  %v1202 = vunpack.c.l.b16 %v1112
  %v1203 = vunpack.c.l.b16 %v1113
  %v1204 = vunpack.c.h.b16 %v1113
  %v1205 = vunpack.c.l.b16 %v1114
  %v1206 = vunpack.c.l.b16 %v1115
  %v1207 = vunpack.c.h.b16 %v1115
  %v1208 = vunpack.c.l.b16 %v1116
  %v1209 = vunpack.c.l.b16 %v1117
  %v1210 = vunpack.c.h.b16 %v1117
  %v1211 = vunpack.c.l.b16 %v1118
  %v1212 = vunpack.c.l.b16 %v1119
  %v1213 = vunpack.c.h.b16 %v1119
  %v1214 = vunpack.c.l.b16 %v1120
  %v1215 = vunpack.c.l.b16 %v1121
  %v1216 = vunpack.c.h.b16 %v1121
  %v1217 = vunpack.c.l.b16 %v1122
  %v1218 = vunpack.c.l.b16 %v1123
  %v1219 = vunpack.c.h.b16 %v1123
  %v1220 = vunpack.c.l.b16 %v1124
  %v1221 = vunpack.c.l.b16 %v1125
  %v1222 = vunpack.c.h.b16 %v1125
  %v1223 = vunpack.c.l.b16 %v1126
  %v1224 = vpack.c.b16 %v1179, %v1176
  %v1225 = vpack.c.b16 %v1180, %v1177
  %v1226 = vpack.c.b16 %v1181, %v1178
  %v1227 = vpack.c.b16 %v1185, %v1182
  %v1228 = vpack.c.b16 %v1186, %v1183
  %v1229 = vpack.c.b16 %v1187, %v1184
  %v1230 = vpack.c.b16 %v1191, %v1188
  %v1231 = vpack.c.b16 %v1192, %v1189
  %v1232 = vpack.c.b16 %v1193, %v1190
  %v1233 = vpack.c.b16 %v1197, %v1194
  %v1234 = vpack.c.b16 %v1198, %v1195
  %v1235 = vpack.c.b16 %v1199, %v1196
  %v1236 = vpack.c.b16 %v1203, %v1200
  %v1237 = vpack.c.b16 %v1204, %v1201
  %v1238 = vpack.c.b16 %v1205, %v1202
  %v1239 = vpack.c.b16 %v1209, %v1206
  %v1240 = vpack.c.b16 %v1210, %v1207
  %v1241 = vpack.c.b16 %v1211, %v1208
  %v1242 = vpack.c.b16 %v1215, %v1212
  %v1243 = vpack.c.b16 %v1216, %v1213
  %v1244 = vpack.c.b16 %v1217, %v1214
  %v1245 = vpack.c.b16 %v1221, %v1218
  %v1246 = vpack.c.b16 %v1222, %v1219
  %v1247 = vpack.c.b16 %v1223, %v1220
  %1272 = vmatprep.subr.bf16.mxu0 %v1225
  %1273 = vmatpush1.bf16.msra.mxu0 %v1224
  %1274 = vmatprep.subr.bf16.mxu0 %v1228
  %1275 = vmatpush1.bf16.msra.mxu0 %v1227
  %1276 = vmatprep.subr.bf16.mxu0 %v1231
  %1277 = vmatpush1.bf16.msra.mxu0 %v1230
  %1278 = vmatprep.subr.bf16.mxu0 %v1234
  %1279 = vmatpush1.bf16.msra.mxu0 %v1233
  %1280 = vmatprep.subr.bf16.mxu0 %v1237
  %1281 = vmatpush1.bf16.msra.mxu0 %v1236
  %1282 = vmatprep.subr.bf16.mxu0 %v1240
  %1283 = vmatpush1.bf16.msra.mxu0 %v1239
  %1284 = vmatprep.subr.bf16.mxu0 %v1243
  %1285 = vmatpush1.bf16.msra.mxu0 %v1242
  %1286 = vmatprep.subr.bf16.mxu0 %v1246
  %1287 = vmatpush1.bf16.msra.mxu0 %v1245
  %1288 = vmatprep.subr.bf16.mxu0 0
  %1289 = vmatpush1.bf16.msra.mxu0 0
  %1290 = vmatprep.subr.bf16.mxu0 0
  %1291 = vmatpush1.bf16.msra.mxu0 0
  %1292 = vmatprep.subr.bf16.mxu0 0
  %1293 = vmatpush1.bf16.msra.mxu0 0
  %1294 = vmatprep.subr.bf16.mxu0 0
  %1295 = vmatpush1.bf16.msra.mxu0 0
  %1296 = vmatprep.subr.bf16.mxu0 0
  %1297 = vmatpush1.bf16.msra.mxu0 0
  %1298 = vmatprep.subr.bf16.mxu0 0
  %1299 = vmatpush1.bf16.msra.mxu0 0
  %1300 = vmatprep.subr.bf16.mxu0 0
  %1301 = vmatpush1.bf16.msra.mxu0 0
  %1302 = vmatprep.subr.bf16.mxu0 0
  %1303 = vmatpush1.bf16.msra.mxu0 0
  %1304 = vmatprep.mubr.bf16.mxu0 0
  %1305 = vmatmul.mubr.bf16.gmra.mrb[0].mxu0 %v1094
  %v1306 = vpop.f32.mrb[0].mxu0
  %v1307 = vadd.f32 %v1132, %v1306
  %v1308 = vpop.f32.mrb[0].mxu0
  %v1309 = vadd.f32 %v1136, %v1308
  %v1310 = vpop.f32.mrb[0].mxu0
  %v1311 = vpop.f32.mrb[0].mxu0
  %1312 = vdwg.mxu0
  %1313 = vmatprep.subr.bf16.mxu0 0
  %1314 = vmatpush1.bf16.msra.mxu0 %v1226
  %1315 = vmatprep.subr.bf16.mxu0 0
  %1316 = vmatpush1.bf16.msra.mxu0 %v1229
  %1317 = vmatprep.subr.bf16.mxu0 0
  %1318 = vmatpush1.bf16.msra.mxu0 %v1232
  %1319 = vmatprep.subr.bf16.mxu0 0
  %1320 = vmatpush1.bf16.msra.mxu0 %v1235
  %1321 = vmatprep.subr.bf16.mxu0 0
  %1322 = vmatpush1.bf16.msra.mxu0 %v1238
  %1323 = vmatprep.subr.bf16.mxu0 0
  %1324 = vmatpush1.bf16.msra.mxu0 %v1241
  %1325 = vmatprep.subr.bf16.mxu0 0
  %1326 = vmatpush1.bf16.msra.mxu0 %v1244
  %1327 = vmatprep.subr.bf16.mxu0 0
  %1328 = vmatpush1.bf16.msra.mxu0 %v1247
  %1329 = vmatprep.subr.bf16.mxu0 0
  %1330 = vmatpush1.bf16.msra.mxu0 0
  %1331 = vmatprep.subr.bf16.mxu0 0
  %1332 = vmatpush1.bf16.msra.mxu0 0
  %1333 = vmatprep.subr.bf16.mxu0 0
  %1334 = vmatpush1.bf16.msra.mxu0 0
  %1335 = vmatprep.subr.bf16.mxu0 0
  %1336 = vmatpush1.bf16.msra.mxu0 0
  %1337 = vmatprep.subr.bf16.mxu0 0
  %1338 = vmatpush1.bf16.msra.mxu0 0
  %1339 = vmatprep.subr.bf16.mxu0 0
  %1340 = vmatpush1.bf16.msra.mxu0 0
  %1341 = vmatprep.subr.bf16.mxu0 0
  %1342 = vmatpush1.bf16.msra.mxu0 0
  %1343 = vmatprep.subr.bf16.mxu0 0
  %1344 = vmatpush1.bf16.msra.mxu0 0
  %1345 = vmatprep.mubr.bf16.mxu0 0
  %1346 = vmatmul.mubr.bf16.gmra.mrb[0].mxu0 %v1094
  %v1347 = vpop.f32.mrb[0].mxu0
  %v1348 = vadd.f32 %v1140, %v1347
  %v1349 = vpop.f32.mrb[0].mxu0
  %v1350 = vpop.f32.mrb[0].mxu0
  %v1351 = vpop.f32.mrb[0].mxu0
  %1352 = vdwg.mxu0
  %v1353 = vadd.f32 %v1091, %v1307
  %v1354 = vxor.u32 %v1353, 2147483648
  %v1355 = vmul.f32 %v1354, 1.442695
  %v1356 = vpow.pop %v1355
  %v1357 = vadd.f32 %v1356, 1.0
  %v1358 = vrcp.pop %v1357
  %v1359 = vmul.f32 1.0, %v1358
  %v1360 = vadd.f32 %v1092, %v1309
  %v1361 = vxor.u32 %v1360, 2147483648
  %v1362 = vmul.f32 %v1361, 1.442695
  %v1363 = vpow.pop %v1362
  %v1364 = vadd.f32 %v1363, 1.0
  %v1365 = vrcp.pop %v1364
  %v1366 = vmul.f32 1.0, %v1365
  %v1367 = vmul.f32 %v1359, %v1348
  %v1368 = vadd.f32 %v1093, %v1367
  %v1369 = vtanh.pop %v1368
  %v1370 = vsub.f32 1.0, %v1366
  %v1371 = vmul.f32 %v1370, %v1369
  %v1372 = vmul.f32 %v1366, %v1023
  %v1373 = vadd.f32 %v1371, %v1372
  %v1375 = vcombine.high %v1373, %v1373
  %v1377 = vunpack.c.l.s4 1966171168
  %v1378 = vunpack.c.0.s8 %v1377
  %v1379 = vlaneseq
  %v1380 = vshrl.u32 %v1379, 7
  %v1381 = vsub.s32 %v1378, %v1380
  %v1382 = vrot.slane %v1373, %v1381
  %v1384 = vunpack.c.l.s4 1966171168
  %v1385 = vunpack.c.0.s8 %v1384
  %v1386 = vlaneseq
  %v1387 = vshrl.u32 %v1386, 7
  %v1388 = vsub.s32 %v1385, %v1387
  %v1389 = vrot.slane %v1375, %v1388
  %v1390 = vcombine.high %v1382, %v1382
  %v1391 = vcombine.high %v1389, %v1389
  %v1393 = vunpack.c.l.s4 1966171168
  %v1394 = vunpack.c.0.s8 %v1393
  %v1395 = vlaneseq
  %v1396 = vshrl.u32 %v1395, 7
  %v1397 = vsub.s32 %v1394, %v1396
  %v1398 = vrot.slane %v1382, %v1397
  %v1400 = vunpack.c.l.s4 1966171168
  %v1401 = vunpack.c.0.s8 %v1400
  %v1402 = vlaneseq
  %v1403 = vshrl.u32 %v1402, 7
  %v1404 = vsub.s32 %v1401, %v1403
  %v1405 = vrot.slane %v1389, %v1404
  %v1407 = vunpack.c.l.s4 1966171168
  %v1408 = vunpack.c.0.s8 %v1407
  %v1409 = vlaneseq
  %v1410 = vshrl.u32 %v1409, 7
  %v1411 = vsub.s32 %v1408, %v1410
  %v1412 = vrot.slane %v1390, %v1411
  %v1414 = vunpack.c.l.s4 1966171168
  %v1415 = vunpack.c.0.s8 %v1414
  %v1416 = vlaneseq
  %v1417 = vshrl.u32 %v1416, 7
  %v1418 = vsub.s32 %v1415, %v1417
  %v1419 = vrot.slane %v1391, %v1418
  %v1420 = vcombine.high %v1398, %v1398
  %v1421 = vcombine.high %v1405, %v1405
  %v1422 = vcombine.high %v1412, %v1412
  %v1423 = vcombine.high %v1419, %v1419
  %1432 = vst [vmem:[#allocation3 + $0x2] sm:$0x1] %v1398
  %1433 = vst [vmem:[#allocation3 + $0xa] sm:$0x1] %v1412
  %1434 = vst [vmem:[#allocation3 + $0x12] sm:$0x1] %v1420
  %1435 = vst [vmem:[#allocation3 + $0x1a] sm:$0x1] %v1422
  %1436 = vst [vmem:[#allocation3 + $0x22] sm:$0x1] %v1405
  %1437 = vst [vmem:[#allocation3 + $0x2a] sm:$0x1] %v1419
  %1438 = vst [vmem:[#allocation3 + $0x32] sm:$0x1] %v1421
  %1439 = vst [vmem:[#allocation3 + $0x3a] sm:$0x1] %v1423
  %s1440 = scalar_lea.vmem [#allocation2], 72
  %v1441 = vld [vmem:[%s1440] sm:$0xff]
  %v1442 = vld [vmem:[%s1440 + $0x8] sm:$0xff]
  %v1443 = vld [vmem:[%s1440 + $0x10] sm:$0xff]
  %v1444 = vpack.c.bf16 %v1373, %v1373
  %v1445 = vld [vmem:[%s2] sm:$0xff]
  %v1446 = vld [vmem:[%s2 + $0x8] sm:$0xf]
  %v1447 = vld [vmem:[%s2 + $0xc] sm:$0xff]
  %v1448 = vld [vmem:[%s2 + $0x14] sm:$0xf]
  %v1449 = vld [vmem:[%s2 + $0x18] sm:$0xff]
  %v1450 = vld [vmem:[%s2 + $0x20] sm:$0xf]
  %v1451 = vld [vmem:[%s2 + $0x24] sm:$0xff]
  %v1452 = vld [vmem:[%s2 + $0x2c] sm:$0xf]
  %v1453 = vld [vmem:[%s2 + $0x30] sm:$0xff]
  %v1454 = vld [vmem:[%s2 + $0x38] sm:$0xf]
  %v1455 = vld [vmem:[%s2 + $0x3c] sm:$0xff]
  %v1456 = vld [vmem:[%s2 + $0x44] sm:$0xf]
  %v1457 = vld [vmem:[%s2 + $0x48] sm:$0xff]
  %v1458 = vld [vmem:[%s2 + $0x50] sm:$0xf]
  %v1459 = vld [vmem:[%s2 + $0x54] sm:$0xff]
  %v1460 = vld [vmem:[%s2 + $0x5c] sm:$0xf]
  %v1461 = vld [vmem:[%s2 + $0x60] sm:$0xff]
  %v1462 = vld [vmem:[%s2 + $0x68] sm:$0xf]
  %v1463 = vld [vmem:[%s2 + $0x6c] sm:$0xff]
  %v1464 = vld [vmem:[%s2 + $0x74] sm:$0xf]
  %v1465 = vld [vmem:[%s2 + $0x78] sm:$0xff]
  %v1466 = vld [vmem:[%s2 + $0x80] sm:$0xf]
  %v1467 = vld [vmem:[%s2 + $0x84] sm:$0xff]
  %v1468 = vld [vmem:[%s2 + $0x8c] sm:$0xf]
  %v1469 = vld [vmem:[%s2 + $0x90] sm:$0xff]
  %v1470 = vld [vmem:[%s2 + $0x98] sm:$0xf]
  %v1471 = vld [vmem:[%s2 + $0x9c] sm:$0xff]
  %v1472 = vld [vmem:[%s2 + $0xa4] sm:$0xf]
  %v1473 = vld [vmem:[%s2 + $0xa8] sm:$0xff]
  %v1474 = vld [vmem:[%s2 + $0xb0] sm:$0xf]
  %v1475 = vld [vmem:[%s2 + $0xb4] sm:$0xff]
  %v1476 = vld [vmem:[%s2 + $0xbc] sm:$0xf]
  %v1477 = vld [vmem:[%s4] sm:$0x7]
  %v1479 = vlaneseq
  %v1480 = vshrl.u32 %v1479, 7
  %v1481 = vsub.s32 0, %v1480
  %v1482 = vrot.slane %v1477, %v1481
  %v1483 = vlaneseq
  %v1484 = vshrl.u32 %v1483, 7
  %v1485 = vsub.s32 1, %v1484
  %v1486 = vrot.slane %v1477, %v1485
  %v1487 = vlaneseq
  %v1488 = vshrl.u32 %v1487, 7
  %v1489 = vsub.s32 2, %v1488
  %v1490 = vrot.slane %v1477, %v1489
  %v1526 = vunpack.c.l.b16 %v1445
  %v1527 = vunpack.c.h.b16 %v1445
  %v1528 = vunpack.c.l.b16 %v1446
  %v1529 = vunpack.c.l.b16 %v1447
  %v1530 = vunpack.c.h.b16 %v1447
  %v1531 = vunpack.c.l.b16 %v1448
  %v1532 = vunpack.c.l.b16 %v1449
  %v1533 = vunpack.c.h.b16 %v1449
  %v1534 = vunpack.c.l.b16 %v1450
  %v1535 = vunpack.c.l.b16 %v1451
  %v1536 = vunpack.c.h.b16 %v1451
  %v1537 = vunpack.c.l.b16 %v1452
  %v1538 = vunpack.c.l.b16 %v1453
  %v1539 = vunpack.c.h.b16 %v1453
  %v1540 = vunpack.c.l.b16 %v1454
  %v1541 = vunpack.c.l.b16 %v1455
  %v1542 = vunpack.c.h.b16 %v1455
  %v1543 = vunpack.c.l.b16 %v1456
  %v1544 = vunpack.c.l.b16 %v1457
  %v1545 = vunpack.c.h.b16 %v1457
  %v1546 = vunpack.c.l.b16 %v1458
  %v1547 = vunpack.c.l.b16 %v1459
  %v1548 = vunpack.c.h.b16 %v1459
  %v1549 = vunpack.c.l.b16 %v1460
  %v1550 = vunpack.c.l.b16 %v1461
  %v1551 = vunpack.c.h.b16 %v1461
  %v1552 = vunpack.c.l.b16 %v1462
  %v1553 = vunpack.c.l.b16 %v1463
  %v1554 = vunpack.c.h.b16 %v1463
  %v1555 = vunpack.c.l.b16 %v1464
  %v1556 = vunpack.c.l.b16 %v1465
  %v1557 = vunpack.c.h.b16 %v1465
  %v1558 = vunpack.c.l.b16 %v1466
  %v1559 = vunpack.c.l.b16 %v1467
  %v1560 = vunpack.c.h.b16 %v1467
  %v1561 = vunpack.c.l.b16 %v1468
  %v1562 = vunpack.c.l.b16 %v1469
  %v1563 = vunpack.c.h.b16 %v1469
  %v1564 = vunpack.c.l.b16 %v1470
  %v1565 = vunpack.c.l.b16 %v1471
  %v1566 = vunpack.c.h.b16 %v1471
  %v1567 = vunpack.c.l.b16 %v1472
  %v1568 = vunpack.c.l.b16 %v1473
  %v1569 = vunpack.c.h.b16 %v1473
  %v1570 = vunpack.c.l.b16 %v1474
  %v1571 = vunpack.c.l.b16 %v1475
  %v1572 = vunpack.c.h.b16 %v1475
  %v1573 = vunpack.c.l.b16 %v1476
  %v1574 = vpack.c.b16 %v1529, %v1526
  %v1575 = vpack.c.b16 %v1530, %v1527
  %v1576 = vpack.c.b16 %v1531, %v1528
  %v1577 = vpack.c.b16 %v1535, %v1532
  %v1578 = vpack.c.b16 %v1536, %v1533
  %v1579 = vpack.c.b16 %v1537, %v1534
  %v1580 = vpack.c.b16 %v1541, %v1538
  %v1581 = vpack.c.b16 %v1542, %v1539
  %v1582 = vpack.c.b16 %v1543, %v1540
  %v1583 = vpack.c.b16 %v1547, %v1544
  %v1584 = vpack.c.b16 %v1548, %v1545
  %v1585 = vpack.c.b16 %v1549, %v1546
  %v1586 = vpack.c.b16 %v1553, %v1550
  %v1587 = vpack.c.b16 %v1554, %v1551
  %v1588 = vpack.c.b16 %v1555, %v1552
  %v1589 = vpack.c.b16 %v1559, %v1556
  %v1590 = vpack.c.b16 %v1560, %v1557
  %v1591 = vpack.c.b16 %v1561, %v1558
  %v1592 = vpack.c.b16 %v1565, %v1562
  %v1593 = vpack.c.b16 %v1566, %v1563
  %v1594 = vpack.c.b16 %v1567, %v1564
  %v1595 = vpack.c.b16 %v1571, %v1568
  %v1596 = vpack.c.b16 %v1572, %v1569
  %v1597 = vpack.c.b16 %v1573, %v1570
  %1622 = vmatprep.subr.bf16.mxu0 %v1575
  %1623 = vmatpush1.bf16.msra.mxu0 %v1574
  %1624 = vmatprep.subr.bf16.mxu0 %v1578
  %1625 = vmatpush1.bf16.msra.mxu0 %v1577
  %1626 = vmatprep.subr.bf16.mxu0 %v1581
  %1627 = vmatpush1.bf16.msra.mxu0 %v1580
  %1628 = vmatprep.subr.bf16.mxu0 %v1584
  %1629 = vmatpush1.bf16.msra.mxu0 %v1583
  %1630 = vmatprep.subr.bf16.mxu0 %v1587
  %1631 = vmatpush1.bf16.msra.mxu0 %v1586
  %1632 = vmatprep.subr.bf16.mxu0 %v1590
  %1633 = vmatpush1.bf16.msra.mxu0 %v1589
  %1634 = vmatprep.subr.bf16.mxu0 %v1593
  %1635 = vmatpush1.bf16.msra.mxu0 %v1592
  %1636 = vmatprep.subr.bf16.mxu0 %v1596
  %1637 = vmatpush1.bf16.msra.mxu0 %v1595
  %1638 = vmatprep.subr.bf16.mxu0 0
  %1639 = vmatpush1.bf16.msra.mxu0 0
  %1640 = vmatprep.subr.bf16.mxu0 0
  %1641 = vmatpush1.bf16.msra.mxu0 0
  %1642 = vmatprep.subr.bf16.mxu0 0
  %1643 = vmatpush1.bf16.msra.mxu0 0
  %1644 = vmatprep.subr.bf16.mxu0 0
  %1645 = vmatpush1.bf16.msra.mxu0 0
  %1646 = vmatprep.subr.bf16.mxu0 0
  %1647 = vmatpush1.bf16.msra.mxu0 0
  %1648 = vmatprep.subr.bf16.mxu0 0
  %1649 = vmatpush1.bf16.msra.mxu0 0
  %1650 = vmatprep.subr.bf16.mxu0 0
  %1651 = vmatpush1.bf16.msra.mxu0 0
  %1652 = vmatprep.subr.bf16.mxu0 0
  %1653 = vmatpush1.bf16.msra.mxu0 0
  %1654 = vmatprep.mubr.bf16.mxu0 0
  %1655 = vmatmul.mubr.bf16.gmra.mrb[0].mxu0 %v1444
  %v1656 = vpop.f32.mrb[0].mxu0
  %v1657 = vadd.f32 %v1482, %v1656
  %v1658 = vpop.f32.mrb[0].mxu0
  %v1659 = vadd.f32 %v1486, %v1658
  %v1660 = vpop.f32.mrb[0].mxu0
  %v1661 = vpop.f32.mrb[0].mxu0
  %1662 = vdwg.mxu0
  %1663 = vmatprep.subr.bf16.mxu0 0
  %1664 = vmatpush1.bf16.msra.mxu0 %v1576
  %1665 = vmatprep.subr.bf16.mxu0 0
  %1666 = vmatpush1.bf16.msra.mxu0 %v1579
  %1667 = vmatprep.subr.bf16.mxu0 0
  %1668 = vmatpush1.bf16.msra.mxu0 %v1582
  %1669 = vmatprep.subr.bf16.mxu0 0
  %1670 = vmatpush1.bf16.msra.mxu0 %v1585
  %1671 = vmatprep.subr.bf16.mxu0 0
  %1672 = vmatpush1.bf16.msra.mxu0 %v1588
  %1673 = vmatprep.subr.bf16.mxu0 0
  %1674 = vmatpush1.bf16.msra.mxu0 %v1591
  %1675 = vmatprep.subr.bf16.mxu0 0
  %1676 = vmatpush1.bf16.msra.mxu0 %v1594
  %1677 = vmatprep.subr.bf16.mxu0 0
  %1678 = vmatpush1.bf16.msra.mxu0 %v1597
  %1679 = vmatprep.subr.bf16.mxu0 0
  %1680 = vmatpush1.bf16.msra.mxu0 0
  %1681 = vmatprep.subr.bf16.mxu0 0
  %1682 = vmatpush1.bf16.msra.mxu0 0
  %1683 = vmatprep.subr.bf16.mxu0 0
  %1684 = vmatpush1.bf16.msra.mxu0 0
  %1685 = vmatprep.subr.bf16.mxu0 0
  %1686 = vmatpush1.bf16.msra.mxu0 0
  %1687 = vmatprep.subr.bf16.mxu0 0
  %1688 = vmatpush1.bf16.msra.mxu0 0
  %1689 = vmatprep.subr.bf16.mxu0 0
  %1690 = vmatpush1.bf16.msra.mxu0 0
  %1691 = vmatprep.subr.bf16.mxu0 0
  %1692 = vmatpush1.bf16.msra.mxu0 0
  %1693 = vmatprep.subr.bf16.mxu0 0
  %1694 = vmatpush1.bf16.msra.mxu0 0
  %1695 = vmatprep.mubr.bf16.mxu0 0
  %1696 = vmatmul.mubr.bf16.gmra.mrb[0].mxu0 %v1444
  %v1697 = vpop.f32.mrb[0].mxu0
  %v1698 = vadd.f32 %v1490, %v1697
  %v1699 = vpop.f32.mrb[0].mxu0
  %v1700 = vpop.f32.mrb[0].mxu0
  %v1701 = vpop.f32.mrb[0].mxu0
  %1702 = vdwg.mxu0
  %v1703 = vadd.f32 %v1441, %v1657
  %v1704 = vxor.u32 %v1703, 2147483648
  %v1705 = vmul.f32 %v1704, 1.442695
  %v1706 = vpow.pop %v1705
  %v1707 = vadd.f32 %v1706, 1.0
  %v1708 = vrcp.pop %v1707
  %v1709 = vmul.f32 1.0, %v1708
  %v1710 = vadd.f32 %v1442, %v1659
  %v1711 = vxor.u32 %v1710, 2147483648
  %v1712 = vmul.f32 %v1711, 1.442695
  %v1713 = vpow.pop %v1712
  %v1714 = vadd.f32 %v1713, 1.0
  %v1715 = vrcp.pop %v1714
  %v1716 = vmul.f32 1.0, %v1715
  %v1717 = vmul.f32 %v1709, %v1698
  %v1718 = vadd.f32 %v1443, %v1717
  %v1719 = vtanh.pop %v1718
  %v1720 = vsub.f32 1.0, %v1716
  %v1721 = vmul.f32 %v1720, %v1719
  %v1722 = vmul.f32 %v1716, %v1373
  %v1723 = vadd.f32 %v1721, %v1722
  %v1725 = vcombine.high %v1723, %v1723
  %v1727 = vunpack.c.l.s4 1966171168
  %v1728 = vunpack.c.0.s8 %v1727
  %v1729 = vlaneseq
  %v1730 = vshrl.u32 %v1729, 7
  %v1731 = vsub.s32 %v1728, %v1730
  %v1732 = vrot.slane %v1723, %v1731
  %v1734 = vunpack.c.l.s4 1966171168
  %v1735 = vunpack.c.0.s8 %v1734
  %v1736 = vlaneseq
  %v1737 = vshrl.u32 %v1736, 7
  %v1738 = vsub.s32 %v1735, %v1737
  %v1739 = vrot.slane %v1725, %v1738
  %v1740 = vcombine.high %v1732, %v1732
  %v1741 = vcombine.high %v1739, %v1739
  %v1743 = vunpack.c.l.s4 1966171168
  %v1744 = vunpack.c.0.s8 %v1743
  %v1745 = vlaneseq
  %v1746 = vshrl.u32 %v1745, 7
  %v1747 = vsub.s32 %v1744, %v1746
  %v1748 = vrot.slane %v1732, %v1747
  %v1750 = vunpack.c.l.s4 1966171168
  %v1751 = vunpack.c.0.s8 %v1750
  %v1752 = vlaneseq
  %v1753 = vshrl.u32 %v1752, 7
  %v1754 = vsub.s32 %v1751, %v1753
  %v1755 = vrot.slane %v1739, %v1754
  %v1757 = vunpack.c.l.s4 1966171168
  %v1758 = vunpack.c.0.s8 %v1757
  %v1759 = vlaneseq
  %v1760 = vshrl.u32 %v1759, 7
  %v1761 = vsub.s32 %v1758, %v1760
  %v1762 = vrot.slane %v1740, %v1761
  %v1764 = vunpack.c.l.s4 1966171168
  %v1765 = vunpack.c.0.s8 %v1764
  %v1766 = vlaneseq
  %v1767 = vshrl.u32 %v1766, 7
  %v1768 = vsub.s32 %v1765, %v1767
  %v1769 = vrot.slane %v1741, %v1768
  %v1770 = vcombine.high %v1748, %v1748
  %v1771 = vcombine.high %v1755, %v1755
  %v1772 = vcombine.high %v1762, %v1762
  %v1773 = vcombine.high %v1769, %v1769
  %1782 = vst [vmem:[#allocation3 + $0x3] sm:$0x1] %v1748
  %1783 = vst [vmem:[#allocation3 + $0xb] sm:$0x1] %v1762
  %1784 = vst [vmem:[#allocation3 + $0x13] sm:$0x1] %v1770
  %1785 = vst [vmem:[#allocation3 + $0x1b] sm:$0x1] %v1772
  %1786 = vst [vmem:[#allocation3 + $0x23] sm:$0x1] %v1755
  %1787 = vst [vmem:[#allocation3 + $0x2b] sm:$0x1] %v1769
  %1788 = vst [vmem:[#allocation3 + $0x33] sm:$0x1] %v1771
  %1789 = vst [vmem:[#allocation3 + $0x3b] sm:$0x1] %v1773
  %s1790 = scalar_lea.vmem [#allocation2], 96
  %v1791 = vld [vmem:[%s1790] sm:$0xff]
  %v1792 = vld [vmem:[%s1790 + $0x8] sm:$0xff]
  %v1793 = vld [vmem:[%s1790 + $0x10] sm:$0xff]
  %v1794 = vpack.c.bf16 %v1723, %v1723
  %v1795 = vld [vmem:[%s2] sm:$0xff]
  %v1796 = vld [vmem:[%s2 + $0x8] sm:$0xf]
  %v1797 = vld [vmem:[%s2 + $0xc] sm:$0xff]
  %v1798 = vld [vmem:[%s2 + $0x14] sm:$0xf]
  %v1799 = vld [vmem:[%s2 + $0x18] sm:$0xff]
  %v1800 = vld [vmem:[%s2 + $0x20] sm:$0xf]
  %v1801 = vld [vmem:[%s2 + $0x24] sm:$0xff]
  %v1802 = vld [vmem:[%s2 + $0x2c] sm:$0xf]
  %v1803 = vld [vmem:[%s2 + $0x30] sm:$0xff]
  %v1804 = vld [vmem:[%s2 + $0x38] sm:$0xf]
  %v1805 = vld [vmem:[%s2 + $0x3c] sm:$0xff]
  %v1806 = vld [vmem:[%s2 + $0x44] sm:$0xf]
  %v1807 = vld [vmem:[%s2 + $0x48] sm:$0xff]
  %v1808 = vld [vmem:[%s2 + $0x50] sm:$0xf]
  %v1809 = vld [vmem:[%s2 + $0x54] sm:$0xff]
  %v1810 = vld [vmem:[%s2 + $0x5c] sm:$0xf]
  %v1811 = vld [vmem:[%s2 + $0x60] sm:$0xff]
  %v1812 = vld [vmem:[%s2 + $0x68] sm:$0xf]
  %v1813 = vld [vmem:[%s2 + $0x6c] sm:$0xff]
  %v1814 = vld [vmem:[%s2 + $0x74] sm:$0xf]
  %v1815 = vld [vmem:[%s2 + $0x78] sm:$0xff]
  %v1816 = vld [vmem:[%s2 + $0x80] sm:$0xf]
  %v1817 = vld [vmem:[%s2 + $0x84] sm:$0xff]
  %v1818 = vld [vmem:[%s2 + $0x8c] sm:$0xf]
  %v1819 = vld [vmem:[%s2 + $0x90] sm:$0xff]
  %v1820 = vld [vmem:[%s2 + $0x98] sm:$0xf]
  %v1821 = vld [vmem:[%s2 + $0x9c] sm:$0xff]
  %v1822 = vld [vmem:[%s2 + $0xa4] sm:$0xf]
  %v1823 = vld [vmem:[%s2 + $0xa8] sm:$0xff]
  %v1824 = vld [vmem:[%s2 + $0xb0] sm:$0xf]
  %v1825 = vld [vmem:[%s2 + $0xb4] sm:$0xff]
  %v1826 = vld [vmem:[%s2 + $0xbc] sm:$0xf]
  %v1827 = vld [vmem:[%s4] sm:$0x7]
  %v1829 = vlaneseq
  %v1830 = vshrl.u32 %v1829, 7
  %v1831 = vsub.s32 0, %v1830
  %v1832 = vrot.slane %v1827, %v1831
  %v1833 = vlaneseq
  %v1834 = vshrl.u32 %v1833, 7
  %v1835 = vsub.s32 1, %v1834
  %v1836 = vrot.slane %v1827, %v1835
  %v1837 = vlaneseq
  %v1838 = vshrl.u32 %v1837, 7
  %v1839 = vsub.s32 2, %v1838
  %v1840 = vrot.slane %v1827, %v1839
  %v1876 = vunpack.c.l.b16 %v1795
  %v1877 = vunpack.c.h.b16 %v1795
  %v1878 = vunpack.c.l.b16 %v1796
  %v1879 = vunpack.c.l.b16 %v1797
  %v1880 = vunpack.c.h.b16 %v1797
  %v1881 = vunpack.c.l.b16 %v1798
  %v1882 = vunpack.c.l.b16 %v1799
  %v1883 = vunpack.c.h.b16 %v1799
  %v1884 = vunpack.c.l.b16 %v1800
  %v1885 = vunpack.c.l.b16 %v1801
  %v1886 = vunpack.c.h.b16 %v1801
  %v1887 = vunpack.c.l.b16 %v1802
  %v1888 = vunpack.c.l.b16 %v1803
  %v1889 = vunpack.c.h.b16 %v1803
  %v1890 = vunpack.c.l.b16 %v1804
  %v1891 = vunpack.c.l.b16 %v1805
  %v1892 = vunpack.c.h.b16 %v1805
  %v1893 = vunpack.c.l.b16 %v1806
  %v1894 = vunpack.c.l.b16 %v1807
  %v1895 = vunpack.c.h.b16 %v1807
  %v1896 = vunpack.c.l.b16 %v1808
  %v1897 = vunpack.c.l.b16 %v1809
  %v1898 = vunpack.c.h.b16 %v1809
  %v1899 = vunpack.c.l.b16 %v1810
  %v1900 = vunpack.c.l.b16 %v1811
  %v1901 = vunpack.c.h.b16 %v1811
  %v1902 = vunpack.c.l.b16 %v1812
  %v1903 = vunpack.c.l.b16 %v1813
  %v1904 = vunpack.c.h.b16 %v1813
  %v1905 = vunpack.c.l.b16 %v1814
  %v1906 = vunpack.c.l.b16 %v1815
  %v1907 = vunpack.c.h.b16 %v1815
  %v1908 = vunpack.c.l.b16 %v1816
  %v1909 = vunpack.c.l.b16 %v1817
  %v1910 = vunpack.c.h.b16 %v1817
  %v1911 = vunpack.c.l.b16 %v1818
  %v1912 = vunpack.c.l.b16 %v1819
  %v1913 = vunpack.c.h.b16 %v1819
  %v1914 = vunpack.c.l.b16 %v1820
  %v1915 = vunpack.c.l.b16 %v1821
  %v1916 = vunpack.c.h.b16 %v1821
  %v1917 = vunpack.c.l.b16 %v1822
  %v1918 = vunpack.c.l.b16 %v1823
  %v1919 = vunpack.c.h.b16 %v1823
  %v1920 = vunpack.c.l.b16 %v1824
  %v1921 = vunpack.c.l.b16 %v1825
  %v1922 = vunpack.c.h.b16 %v1825
  %v1923 = vunpack.c.l.b16 %v1826
  %v1924 = vpack.c.b16 %v1879, %v1876
  %v1925 = vpack.c.b16 %v1880, %v1877
  %v1926 = vpack.c.b16 %v1881, %v1878
  %v1927 = vpack.c.b16 %v1885, %v1882
  %v1928 = vpack.c.b16 %v1886, %v1883
  %v1929 = vpack.c.b16 %v1887, %v1884
  %v1930 = vpack.c.b16 %v1891, %v1888
  %v1931 = vpack.c.b16 %v1892, %v1889
  %v1932 = vpack.c.b16 %v1893, %v1890
  %v1933 = vpack.c.b16 %v1897, %v1894
  %v1934 = vpack.c.b16 %v1898, %v1895
  %v1935 = vpack.c.b16 %v1899, %v1896
  %v1936 = vpack.c.b16 %v1903, %v1900
  %v1937 = vpack.c.b16 %v1904, %v1901
  %v1938 = vpack.c.b16 %v1905, %v1902
  %v1939 = vpack.c.b16 %v1909, %v1906
  %v1940 = vpack.c.b16 %v1910, %v1907
  %v1941 = vpack.c.b16 %v1911, %v1908
  %v1942 = vpack.c.b16 %v1915, %v1912
  %v1943 = vpack.c.b16 %v1916, %v1913
  %v1944 = vpack.c.b16 %v1917, %v1914
  %v1945 = vpack.c.b16 %v1921, %v1918
  %v1946 = vpack.c.b16 %v1922, %v1919
  %v1947 = vpack.c.b16 %v1923, %v1920
  %1972 = vmatprep.subr.bf16.mxu0 %v1925
  %1973 = vmatpush1.bf16.msra.mxu0 %v1924
  %1974 = vmatprep.subr.bf16.mxu0 %v1928
  %1975 = vmatpush1.bf16.msra.mxu0 %v1927
  %1976 = vmatprep.subr.bf16.mxu0 %v1931
  %1977 = vmatpush1.bf16.msra.mxu0 %v1930
  %1978 = vmatprep.subr.bf16.mxu0 %v1934
  %1979 = vmatpush1.bf16.msra.mxu0 %v1933
  %1980 = vmatprep.subr.bf16.mxu0 %v1937
  %1981 = vmatpush1.bf16.msra.mxu0 %v1936
  %1982 = vmatprep.subr.bf16.mxu0 %v1940
  %1983 = vmatpush1.bf16.msra.mxu0 %v1939
  %1984 = vmatprep.subr.bf16.mxu0 %v1943
  %1985 = vmatpush1.bf16.msra.mxu0 %v1942
  %1986 = vmatprep.subr.bf16.mxu0 %v1946
  %1987 = vmatpush1.bf16.msra.mxu0 %v1945
  %1988 = vmatprep.subr.bf16.mxu0 0
  %1989 = vmatpush1.bf16.msra.mxu0 0
  %1990 = vmatprep.subr.bf16.mxu0 0
  %1991 = vmatpush1.bf16.msra.mxu0 0
  %1992 = vmatprep.subr.bf16.mxu0 0
  %1993 = vmatpush1.bf16.msra.mxu0 0
  %1994 = vmatprep.subr.bf16.mxu0 0
  %1995 = vmatpush1.bf16.msra.mxu0 0
  %1996 = vmatprep.subr.bf16.mxu0 0
  %1997 = vmatpush1.bf16.msra.mxu0 0
  %1998 = vmatprep.subr.bf16.mxu0 0
  %1999 = vmatpush1.bf16.msra.mxu0 0
  %2000 = vmatprep.subr.bf16.mxu0 0
  %2001 = vmatpush1.bf16.msra.mxu0 0
  %2002 = vmatprep.subr.bf16.mxu0 0
  %2003 = vmatpush1.bf16.msra.mxu0 0
  %2004 = vmatprep.mubr.bf16.mxu0 0
  %2005 = vmatmul.mubr.bf16.gmra.mrb[0].mxu0 %v1794
  %v2006 = vpop.f32.mrb[0].mxu0
  %v2007 = vadd.f32 %v1832, %v2006
  %v2008 = vpop.f32.mrb[0].mxu0
  %v2009 = vadd.f32 %v1836, %v2008
  %v2010 = vpop.f32.mrb[0].mxu0
  %v2011 = vpop.f32.mrb[0].mxu0
  %2012 = vdwg.mxu0
  %2013 = vmatprep.subr.bf16.mxu0 0
  %2014 = vmatpush1.bf16.msra.mxu0 %v1926
  %2015 = vmatprep.subr.bf16.mxu0 0
  %2016 = vmatpush1.bf16.msra.mxu0 %v1929
  %2017 = vmatprep.subr.bf16.mxu0 0
  %2018 = vmatpush1.bf16.msra.mxu0 %v1932
  %2019 = vmatprep.subr.bf16.mxu0 0
  %2020 = vmatpush1.bf16.msra.mxu0 %v1935
  %2021 = vmatprep.subr.bf16.mxu0 0
  %2022 = vmatpush1.bf16.msra.mxu0 %v1938
  %2023 = vmatprep.subr.bf16.mxu0 0
  %2024 = vmatpush1.bf16.msra.mxu0 %v1941
  %2025 = vmatprep.subr.bf16.mxu0 0
  %2026 = vmatpush1.bf16.msra.mxu0 %v1944
  %2027 = vmatprep.subr.bf16.mxu0 0
  %2028 = vmatpush1.bf16.msra.mxu0 %v1947
  %2029 = vmatprep.subr.bf16.mxu0 0
  %2030 = vmatpush1.bf16.msra.mxu0 0
  %2031 = vmatprep.subr.bf16.mxu0 0
  %2032 = vmatpush1.bf16.msra.mxu0 0
  %2033 = vmatprep.subr.bf16.mxu0 0
  %2034 = vmatpush1.bf16.msra.mxu0 0
  %2035 = vmatprep.subr.bf16.mxu0 0
  %2036 = vmatpush1.bf16.msra.mxu0 0
  %2037 = vmatprep.subr.bf16.mxu0 0
  %2038 = vmatpush1.bf16.msra.mxu0 0
  %2039 = vmatprep.subr.bf16.mxu0 0
  %2040 = vmatpush1.bf16.msra.mxu0 0
  %2041 = vmatprep.subr.bf16.mxu0 0
  %2042 = vmatpush1.bf16.msra.mxu0 0
  %2043 = vmatprep.subr.bf16.mxu0 0
  %2044 = vmatpush1.bf16.msra.mxu0 0
  %2045 = vmatprep.mubr.bf16.mxu0 0
  %2046 = vmatmul.mubr.bf16.gmra.mrb[0].mxu0 %v1794
  %v2047 = vpop.f32.mrb[0].mxu0
  %v2048 = vadd.f32 %v1840, %v2047
  %v2049 = vpop.f32.mrb[0].mxu0
  %v2050 = vpop.f32.mrb[0].mxu0
  %v2051 = vpop.f32.mrb[0].mxu0
  %2052 = vdwg.mxu0
  %v2053 = vadd.f32 %v1791, %v2007
  %v2054 = vxor.u32 %v2053, 2147483648
  %v2055 = vmul.f32 %v2054, 1.442695
  %v2056 = vpow.pop %v2055
  %v2057 = vadd.f32 %v2056, 1.0
  %v2058 = vrcp.pop %v2057
  %v2059 = vmul.f32 1.0, %v2058
  %v2060 = vadd.f32 %v1792, %v2009
  %v2061 = vxor.u32 %v2060, 2147483648
  %v2062 = vmul.f32 %v2061, 1.442695
  %v2063 = vpow.pop %v2062
  %v2064 = vadd.f32 %v2063, 1.0
  %v2065 = vrcp.pop %v2064
  %v2066 = vmul.f32 1.0, %v2065
  %v2067 = vmul.f32 %v2059, %v2048
  %v2068 = vadd.f32 %v1793, %v2067
  %v2069 = vtanh.pop %v2068
  %v2070 = vsub.f32 1.0, %v2066
  %v2071 = vmul.f32 %v2070, %v2069
  %v2072 = vmul.f32 %v2066, %v1723
  %v2073 = vadd.f32 %v2071, %v2072
  %v2075 = vcombine.high %v2073, %v2073
  %v2077 = vunpack.c.l.s4 1966171168
  %v2078 = vunpack.c.0.s8 %v2077
  %v2079 = vlaneseq
  %v2080 = vshrl.u32 %v2079, 7
  %v2081 = vsub.s32 %v2078, %v2080
  %v2082 = vrot.slane %v2073, %v2081
  %v2084 = vunpack.c.l.s4 1966171168
  %v2085 = vunpack.c.0.s8 %v2084
  %v2086 = vlaneseq
  %v2087 = vshrl.u32 %v2086, 7
  %v2088 = vsub.s32 %v2085, %v2087
  %v2089 = vrot.slane %v2075, %v2088
  %v2090 = vcombine.high %v2082, %v2082
  %v2091 = vcombine.high %v2089, %v2089
  %v2093 = vunpack.c.l.s4 1966171168
  %v2094 = vunpack.c.0.s8 %v2093
  %v2095 = vlaneseq
  %v2096 = vshrl.u32 %v2095, 7
  %v2097 = vsub.s32 %v2094, %v2096
  %v2098 = vrot.slane %v2082, %v2097
  %v2100 = vunpack.c.l.s4 1966171168
  %v2101 = vunpack.c.0.s8 %v2100
  %v2102 = vlaneseq
  %v2103 = vshrl.u32 %v2102, 7
  %v2104 = vsub.s32 %v2101, %v2103
  %v2105 = vrot.slane %v2089, %v2104
  %v2107 = vunpack.c.l.s4 1966171168
  %v2108 = vunpack.c.0.s8 %v2107
  %v2109 = vlaneseq
  %v2110 = vshrl.u32 %v2109, 7
  %v2111 = vsub.s32 %v2108, %v2110
  %v2112 = vrot.slane %v2090, %v2111
  %v2114 = vunpack.c.l.s4 1966171168
  %v2115 = vunpack.c.0.s8 %v2114
  %v2116 = vlaneseq
  %v2117 = vshrl.u32 %v2116, 7
  %v2118 = vsub.s32 %v2115, %v2117
  %v2119 = vrot.slane %v2091, %v2118
  %v2120 = vcombine.high %v2098, %v2098
  %v2121 = vcombine.high %v2105, %v2105
  %v2122 = vcombine.high %v2112, %v2112
  %v2123 = vcombine.high %v2119, %v2119
  %2132 = vst [vmem:[#allocation3 + $0x4] sm:$0x1] %v2098
  %2133 = vst [vmem:[#allocation3 + $0xc] sm:$0x1] %v2112
  %2134 = vst [vmem:[#allocation3 + $0x14] sm:$0x1] %v2120
  %2135 = vst [vmem:[#allocation3 + $0x1c] sm:$0x1] %v2122
  %2136 = vst [vmem:[#allocation3 + $0x24] sm:$0x1] %v2105
  %2137 = vst [vmem:[#allocation3 + $0x2c] sm:$0x1] %v2119
  %2138 = vst [vmem:[#allocation3 + $0x34] sm:$0x1] %v2121
  %2139 = vst [vmem:[#allocation3 + $0x3c] sm:$0x1] %v2123
  %s2140 = scalar_lea.vmem [#allocation2], 120
  %v2141 = vld [vmem:[%s2140] sm:$0xff]
  %v2142 = vld [vmem:[%s2140 + $0x8] sm:$0xff]
  %v2143 = vld [vmem:[%s2140 + $0x10] sm:$0xff]
  %v2144 = vpack.c.bf16 %v2073, %v2073
  %v2145 = vld [vmem:[%s2] sm:$0xff]
  %v2146 = vld [vmem:[%s2 + $0x8] sm:$0xf]
  %v2147 = vld [vmem:[%s2 + $0xc] sm:$0xff]
  %v2148 = vld [vmem:[%s2 + $0x14] sm:$0xf]
  %v2149 = vld [vmem:[%s2 + $0x18] sm:$0xff]
  %v2150 = vld [vmem:[%s2 + $0x20] sm:$0xf]
  %v2151 = vld [vmem:[%s2 + $0x24] sm:$0xff]
  %v2152 = vld [vmem:[%s2 + $0x2c] sm:$0xf]
  %v2153 = vld [vmem:[%s2 + $0x30] sm:$0xff]
  %v2154 = vld [vmem:[%s2 + $0x38] sm:$0xf]
  %v2155 = vld [vmem:[%s2 + $0x3c] sm:$0xff]
  %v2156 = vld [vmem:[%s2 + $0x44] sm:$0xf]
  %v2157 = vld [vmem:[%s2 + $0x48] sm:$0xff]
  %v2158 = vld [vmem:[%s2 + $0x50] sm:$0xf]
  %v2159 = vld [vmem:[%s2 + $0x54] sm:$0xff]
  %v2160 = vld [vmem:[%s2 + $0x5c] sm:$0xf]
  %v2161 = vld [vmem:[%s2 + $0x60] sm:$0xff]
  %v2162 = vld [vmem:[%s2 + $0x68] sm:$0xf]
  %v2163 = vld [vmem:[%s2 + $0x6c] sm:$0xff]
  %v2164 = vld [vmem:[%s2 + $0x74] sm:$0xf]
  %v2165 = vld [vmem:[%s2 + $0x78] sm:$0xff]
  %v2166 = vld [vmem:[%s2 + $0x80] sm:$0xf]
  %v2167 = vld [vmem:[%s2 + $0x84] sm:$0xff]
  %v2168 = vld [vmem:[%s2 + $0x8c] sm:$0xf]
  %v2169 = vld [vmem:[%s2 + $0x90] sm:$0xff]
  %v2170 = vld [vmem:[%s2 + $0x98] sm:$0xf]
  %v2171 = vld [vmem:[%s2 + $0x9c] sm:$0xff]
  %v2172 = vld [vmem:[%s2 + $0xa4] sm:$0xf]
  %v2173 = vld [vmem:[%s2 + $0xa8] sm:$0xff]
  %v2174 = vld [vmem:[%s2 + $0xb0] sm:$0xf]
  %v2175 = vld [vmem:[%s2 + $0xb4] sm:$0xff]
  %v2176 = vld [vmem:[%s2 + $0xbc] sm:$0xf]
  %v2177 = vld [vmem:[%s4] sm:$0x7]
  %v2179 = vlaneseq
  %v2180 = vshrl.u32 %v2179, 7
  %v2181 = vsub.s32 0, %v2180
  %v2182 = vrot.slane %v2177, %v2181
  %v2183 = vlaneseq
  %v2184 = vshrl.u32 %v2183, 7
  %v2185 = vsub.s32 1, %v2184
  %v2186 = vrot.slane %v2177, %v2185
  %v2187 = vlaneseq
  %v2188 = vshrl.u32 %v2187, 7
  %v2189 = vsub.s32 2, %v2188
  %v2190 = vrot.slane %v2177, %v2189
  %v2226 = vunpack.c.l.b16 %v2145
  %v2227 = vunpack.c.h.b16 %v2145
  %v2228 = vunpack.c.l.b16 %v2146
  %v2229 = vunpack.c.l.b16 %v2147
  %v2230 = vunpack.c.h.b16 %v2147
  %v2231 = vunpack.c.l.b16 %v2148
  %v2232 = vunpack.c.l.b16 %v2149
  %v2233 = vunpack.c.h.b16 %v2149
  %v2234 = vunpack.c.l.b16 %v2150
  %v2235 = vunpack.c.l.b16 %v2151
  %v2236 = vunpack.c.h.b16 %v2151
  %v2237 = vunpack.c.l.b16 %v2152
  %v2238 = vunpack.c.l.b16 %v2153
  %v2239 = vunpack.c.h.b16 %v2153
  %v2240 = vunpack.c.l.b16 %v2154
  %v2241 = vunpack.c.l.b16 %v2155
  %v2242 = vunpack.c.h.b16 %v2155
  %v2243 = vunpack.c.l.b16 %v2156
  %v2244 = vunpack.c.l.b16 %v2157
  %v2245 = vunpack.c.h.b16 %v2157
  %v2246 = vunpack.c.l.b16 %v2158
  %v2247 = vunpack.c.l.b16 %v2159
  %v2248 = vunpack.c.h.b16 %v2159
  %v2249 = vunpack.c.l.b16 %v2160
  %v2250 = vunpack.c.l.b16 %v2161
  %v2251 = vunpack.c.h.b16 %v2161
  %v2252 = vunpack.c.l.b16 %v2162
  %v2253 = vunpack.c.l.b16 %v2163
  %v2254 = vunpack.c.h.b16 %v2163
  %v2255 = vunpack.c.l.b16 %v2164
  %v2256 = vunpack.c.l.b16 %v2165
  %v2257 = vunpack.c.h.b16 %v2165
  %v2258 = vunpack.c.l.b16 %v2166
  %v2259 = vunpack.c.l.b16 %v2167
  %v2260 = vunpack.c.h.b16 %v2167
  %v2261 = vunpack.c.l.b16 %v2168
  %v2262 = vunpack.c.l.b16 %v2169
  %v2263 = vunpack.c.h.b16 %v2169
  %v2264 = vunpack.c.l.b16 %v2170
  %v2265 = vunpack.c.l.b16 %v2171
  %v2266 = vunpack.c.h.b16 %v2171
  %v2267 = vunpack.c.l.b16 %v2172
  %v2268 = vunpack.c.l.b16 %v2173
  %v2269 = vunpack.c.h.b16 %v2173
  %v2270 = vunpack.c.l.b16 %v2174
  %v2271 = vunpack.c.l.b16 %v2175
  %v2272 = vunpack.c.h.b16 %v2175
  %v2273 = vunpack.c.l.b16 %v2176
  %v2274 = vpack.c.b16 %v2229, %v2226
  %v2275 = vpack.c.b16 %v2230, %v2227
  %v2276 = vpack.c.b16 %v2231, %v2228
  %v2277 = vpack.c.b16 %v2235, %v2232
  %v2278 = vpack.c.b16 %v2236, %v2233
  %v2279 = vpack.c.b16 %v2237, %v2234
  %v2280 = vpack.c.b16 %v2241, %v2238
  %v2281 = vpack.c.b16 %v2242, %v2239
  %v2282 = vpack.c.b16 %v2243, %v2240
  %v2283 = vpack.c.b16 %v2247, %v2244
  %v2284 = vpack.c.b16 %v2248, %v2245
  %v2285 = vpack.c.b16 %v2249, %v2246
  %v2286 = vpack.c.b16 %v2253, %v2250
  %v2287 = vpack.c.b16 %v2254, %v2251
  %v2288 = vpack.c.b16 %v2255, %v2252
  %v2289 = vpack.c.b16 %v2259, %v2256
  %v2290 = vpack.c.b16 %v2260, %v2257
  %v2291 = vpack.c.b16 %v2261, %v2258
  %v2292 = vpack.c.b16 %v2265, %v2262
  %v2293 = vpack.c.b16 %v2266, %v2263
  %v2294 = vpack.c.b16 %v2267, %v2264
  %v2295 = vpack.c.b16 %v2271, %v2268
  %v2296 = vpack.c.b16 %v2272, %v2269
  %v2297 = vpack.c.b16 %v2273, %v2270
  %2322 = vmatprep.subr.bf16.mxu0 %v2275
  %2323 = vmatpush1.bf16.msra.mxu0 %v2274
  %2324 = vmatprep.subr.bf16.mxu0 %v2278
  %2325 = vmatpush1.bf16.msra.mxu0 %v2277
  %2326 = vmatprep.subr.bf16.mxu0 %v2281
  %2327 = vmatpush1.bf16.msra.mxu0 %v2280
  %2328 = vmatprep.subr.bf16.mxu0 %v2284
  %2329 = vmatpush1.bf16.msra.mxu0 %v2283
  %2330 = vmatprep.subr.bf16.mxu0 %v2287
  %2331 = vmatpush1.bf16.msra.mxu0 %v2286
  %2332 = vmatprep.subr.bf16.mxu0 %v2290
  %2333 = vmatpush1.bf16.msra.mxu0 %v2289
  %2334 = vmatprep.subr.bf16.mxu0 %v2293
  %2335 = vmatpush1.bf16.msra.mxu0 %v2292
  %2336 = vmatprep.subr.bf16.mxu0 %v2296
  %2337 = vmatpush1.bf16.msra.mxu0 %v2295
  %2338 = vmatprep.subr.bf16.mxu0 0
  %2339 = vmatpush1.bf16.msra.mxu0 0
  %2340 = vmatprep.subr.bf16.mxu0 0
  %2341 = vmatpush1.bf16.msra.mxu0 0
  %2342 = vmatprep.subr.bf16.mxu0 0
  %2343 = vmatpush1.bf16.msra.mxu0 0
  %2344 = vmatprep.subr.bf16.mxu0 0
  %2345 = vmatpush1.bf16.msra.mxu0 0
  %2346 = vmatprep.subr.bf16.mxu0 0
  %2347 = vmatpush1.bf16.msra.mxu0 0
  %2348 = vmatprep.subr.bf16.mxu0 0
  %2349 = vmatpush1.bf16.msra.mxu0 0
  %2350 = vmatprep.subr.bf16.mxu0 0
  %2351 = vmatpush1.bf16.msra.mxu0 0
  %2352 = vmatprep.subr.bf16.mxu0 0
  %2353 = vmatpush1.bf16.msra.mxu0 0
  %2354 = vmatprep.mubr.bf16.mxu0 0
  %2355 = vmatmul.mubr.bf16.gmra.mrb[0].mxu0 %v2144
  %v2356 = vpop.f32.mrb[0].mxu0
  %v2357 = vadd.f32 %v2182, %v2356
  %v2358 = vpop.f32.mrb[0].mxu0
  %v2359 = vadd.f32 %v2186, %v2358
  %v2360 = vpop.f32.mrb[0].mxu0
  %v2361 = vpop.f32.mrb[0].mxu0
  %2362 = vdwg.mxu0
  %2363 = vmatprep.subr.bf16.mxu0 0
  %2364 = vmatpush1.bf16.msra.mxu0 %v2276
  %2365 = vmatprep.subr.bf16.mxu0 0
  %2366 = vmatpush1.bf16.msra.mxu0 %v2279
  %2367 = vmatprep.subr.bf16.mxu0 0
  %2368 = vmatpush1.bf16.msra.mxu0 %v2282
  %2369 = vmatprep.subr.bf16.mxu0 0
  %2370 = vmatpush1.bf16.msra.mxu0 %v2285
  %2371 = vmatprep.subr.bf16.mxu0 0
  %2372 = vmatpush1.bf16.msra.mxu0 %v2288
  %2373 = vmatprep.subr.bf16.mxu0 0
  %2374 = vmatpush1.bf16.msra.mxu0 %v2291
  %2375 = vmatprep.subr.bf16.mxu0 0
  %2376 = vmatpush1.bf16.msra.mxu0 %v2294
  %2377 = vmatprep.subr.bf16.mxu0 0
  %2378 = vmatpush1.bf16.msra.mxu0 %v2297
  %2379 = vmatprep.subr.bf16.mxu0 0
  %2380 = vmatpush1.bf16.msra.mxu0 0
  %2381 = vmatprep.subr.bf16.mxu0 0
  %2382 = vmatpush1.bf16.msra.mxu0 0
  %2383 = vmatprep.subr.bf16.mxu0 0
  %2384 = vmatpush1.bf16.msra.mxu0 0
  %2385 = vmatprep.subr.bf16.mxu0 0
  %2386 = vmatpush1.bf16.msra.mxu0 0
  %2387 = vmatprep.subr.bf16.mxu0 0
  %2388 = vmatpush1.bf16.msra.mxu0 0
  %2389 = vmatprep.subr.bf16.mxu0 0
  %2390 = vmatpush1.bf16.msra.mxu0 0
  %2391 = vmatprep.subr.bf16.mxu0 0
  %2392 = vmatpush1.bf16.msra.mxu0 0
  %2393 = vmatprep.subr.bf16.mxu0 0
  %2394 = vmatpush1.bf16.msra.mxu0 0
  %2395 = vmatprep.mubr.bf16.mxu0 0
  %2396 = vmatmul.mubr.bf16.gmra.mrb[0].mxu0 %v2144
  %v2397 = vpop.f32.mrb[0].mxu0
  %v2398 = vadd.f32 %v2190, %v2397
  %v2399 = vpop.f32.mrb[0].mxu0
  %v2400 = vpop.f32.mrb[0].mxu0
  %v2401 = vpop.f32.mrb[0].mxu0
  %2402 = vdwg.mxu0
  %v2403 = vadd.f32 %v2141, %v2357
  %v2404 = vxor.u32 %v2403, 2147483648
  %v2405 = vmul.f32 %v2404, 1.442695
  %v2406 = vpow.pop %v2405
  %v2407 = vadd.f32 %v2406, 1.0
  %v2408 = vrcp.pop %v2407
  %v2409 = vmul.f32 1.0, %v2408
  %v2410 = vadd.f32 %v2142, %v2359
  %v2411 = vxor.u32 %v2410, 2147483648
  %v2412 = vmul.f32 %v2411, 1.442695
  %v2413 = vpow.pop %v2412
  %v2414 = vadd.f32 %v2413, 1.0
  %v2415 = vrcp.pop %v2414
  %v2416 = vmul.f32 1.0, %v2415
  %v2417 = vmul.f32 %v2409, %v2398
  %v2418 = vadd.f32 %v2143, %v2417
  %v2419 = vtanh.pop %v2418
  %v2420 = vsub.f32 1.0, %v2416
  %v2421 = vmul.f32 %v2420, %v2419
  %v2422 = vmul.f32 %v2416, %v2073
  %v2423 = vadd.f32 %v2421, %v2422
  %v2425 = vcombine.high %v2423, %v2423
  %v2427 = vunpack.c.l.s4 1966171168
  %v2428 = vunpack.c.0.s8 %v2427
  %v2429 = vlaneseq
  %v2430 = vshrl.u32 %v2429, 7
  %v2431 = vsub.s32 %v2428, %v2430
  %v2432 = vrot.slane %v2423, %v2431
  %v2434 = vunpack.c.l.s4 1966171168
  %v2435 = vunpack.c.0.s8 %v2434
  %v2436 = vlaneseq
  %v2437 = vshrl.u32 %v2436, 7
  %v2438 = vsub.s32 %v2435, %v2437
  %v2439 = vrot.slane %v2425, %v2438
  %v2440 = vcombine.high %v2432, %v2432
  %v2441 = vcombine.high %v2439, %v2439
  %v2443 = vunpack.c.l.s4 1966171168
  %v2444 = vunpack.c.0.s8 %v2443
  %v2445 = vlaneseq
  %v2446 = vshrl.u32 %v2445, 7
  %v2447 = vsub.s32 %v2444, %v2446
  %v2448 = vrot.slane %v2432, %v2447
  %v2450 = vunpack.c.l.s4 1966171168
  %v2451 = vunpack.c.0.s8 %v2450
  %v2452 = vlaneseq
  %v2453 = vshrl.u32 %v2452, 7
  %v2454 = vsub.s32 %v2451, %v2453
  %v2455 = vrot.slane %v2439, %v2454
  %v2457 = vunpack.c.l.s4 1966171168
  %v2458 = vunpack.c.0.s8 %v2457
  %v2459 = vlaneseq
  %v2460 = vshrl.u32 %v2459, 7
  %v2461 = vsub.s32 %v2458, %v2460
  %v2462 = vrot.slane %v2440, %v2461
  %v2464 = vunpack.c.l.s4 1966171168
  %v2465 = vunpack.c.0.s8 %v2464
  %v2466 = vlaneseq
  %v2467 = vshrl.u32 %v2466, 7
  %v2468 = vsub.s32 %v2465, %v2467
  %v2469 = vrot.slane %v2441, %v2468
  %v2470 = vcombine.high %v2448, %v2448
  %v2471 = vcombine.high %v2455, %v2455
  %v2472 = vcombine.high %v2462, %v2462
  %v2473 = vcombine.high %v2469, %v2469
  %2482 = vst [vmem:[#allocation3 + $0x5] sm:$0x1] %v2448
  %2483 = vst [vmem:[#allocation3 + $0xd] sm:$0x1] %v2462
  %2484 = vst [vmem:[#allocation3 + $0x15] sm:$0x1] %v2470
  %2485 = vst [vmem:[#allocation3 + $0x1d] sm:$0x1] %v2472
  %2486 = vst [vmem:[#allocation3 + $0x25] sm:$0x1] %v2455
  %2487 = vst [vmem:[#allocation3 + $0x2d] sm:$0x1] %v2469
  %2488 = vst [vmem:[#allocation3 + $0x35] sm:$0x1] %v2471
  %2489 = vst [vmem:[#allocation3 + $0x3d] sm:$0x1] %v2473
  %s2490 = scalar_lea.vmem [#allocation2], 144
  %v2491 = vld [vmem:[%s2490] sm:$0xff]
  %v2492 = vld [vmem:[%s2490 + $0x8] sm:$0xff]
  %v2493 = vld [vmem:[%s2490 + $0x10] sm:$0xff]
  %v2494 = vpack.c.bf16 %v2423, %v2423
  %v2495 = vld [vmem:[%s2] sm:$0xff]
  %v2496 = vld [vmem:[%s2 + $0x8] sm:$0xf]
  %v2497 = vld [vmem:[%s2 + $0xc] sm:$0xff]
  %v2498 = vld [vmem:[%s2 + $0x14] sm:$0xf]
  %v2499 = vld [vmem:[%s2 + $0x18] sm:$0xff]
  %v2500 = vld [vmem:[%s2 + $0x20] sm:$0xf]
  %v2501 = vld [vmem:[%s2 + $0x24] sm:$0xff]
  %v2502 = vld [vmem:[%s2 + $0x2c] sm:$0xf]
  %v2503 = vld [vmem:[%s2 + $0x30] sm:$0xff]
  %v2504 = vld [vmem:[%s2 + $0x38] sm:$0xf]
  %v2505 = vld [vmem:[%s2 + $0x3c] sm:$0xff]
  %v2506 = vld [vmem:[%s2 + $0x44] sm:$0xf]
  %v2507 = vld [vmem:[%s2 + $0x48] sm:$0xff]
  %v2508 = vld [vmem:[%s2 + $0x50] sm:$0xf]
  %v2509 = vld [vmem:[%s2 + $0x54] sm:$0xff]
  %v2510 = vld [vmem:[%s2 + $0x5c] sm:$0xf]
  %v2511 = vld [vmem:[%s2 + $0x60] sm:$0xff]
  %v2512 = vld [vmem:[%s2 + $0x68] sm:$0xf]
  %v2513 = vld [vmem:[%s2 + $0x6c] sm:$0xff]
  %v2514 = vld [vmem:[%s2 + $0x74] sm:$0xf]
  %v2515 = vld [vmem:[%s2 + $0x78] sm:$0xff]
  %v2516 = vld [vmem:[%s2 + $0x80] sm:$0xf]
  %v2517 = vld [vmem:[%s2 + $0x84] sm:$0xff]
  %v2518 = vld [vmem:[%s2 + $0x8c] sm:$0xf]
  %v2519 = vld [vmem:[%s2 + $0x90] sm:$0xff]
  %v2520 = vld [vmem:[%s2 + $0x98] sm:$0xf]
  %v2521 = vld [vmem:[%s2 + $0x9c] sm:$0xff]
  %v2522 = vld [vmem:[%s2 + $0xa4] sm:$0xf]
  %v2523 = vld [vmem:[%s2 + $0xa8] sm:$0xff]
  %v2524 = vld [vmem:[%s2 + $0xb0] sm:$0xf]
  %v2525 = vld [vmem:[%s2 + $0xb4] sm:$0xff]
  %v2526 = vld [vmem:[%s2 + $0xbc] sm:$0xf]
  %v2527 = vld [vmem:[%s4] sm:$0x7]
  %v2529 = vlaneseq
  %v2530 = vshrl.u32 %v2529, 7
  %v2531 = vsub.s32 0, %v2530
  %v2532 = vrot.slane %v2527, %v2531
  %v2533 = vlaneseq
  %v2534 = vshrl.u32 %v2533, 7
  %v2535 = vsub.s32 1, %v2534
  %v2536 = vrot.slane %v2527, %v2535
  %v2537 = vlaneseq
  %v2538 = vshrl.u32 %v2537, 7
  %v2539 = vsub.s32 2, %v2538
  %v2540 = vrot.slane %v2527, %v2539
  %v2576 = vunpack.c.l.b16 %v2495
  %v2577 = vunpack.c.h.b16 %v2495
  %v2578 = vunpack.c.l.b16 %v2496
  %v2579 = vunpack.c.l.b16 %v2497
  %v2580 = vunpack.c.h.b16 %v2497
  %v2581 = vunpack.c.l.b16 %v2498
  %v2582 = vunpack.c.l.b16 %v2499
  %v2583 = vunpack.c.h.b16 %v2499
  %v2584 = vunpack.c.l.b16 %v2500
  %v2585 = vunpack.c.l.b16 %v2501
  %v2586 = vunpack.c.h.b16 %v2501
  %v2587 = vunpack.c.l.b16 %v2502
  %v2588 = vunpack.c.l.b16 %v2503
  %v2589 = vunpack.c.h.b16 %v2503
  %v2590 = vunpack.c.l.b16 %v2504
  %v2591 = vunpack.c.l.b16 %v2505
  %v2592 = vunpack.c.h.b16 %v2505
  %v2593 = vunpack.c.l.b16 %v2506
  %v2594 = vunpack.c.l.b16 %v2507
  %v2595 = vunpack.c.h.b16 %v2507
  %v2596 = vunpack.c.l.b16 %v2508
  %v2597 = vunpack.c.l.b16 %v2509
  %v2598 = vunpack.c.h.b16 %v2509
  %v2599 = vunpack.c.l.b16 %v2510
  %v2600 = vunpack.c.l.b16 %v2511
  %v2601 = vunpack.c.h.b16 %v2511
  %v2602 = vunpack.c.l.b16 %v2512
  %v2603 = vunpack.c.l.b16 %v2513
  %v2604 = vunpack.c.h.b16 %v2513
  %v2605 = vunpack.c.l.b16 %v2514
  %v2606 = vunpack.c.l.b16 %v2515
  %v2607 = vunpack.c.h.b16 %v2515
  %v2608 = vunpack.c.l.b16 %v2516
  %v2609 = vunpack.c.l.b16 %v2517
  %v2610 = vunpack.c.h.b16 %v2517
  %v2611 = vunpack.c.l.b16 %v2518
  %v2612 = vunpack.c.l.b16 %v2519
  %v2613 = vunpack.c.h.b16 %v2519
  %v2614 = vunpack.c.l.b16 %v2520
  %v2615 = vunpack.c.l.b16 %v2521
  %v2616 = vunpack.c.h.b16 %v2521
  %v2617 = vunpack.c.l.b16 %v2522
  %v2618 = vunpack.c.l.b16 %v2523
  %v2619 = vunpack.c.h.b16 %v2523
  %v2620 = vunpack.c.l.b16 %v2524
  %v2621 = vunpack.c.l.b16 %v2525
  %v2622 = vunpack.c.h.b16 %v2525
  %v2623 = vunpack.c.l.b16 %v2526
  %v2624 = vpack.c.b16 %v2579, %v2576
  %v2625 = vpack.c.b16 %v2580, %v2577
  %v2626 = vpack.c.b16 %v2581, %v2578
  %v2627 = vpack.c.b16 %v2585, %v2582
  %v2628 = vpack.c.b16 %v2586, %v2583
  %v2629 = vpack.c.b16 %v2587, %v2584
  %v2630 = vpack.c.b16 %v2591, %v2588
  %v2631 = vpack.c.b16 %v2592, %v2589
  %v2632 = vpack.c.b16 %v2593, %v2590
  %v2633 = vpack.c.b16 %v2597, %v2594
  %v2634 = vpack.c.b16 %v2598, %v2595
  %v2635 = vpack.c.b16 %v2599, %v2596
  %v2636 = vpack.c.b16 %v2603, %v2600
  %v2637 = vpack.c.b16 %v2604, %v2601
  %v2638 = vpack.c.b16 %v2605, %v2602
  %v2639 = vpack.c.b16 %v2609, %v2606
  %v2640 = vpack.c.b16 %v2610, %v2607
  %v2641 = vpack.c.b16 %v2611, %v2608
  %v2642 = vpack.c.b16 %v2615, %v2612
  %v2643 = vpack.c.b16 %v2616, %v2613
  %v2644 = vpack.c.b16 %v2617, %v2614
  %v2645 = vpack.c.b16 %v2621, %v2618
  %v2646 = vpack.c.b16 %v2622, %v2619
  %v2647 = vpack.c.b16 %v2623, %v2620
  %2672 = vmatprep.subr.bf16.mxu0 %v2625
  %2673 = vmatpush1.bf16.msra.mxu0 %v2624
  %2674 = vmatprep.subr.bf16.mxu0 %v2628
  %2675 = vmatpush1.bf16.msra.mxu0 %v2627
  %2676 = vmatprep.subr.bf16.mxu0 %v2631
  %2677 = vmatpush1.bf16.msra.mxu0 %v2630
  %2678 = vmatprep.subr.bf16.mxu0 %v2634
  %2679 = vmatpush1.bf16.msra.mxu0 %v2633
  %2680 = vmatprep.subr.bf16.mxu0 %v2637
  %2681 = vmatpush1.bf16.msra.mxu0 %v2636
  %2682 = vmatprep.subr.bf16.mxu0 %v2640
  %2683 = vmatpush1.bf16.msra.mxu0 %v2639
  %2684 = vmatprep.subr.bf16.mxu0 %v2643
  %2685 = vmatpush1.bf16.msra.mxu0 %v2642
  %2686 = vmatprep.subr.bf16.mxu0 %v2646
  %2687 = vmatpush1.bf16.msra.mxu0 %v2645
  %2688 = vmatprep.subr.bf16.mxu0 0
  %2689 = vmatpush1.bf16.msra.mxu0 0
  %2690 = vmatprep.subr.bf16.mxu0 0
  %2691 = vmatpush1.bf16.msra.mxu0 0
  %2692 = vmatprep.subr.bf16.mxu0 0
  %2693 = vmatpush1.bf16.msra.mxu0 0
  %2694 = vmatprep.subr.bf16.mxu0 0
  %2695 = vmatpush1.bf16.msra.mxu0 0
  %2696 = vmatprep.subr.bf16.mxu0 0
  %2697 = vmatpush1.bf16.msra.mxu0 0
  %2698 = vmatprep.subr.bf16.mxu0 0
  %2699 = vmatpush1.bf16.msra.mxu0 0
  %2700 = vmatprep.subr.bf16.mxu0 0
  %2701 = vmatpush1.bf16.msra.mxu0 0
  %2702 = vmatprep.subr.bf16.mxu0 0
  %2703 = vmatpush1.bf16.msra.mxu0 0
  %2704 = vmatprep.mubr.bf16.mxu0 0
  %2705 = vmatmul.mubr.bf16.gmra.mrb[0].mxu0 %v2494
  %v2706 = vpop.f32.mrb[0].mxu0
  %v2707 = vadd.f32 %v2532, %v2706
  %v2708 = vpop.f32.mrb[0].mxu0
  %v2709 = vadd.f32 %v2536, %v2708
  %v2710 = vpop.f32.mrb[0].mxu0
  %v2711 = vpop.f32.mrb[0].mxu0
  %2712 = vdwg.mxu0
  %2713 = vmatprep.subr.bf16.mxu0 0
  %2714 = vmatpush1.bf16.msra.mxu0 %v2626
  %2715 = vmatprep.subr.bf16.mxu0 0
  %2716 = vmatpush1.bf16.msra.mxu0 %v2629
  %2717 = vmatprep.subr.bf16.mxu0 0
  %2718 = vmatpush1.bf16.msra.mxu0 %v2632
  %2719 = vmatprep.subr.bf16.mxu0 0
  %2720 = vmatpush1.bf16.msra.mxu0 %v2635
  %2721 = vmatprep.subr.bf16.mxu0 0
  %2722 = vmatpush1.bf16.msra.mxu0 %v2638
  %2723 = vmatprep.subr.bf16.mxu0 0
  %2724 = vmatpush1.bf16.msra.mxu0 %v2641
  %2725 = vmatprep.subr.bf16.mxu0 0
  %2726 = vmatpush1.bf16.msra.mxu0 %v2644
  %2727 = vmatprep.subr.bf16.mxu0 0
  %2728 = vmatpush1.bf16.msra.mxu0 %v2647
  %2729 = vmatprep.subr.bf16.mxu0 0
  %2730 = vmatpush1.bf16.msra.mxu0 0
  %2731 = vmatprep.subr.bf16.mxu0 0
  %2732 = vmatpush1.bf16.msra.mxu0 0
  %2733 = vmatprep.subr.bf16.mxu0 0
  %2734 = vmatpush1.bf16.msra.mxu0 0
  %2735 = vmatprep.subr.bf16.mxu0 0
  %2736 = vmatpush1.bf16.msra.mxu0 0
  %2737 = vmatprep.subr.bf16.mxu0 0
  %2738 = vmatpush1.bf16.msra.mxu0 0
  %2739 = vmatprep.subr.bf16.mxu0 0
  %2740 = vmatpush1.bf16.msra.mxu0 0
  %2741 = vmatprep.subr.bf16.mxu0 0
  %2742 = vmatpush1.bf16.msra.mxu0 0
  %2743 = vmatprep.subr.bf16.mxu0 0
  %2744 = vmatpush1.bf16.msra.mxu0 0
  %2745 = vmatprep.mubr.bf16.mxu0 0
  %2746 = vmatmul.mubr.bf16.gmra.mrb[0].mxu0 %v2494
  %v2747 = vpop.f32.mrb[0].mxu0
  %v2748 = vadd.f32 %v2540, %v2747
  %v2749 = vpop.f32.mrb[0].mxu0
  %v2750 = vpop.f32.mrb[0].mxu0
  %v2751 = vpop.f32.mrb[0].mxu0
  %2752 = vdwg.mxu0
  %v2753 = vadd.f32 %v2491, %v2707
  %v2754 = vxor.u32 %v2753, 2147483648
  %v2755 = vmul.f32 %v2754, 1.442695
  %v2756 = vpow.pop %v2755
  %v2757 = vadd.f32 %v2756, 1.0
  %v2758 = vrcp.pop %v2757
  %v2759 = vmul.f32 1.0, %v2758
  %v2760 = vadd.f32 %v2492, %v2709
  %v2761 = vxor.u32 %v2760, 2147483648
  %v2762 = vmul.f32 %v2761, 1.442695
  %v2763 = vpow.pop %v2762
  %v2764 = vadd.f32 %v2763, 1.0
  %v2765 = vrcp.pop %v2764
  %v2766 = vmul.f32 1.0, %v2765
  %v2767 = vmul.f32 %v2759, %v2748
  %v2768 = vadd.f32 %v2493, %v2767
  %v2769 = vtanh.pop %v2768
  %v2770 = vsub.f32 1.0, %v2766
  %v2771 = vmul.f32 %v2770, %v2769
  %v2772 = vmul.f32 %v2766, %v2423
  %v2773 = vadd.f32 %v2771, %v2772
  %v2775 = vcombine.high %v2773, %v2773
  %v2777 = vunpack.c.l.s4 1966171168
  %v2778 = vunpack.c.0.s8 %v2777
  %v2779 = vlaneseq
  %v2780 = vshrl.u32 %v2779, 7
  %v2781 = vsub.s32 %v2778, %v2780
  %v2782 = vrot.slane %v2773, %v2781
  %v2784 = vunpack.c.l.s4 1966171168
  %v2785 = vunpack.c.0.s8 %v2784
  %v2786 = vlaneseq
  %v2787 = vshrl.u32 %v2786, 7
  %v2788 = vsub.s32 %v2785, %v2787
  %v2789 = vrot.slane %v2775, %v2788
  %v2790 = vcombine.high %v2782, %v2782
  %v2791 = vcombine.high %v2789, %v2789
  %v2793 = vunpack.c.l.s4 1966171168
  %v2794 = vunpack.c.0.s8 %v2793
  %v2795 = vlaneseq
  %v2796 = vshrl.u32 %v2795, 7
  %v2797 = vsub.s32 %v2794, %v2796
  %v2798 = vrot.slane %v2782, %v2797
  %v2800 = vunpack.c.l.s4 1966171168
  %v2801 = vunpack.c.0.s8 %v2800
  %v2802 = vlaneseq
  %v2803 = vshrl.u32 %v2802, 7
  %v2804 = vsub.s32 %v2801, %v2803
  %v2805 = vrot.slane %v2789, %v2804
  %v2807 = vunpack.c.l.s4 1966171168
  %v2808 = vunpack.c.0.s8 %v2807
  %v2809 = vlaneseq
  %v2810 = vshrl.u32 %v2809, 7
  %v2811 = vsub.s32 %v2808, %v2810
  %v2812 = vrot.slane %v2790, %v2811
  %v2814 = vunpack.c.l.s4 1966171168
  %v2815 = vunpack.c.0.s8 %v2814
  %v2816 = vlaneseq
  %v2817 = vshrl.u32 %v2816, 7
  %v2818 = vsub.s32 %v2815, %v2817
  %v2819 = vrot.slane %v2791, %v2818
  %v2820 = vcombine.high %v2798, %v2798
  %v2821 = vcombine.high %v2805, %v2805
  %v2822 = vcombine.high %v2812, %v2812
  %v2823 = vcombine.high %v2819, %v2819
  %2832 = vst [vmem:[#allocation3 + $0x6] sm:$0x1] %v2798
  %2833 = vst [vmem:[#allocation3 + $0xe] sm:$0x1] %v2812
  %2834 = vst [vmem:[#allocation3 + $0x16] sm:$0x1] %v2820
  %2835 = vst [vmem:[#allocation3 + $0x1e] sm:$0x1] %v2822
  %2836 = vst [vmem:[#allocation3 + $0x26] sm:$0x1] %v2805
  %2837 = vst [vmem:[#allocation3 + $0x2e] sm:$0x1] %v2819
  %2838 = vst [vmem:[#allocation3 + $0x36] sm:$0x1] %v2821
  %2839 = vst [vmem:[#allocation3 + $0x3e] sm:$0x1] %v2823
  %s2840 = scalar_lea.vmem [#allocation2], 168
  %v2841 = vld [vmem:[%s2840] sm:$0xff]
  %v2842 = vld [vmem:[%s2840 + $0x8] sm:$0xff]
  %v2843 = vld [vmem:[%s2840 + $0x10] sm:$0xff]
  %v2844 = vpack.c.bf16 %v2773, %v2773
  %v2845 = vld [vmem:[%s2] sm:$0xff]
  %v2846 = vld [vmem:[%s2 + $0x8] sm:$0xf]
  %v2847 = vld [vmem:[%s2 + $0xc] sm:$0xff]
  %v2848 = vld [vmem:[%s2 + $0x14] sm:$0xf]
  %v2849 = vld [vmem:[%s2 + $0x18] sm:$0xff]
  %v2850 = vld [vmem:[%s2 + $0x20] sm:$0xf]
  %v2851 = vld [vmem:[%s2 + $0x24] sm:$0xff]
  %v2852 = vld [vmem:[%s2 + $0x2c] sm:$0xf]
  %v2853 = vld [vmem:[%s2 + $0x30] sm:$0xff]
  %v2854 = vld [vmem:[%s2 + $0x38] sm:$0xf]
  %v2855 = vld [vmem:[%s2 + $0x3c] sm:$0xff]
  %v2856 = vld [vmem:[%s2 + $0x44] sm:$0xf]
  %v2857 = vld [vmem:[%s2 + $0x48] sm:$0xff]
  %v2858 = vld [vmem:[%s2 + $0x50] sm:$0xf]
  %v2859 = vld [vmem:[%s2 + $0x54] sm:$0xff]
  %v2860 = vld [vmem:[%s2 + $0x5c] sm:$0xf]
  %v2861 = vld [vmem:[%s2 + $0x60] sm:$0xff]
  %v2862 = vld [vmem:[%s2 + $0x68] sm:$0xf]
  %v2863 = vld [vmem:[%s2 + $0x6c] sm:$0xff]
  %v2864 = vld [vmem:[%s2 + $0x74] sm:$0xf]
  %v2865 = vld [vmem:[%s2 + $0x78] sm:$0xff]
  %v2866 = vld [vmem:[%s2 + $0x80] sm:$0xf]
  %v2867 = vld [vmem:[%s2 + $0x84] sm:$0xff]
  %v2868 = vld [vmem:[%s2 + $0x8c] sm:$0xf]
  %v2869 = vld [vmem:[%s2 + $0x90] sm:$0xff]
  %v2870 = vld [vmem:[%s2 + $0x98] sm:$0xf]
  %v2871 = vld [vmem:[%s2 + $0x9c] sm:$0xff]
  %v2872 = vld [vmem:[%s2 + $0xa4] sm:$0xf]
  %v2873 = vld [vmem:[%s2 + $0xa8] sm:$0xff]
  %v2874 = vld [vmem:[%s2 + $0xb0] sm:$0xf]
  %v2875 = vld [vmem:[%s2 + $0xb4] sm:$0xff]
  %v2876 = vld [vmem:[%s2 + $0xbc] sm:$0xf]
  %v2877 = vld [vmem:[%s4] sm:$0x7]
  %v2879 = vlaneseq
  %v2880 = vshrl.u32 %v2879, 7
  %v2881 = vsub.s32 0, %v2880
  %v2882 = vrot.slane %v2877, %v2881
  %v2883 = vlaneseq
  %v2884 = vshrl.u32 %v2883, 7
  %v2885 = vsub.s32 1, %v2884
  %v2886 = vrot.slane %v2877, %v2885
  %v2887 = vlaneseq
  %v2888 = vshrl.u32 %v2887, 7
  %v2889 = vsub.s32 2, %v2888
  %v2890 = vrot.slane %v2877, %v2889
  %v2926 = vunpack.c.l.b16 %v2845
  %v2927 = vunpack.c.h.b16 %v2845
  %v2928 = vunpack.c.l.b16 %v2846
  %v2929 = vunpack.c.l.b16 %v2847
  %v2930 = vunpack.c.h.b16 %v2847
  %v2931 = vunpack.c.l.b16 %v2848
  %v2932 = vunpack.c.l.b16 %v2849
  %v2933 = vunpack.c.h.b16 %v2849
  %v2934 = vunpack.c.l.b16 %v2850
  %v2935 = vunpack.c.l.b16 %v2851
  %v2936 = vunpack.c.h.b16 %v2851
  %v2937 = vunpack.c.l.b16 %v2852
  %v2938 = vunpack.c.l.b16 %v2853
  %v2939 = vunpack.c.h.b16 %v2853
  %v2940 = vunpack.c.l.b16 %v2854
  %v2941 = vunpack.c.l.b16 %v2855
  %v2942 = vunpack.c.h.b16 %v2855
  %v2943 = vunpack.c.l.b16 %v2856
  %v2944 = vunpack.c.l.b16 %v2857
  %v2945 = vunpack.c.h.b16 %v2857
  %v2946 = vunpack.c.l.b16 %v2858
  %v2947 = vunpack.c.l.b16 %v2859
  %v2948 = vunpack.c.h.b16 %v2859
  %v2949 = vunpack.c.l.b16 %v2860
  %v2950 = vunpack.c.l.b16 %v2861
  %v2951 = vunpack.c.h.b16 %v2861
  %v2952 = vunpack.c.l.b16 %v2862
  %v2953 = vunpack.c.l.b16 %v2863
  %v2954 = vunpack.c.h.b16 %v2863
  %v2955 = vunpack.c.l.b16 %v2864
  %v2956 = vunpack.c.l.b16 %v2865
  %v2957 = vunpack.c.h.b16 %v2865
  %v2958 = vunpack.c.l.b16 %v2866
  %v2959 = vunpack.c.l.b16 %v2867
  %v2960 = vunpack.c.h.b16 %v2867
  %v2961 = vunpack.c.l.b16 %v2868
  %v2962 = vunpack.c.l.b16 %v2869
  %v2963 = vunpack.c.h.b16 %v2869
  %v2964 = vunpack.c.l.b16 %v2870
  %v2965 = vunpack.c.l.b16 %v2871
  %v2966 = vunpack.c.h.b16 %v2871
  %v2967 = vunpack.c.l.b16 %v2872
  %v2968 = vunpack.c.l.b16 %v2873
  %v2969 = vunpack.c.h.b16 %v2873
  %v2970 = vunpack.c.l.b16 %v2874
  %v2971 = vunpack.c.l.b16 %v2875
  %v2972 = vunpack.c.h.b16 %v2875
  %v2973 = vunpack.c.l.b16 %v2876
  %v2974 = vpack.c.b16 %v2929, %v2926
  %v2975 = vpack.c.b16 %v2930, %v2927
  %v2976 = vpack.c.b16 %v2931, %v2928
  %v2977 = vpack.c.b16 %v2935, %v2932
  %v2978 = vpack.c.b16 %v2936, %v2933
  %v2979 = vpack.c.b16 %v2937, %v2934
  %v2980 = vpack.c.b16 %v2941, %v2938
  %v2981 = vpack.c.b16 %v2942, %v2939
  %v2982 = vpack.c.b16 %v2943, %v2940
  %v2983 = vpack.c.b16 %v2947, %v2944
  %v2984 = vpack.c.b16 %v2948, %v2945
  %v2985 = vpack.c.b16 %v2949, %v2946
  %v2986 = vpack.c.b16 %v2953, %v2950
  %v2987 = vpack.c.b16 %v2954, %v2951
  %v2988 = vpack.c.b16 %v2955, %v2952
  %v2989 = vpack.c.b16 %v2959, %v2956
  %v2990 = vpack.c.b16 %v2960, %v2957
  %v2991 = vpack.c.b16 %v2961, %v2958
  %v2992 = vpack.c.b16 %v2965, %v2962
  %v2993 = vpack.c.b16 %v2966, %v2963
  %v2994 = vpack.c.b16 %v2967, %v2964
  %v2995 = vpack.c.b16 %v2971, %v2968
  %v2996 = vpack.c.b16 %v2972, %v2969
  %v2997 = vpack.c.b16 %v2973, %v2970
  %3022 = vmatprep.subr.bf16.mxu0 %v2975
  %3023 = vmatpush1.bf16.msra.mxu0 %v2974
  %3024 = vmatprep.subr.bf16.mxu0 %v2978
  %3025 = vmatpush1.bf16.msra.mxu0 %v2977
  %3026 = vmatprep.subr.bf16.mxu0 %v2981
  %3027 = vmatpush1.bf16.msra.mxu0 %v2980
  %3028 = vmatprep.subr.bf16.mxu0 %v2984
  %3029 = vmatpush1.bf16.msra.mxu0 %v2983
  %3030 = vmatprep.subr.bf16.mxu0 %v2987
  %3031 = vmatpush1.bf16.msra.mxu0 %v2986
  %3032 = vmatprep.subr.bf16.mxu0 %v2990
  %3033 = vmatpush1.bf16.msra.mxu0 %v2989
  %3034 = vmatprep.subr.bf16.mxu0 %v2993
  %3035 = vmatpush1.bf16.msra.mxu0 %v2992
  %3036 = vmatprep.subr.bf16.mxu0 %v2996
  %3037 = vmatpush1.bf16.msra.mxu0 %v2995
  %3038 = vmatprep.subr.bf16.mxu0 0
  %3039 = vmatpush1.bf16.msra.mxu0 0
  %3040 = vmatprep.subr.bf16.mxu0 0
  %3041 = vmatpush1.bf16.msra.mxu0 0
  %3042 = vmatprep.subr.bf16.mxu0 0
  %3043 = vmatpush1.bf16.msra.mxu0 0
  %3044 = vmatprep.subr.bf16.mxu0 0
  %3045 = vmatpush1.bf16.msra.mxu0 0
  %3046 = vmatprep.subr.bf16.mxu0 0
  %3047 = vmatpush1.bf16.msra.mxu0 0
  %3048 = vmatprep.subr.bf16.mxu0 0
  %3049 = vmatpush1.bf16.msra.mxu0 0
  %3050 = vmatprep.subr.bf16.mxu0 0
  %3051 = vmatpush1.bf16.msra.mxu0 0
  %3052 = vmatprep.subr.bf16.mxu0 0
  %3053 = vmatpush1.bf16.msra.mxu0 0
  %3054 = vmatprep.mubr.bf16.mxu0 0
  %3055 = vmatmul.mubr.bf16.gmra.mrb[0].mxu0 %v2844
  %v3056 = vpop.f32.mrb[0].mxu0
  %v3057 = vadd.f32 %v2882, %v3056
  %v3058 = vpop.f32.mrb[0].mxu0
  %v3059 = vadd.f32 %v2886, %v3058
  %v3060 = vpop.f32.mrb[0].mxu0
  %v3061 = vpop.f32.mrb[0].mxu0
  %3062 = vdwg.mxu0
  %3063 = vmatprep.subr.bf16.mxu0 0
  %3064 = vmatpush1.bf16.msra.mxu0 %v2976
  %3065 = vmatprep.subr.bf16.mxu0 0
  %3066 = vmatpush1.bf16.msra.mxu0 %v2979
  %3067 = vmatprep.subr.bf16.mxu0 0
  %3068 = vmatpush1.bf16.msra.mxu0 %v2982
  %3069 = vmatprep.subr.bf16.mxu0 0
  %3070 = vmatpush1.bf16.msra.mxu0 %v2985
  %3071 = vmatprep.subr.bf16.mxu0 0
  %3072 = vmatpush1.bf16.msra.mxu0 %v2988
  %3073 = vmatprep.subr.bf16.mxu0 0
  %3074 = vmatpush1.bf16.msra.mxu0 %v2991
  %3075 = vmatprep.subr.bf16.mxu0 0
  %3076 = vmatpush1.bf16.msra.mxu0 %v2994
  %3077 = vmatprep.subr.bf16.mxu0 0
  %3078 = vmatpush1.bf16.msra.mxu0 %v2997
  %3079 = vmatprep.subr.bf16.mxu0 0
  %3080 = vmatpush1.bf16.msra.mxu0 0
  %3081 = vmatprep.subr.bf16.mxu0 0
  %3082 = vmatpush1.bf16.msra.mxu0 0
  %3083 = vmatprep.subr.bf16.mxu0 0
  %3084 = vmatpush1.bf16.msra.mxu0 0
  %3085 = vmatprep.subr.bf16.mxu0 0
  %3086 = vmatpush1.bf16.msra.mxu0 0
  %3087 = vmatprep.subr.bf16.mxu0 0
  %3088 = vmatpush1.bf16.msra.mxu0 0
  %3089 = vmatprep.subr.bf16.mxu0 0
  %3090 = vmatpush1.bf16.msra.mxu0 0
  %3091 = vmatprep.subr.bf16.mxu0 0
  %3092 = vmatpush1.bf16.msra.mxu0 0
  %3093 = vmatprep.subr.bf16.mxu0 0
  %3094 = vmatpush1.bf16.msra.mxu0 0
  %3095 = vmatprep.mubr.bf16.mxu0 0
  %3096 = vmatmul.mubr.bf16.gmra.mrb[0].mxu0 %v2844
  %v3097 = vpop.f32.mrb[0].mxu0
  %v3098 = vadd.f32 %v2890, %v3097
  %v3099 = vpop.f32.mrb[0].mxu0
  %v3100 = vpop.f32.mrb[0].mxu0
  %v3101 = vpop.f32.mrb[0].mxu0
  %3102 = vdwg.mxu0
  %v3103 = vadd.f32 %v2841, %v3057
  %v3104 = vxor.u32 %v3103, 2147483648
  %v3105 = vmul.f32 %v3104, 1.442695
  %v3106 = vpow.pop %v3105
  %v3107 = vadd.f32 %v3106, 1.0
  %v3108 = vrcp.pop %v3107
  %v3109 = vmul.f32 1.0, %v3108
  %v3110 = vadd.f32 %v2842, %v3059
  %v3111 = vxor.u32 %v3110, 2147483648
  %v3112 = vmul.f32 %v3111, 1.442695
  %v3113 = vpow.pop %v3112
  %v3114 = vadd.f32 %v3113, 1.0
  %v3115 = vrcp.pop %v3114
  %v3116 = vmul.f32 1.0, %v3115
  %v3117 = vmul.f32 %v3109, %v3098
  %v3118 = vadd.f32 %v2843, %v3117
  %v3119 = vtanh.pop %v3118
  %v3120 = vsub.f32 1.0, %v3116
  %v3121 = vmul.f32 %v3120, %v3119
  %v3122 = vmul.f32 %v3116, %v2773
  %v3123 = vadd.f32 %v3121, %v3122
  %v3125 = vcombine.high %v3123, %v3123
  %v3127 = vunpack.c.l.s4 1966171168
  %v3128 = vunpack.c.0.s8 %v3127
  %v3129 = vlaneseq
  %v3130 = vshrl.u32 %v3129, 7
  %v3131 = vsub.s32 %v3128, %v3130
  %v3132 = vrot.slane %v3123, %v3131
  %v3134 = vunpack.c.l.s4 1966171168
  %v3135 = vunpack.c.0.s8 %v3134
  %v3136 = vlaneseq
  %v3137 = vshrl.u32 %v3136, 7
  %v3138 = vsub.s32 %v3135, %v3137
  %v3139 = vrot.slane %v3125, %v3138
  %v3140 = vcombine.high %v3132, %v3132
  %v3141 = vcombine.high %v3139, %v3139
  %v3143 = vunpack.c.l.s4 1966171168
  %v3144 = vunpack.c.0.s8 %v3143
  %v3145 = vlaneseq
  %v3146 = vshrl.u32 %v3145, 7
  %v3147 = vsub.s32 %v3144, %v3146
  %v3148 = vrot.slane %v3132, %v3147
  %v3150 = vunpack.c.l.s4 1966171168
  %v3151 = vunpack.c.0.s8 %v3150
  %v3152 = vlaneseq
  %v3153 = vshrl.u32 %v3152, 7
  %v3154 = vsub.s32 %v3151, %v3153
  %v3155 = vrot.slane %v3139, %v3154
  %v3157 = vunpack.c.l.s4 1966171168
  %v3158 = vunpack.c.0.s8 %v3157
  %v3159 = vlaneseq
  %v3160 = vshrl.u32 %v3159, 7
  %v3161 = vsub.s32 %v3158, %v3160
  %v3162 = vrot.slane %v3140, %v3161
  %v3164 = vunpack.c.l.s4 1966171168
  %v3165 = vunpack.c.0.s8 %v3164
  %v3166 = vlaneseq
  %v3167 = vshrl.u32 %v3166, 7
  %v3168 = vsub.s32 %v3165, %v3167
  %v3169 = vrot.slane %v3141, %v3168
  %v3170 = vcombine.high %v3148, %v3148
  %v3171 = vcombine.high %v3155, %v3155
  %v3172 = vcombine.high %v3162, %v3162
  %v3173 = vcombine.high %v3169, %v3169
  %3182 = vst [vmem:[#allocation3 + $0x7] sm:$0x1] %v3148
  %3183 = vst [vmem:[#allocation3 + $0xf] sm:$0x1] %v3162
  %3184 = vst [vmem:[#allocation3 + $0x17] sm:$0x1] %v3170
  %3185 = vst [vmem:[#allocation3 + $0x1f] sm:$0x1] %v3172
  %3186 = vst [vmem:[#allocation3 + $0x27] sm:$0x1] %v3155
  %3187 = vst [vmem:[#allocation3 + $0x2f] sm:$0x1] %v3169
  %3188 = vst [vmem:[#allocation3 + $0x37] sm:$0x1] %v3171
  %3189 = vst [vmem:[#allocation3 + $0x3f] sm:$0x1] %v3173
  %v3190 = vld [vmem:[#allocation3] sm:$0xff]
  %v3191 = vld [vmem:[#allocation3 + $0x8] sm:$0xff]
  %v3192 = vld [vmem:[#allocation3 + $0x10] sm:$0xff]
  %v3193 = vld [vmem:[#allocation3 + $0x18] sm:$0xff]
  %v3194 = vld [vmem:[#allocation3 + $0x20] sm:$0xff]
  %v3195 = vld [vmem:[#allocation3 + $0x28] sm:$0xff]
  %v3196 = vld [vmem:[#allocation3 + $0x30] sm:$0xff]
  %v3197 = vld [vmem:[#allocation3 + $0x38] sm:$0xff]
  %v3198 = vpack.c.bf16 %v3190, %v3190
  %v3199 = vpack.c.bf16 %v3191, %v3191
  %v3200 = vpack.c.bf16 %v3192, %v3192
  %v3201 = vpack.c.bf16 %v3193, %v3193
  %v3202 = vpack.c.bf16 %v3194, %v3194
  %v3203 = vpack.c.bf16 %v3195, %v3195
  %v3204 = vpack.c.bf16 %v3196, %v3196
  %v3205 = vpack.c.bf16 %v3197, %v3197
  %3206 = vst [vmem:[%s5] sm:$0xf] %v3198
  %3207 = vst [vmem:[%s5 + $0x4] sm:$0xf] %v3199
  %3208 = vst [vmem:[%s5 + $0x8] sm:$0xf] %v3200
  %3209 = vst [vmem:[%s5 + $0xc] sm:$0xf] %v3201
  %3210 = vst [vmem:[%s5 + $0x10] sm:$0xf] %v3202
  %3211 = vst [vmem:[%s5 + $0x14] sm:$0xf] %v3203
  %3212 = vst [vmem:[%s5 + $0x18] sm:$0xf] %v3204
  %3213 = vst [vmem:[%s5 + $0x1c] sm:$0xf] %v3205
  // Predicated region
  $region22: #{language_model_forward.2} parent=0 // pred_check
    _
  $region23: #{language_model_forward.2} parent=0 // pred_check_branch
    %3215 = sbr.rel (0) target = $region25
  $region24: #{language_model_forward.2} parent=0 // pred_region
    _
  $region25: #{language_model_forward.2} parent=0 // pred_fallthru
    _
  // Predicated region
  $region26: #{language_model_forward.2} parent=0 // pred_check
    _
  $region27: #{language_model_forward.2} parent=0 // pred_check_branch
    %3217 = sbr.rel (0) target = $region29
  $region28: #{language_model_forward.2} parent=0 // pred_region
    _
  $region29: #{language_model_forward.2} parent=0 // pred_fallthru
    _

</llo_original>
